<compile_context>
chip_gen: v5e
topology: v5e:2x2
jax: 0.10.0
libtpu: 0.0.40
codegen_flags: <defaults>
</compile_context>

<pallas_src>
import functools

import numpy as np

import jax
import jax.numpy as jnp
from jax.experimental import pallas as pl
from jax.experimental.pallas import tpu as pltpu

EPS = 1e-5  # nn.BatchNorm2d default eps


def _round_up(v, m):
    return (v + m - 1) // m * m


# ----------------------------- kernel helpers ------------------------------ #
def _conv3x3_vpu(pad_ref, wmat, C, Wp, width):
    """3x3 'same' conv over the flattened zero-padded frame layout.

    pad_ref: (C, >= width + 2*Wp + 2) f32 ref; flat index n*PP + row*Wp + col
             holds the zero-padded pixel (row, col) of image n.
    wmat:    (C, 9*C) value, wmat[co, (dy*3+dx)*C + ci] = w[co, ci, dy, dx].

    Returns (C, width) f32 in 'unshifted' frame coordinates (interior pixel
    (n,y,x) at n*PP + y*Wp + x); non-interior positions hold garbage and must
    be masked by the caller.
    """
    accs = [jnp.zeros((C, width), jnp.float32) for _ in range(3)]
    for dy in range(3):
        for dx in range(3):
            k = dy * 3 + dx
            off = dy * Wp + dx
            pk = pad_ref[:, off:off + width]                # (C, width) shifted view
            for ci in range(C):
                wcol = wmat[:, k * C + ci:k * C + ci + 1]   # (Cout, 1)
                accs[dy] = accs[dy] + wcol * pk[ci:ci + 1, :]   # lane-dense VPU FMA
    return accs[0] + accs[1] + accs[2]


# --------------------------------- kernel ----------------------------------- #
def _resblock_kernel(x_ref, w1_ref, w2_ref, g1_ref, b1_ref, g2_ref, b2_ref,
                     mask_ref, o_ref, hpad_ref, *, C, Wp, width, shift, count):
    mask = mask_ref[...]                                    # (1, width)
    inv_count = 1.0 / count

    def batchnorm(y, gamma, beta):
        # Training-mode BatchNorm2d with biased batch statistics over N,H,W.
        ym = y * mask
        mean = jnp.sum(ym, axis=1, keepdims=True) * inv_count
        centered = y - mean
        var = jnp.sum(centered * centered * mask, axis=1, keepdims=True) * inv_count
        scale = gamma * jax.lax.rsqrt(var + EPS)            # rsqrt -> EUP slot
        return centered * scale + beta

    # ---- stage 1: h = relu(bn1(conv1(x))) -----------------------------------
    y1 = _conv3x3_vpu(x_ref, w1_ref[...], C, Wp, width)
    h = jnp.maximum(batchnorm(y1, g1_ref[...], b1_ref[...]), 0.0) * mask

    # ---- re-pad the intermediate entirely in VMEM (shift by one row + col) --
    hpad_ref[...] = jnp.zeros(hpad_ref.shape, jnp.float32)
    hpad_ref[:, shift:shift + width] = h

    # ---- stage 2: out = relu(bn2(conv2(h)) + x) ------------------------------
    y2 = _conv3x3_vpu(hpad_ref, w2_ref[...], C, Wp, width)
    y2 = batchnorm(y2, g2_ref[...], b2_ref[...])
    residual = x_ref[:, shift:shift + width]                # original x, same coords
    o_ref[...] = jnp.maximum(y2 + residual, 0.0).astype(o_ref.dtype)


# --------------------------------- wrapper ---------------------------------- #
def residual_block_pallas(x_nchw, params):
    w1, g1, b1 = params["w1"], params["g1"], params["b1"]
    w2, g2, b2 = params["w2"], params["g2"], params["b2"]
    N, C, H, W = x_nchw.shape
    Hp, Wp = H + 2, W + 2
    PP = Hp * Wp
    frame = N * PP                                   # valid frame length (648)
    width = _round_up(frame, 128)                    # lane-aligned compute width (768)
    in_width = _round_up(width + 2 * Wp + 2, 128)    # room for all 9 shifted views (896)
    shift = Wp + 1                                   # flat offset of padded pixel (1,1)

    # Layout glue only: channels on sublanes; zero-padded flattened frame on lanes.
    x_cnhw = jnp.transpose(x_nchw, (1, 0, 2, 3)).astype(jnp.float32)
    x_pad = jnp.pad(x_cnhw, ((0, 0), (0, 0), (1, 1), (1, 1))).reshape(C, frame)
    x_pad = jnp.pad(x_pad, ((0, 0), (0, in_width - frame)))

    # PyTorch conv weight (Cout, Cin, 3, 3) -> (Cout, 9*Cin), col = (dy*3+dx)*Cin + ci
    def to_mat(w):
        return jnp.transpose(w, (0, 2, 3, 1)).reshape(C, 9 * C).astype(jnp.float32)

    w1m, w2m = to_mat(w1), to_mat(w2)
    g1c = g1.reshape(C, 1).astype(jnp.float32)
    b1c = b1.reshape(C, 1).astype(jnp.float32)
    g2c = g2.reshape(C, 1).astype(jnp.float32)
    b2c = b2.reshape(C, 1).astype(jnp.float32)

    # Validity mask (1.0 at interior pixels of the unshifted output frame).
    m = np.zeros((N, Hp, Wp), np.float32)
    m[:, :H, :W] = 1.0
    mask = jnp.asarray(np.pad(m.reshape(1, frame), ((0, 0), (0, width - frame))))

    vmem = pl.BlockSpec(memory_space=pltpu.MemorySpace.VMEM)
    kernel = functools.partial(_resblock_kernel, C=C, Wp=Wp, width=width,
                               shift=shift, count=float(N * H * W))

    # TODO(synk): for large N*H*W, add a grid (separate global-stats pass for BN,
    # 'parallel' batch/row axes for v7x's 2 TensorCores, blocks sized for VMEM)
    # instead of a single whole-tensor invocation.
    out_flat = pl.pallas_call(
        kernel,
        out_shape=jax.ShapeDtypeStruct((C, width), x_nchw.dtype),
        in_specs=[vmem] * 8,
        out_specs=vmem,
        scratch_shapes=[pltpu.VMEM((C, in_width), jnp.float32)],
    )(x_pad, w1m, w2m, g1c, b1c, g2c, b2c, mask)

    # Un-flatten: (C, width) -> (N, C, H, W)  (tiny layout glue).
    out = out_flat[:, :frame].reshape(C, N, Hp, Wp)[:, :, :H, :W]
    return jnp.transpose(out, (1, 0, 2, 3))


# ------------------------------ pure-JAX reference -------------------------- #
def residual_block_ref(x, params):
    def conv(z, w):
        return jax.lax.conv_general_dilated(
            z, w, window_strides=(1, 1), padding=((1, 1), (1, 1)),
            dimension_numbers=("NCHW", "OIHW", "NCHW"),
            precision=jax.lax.Precision.HIGHEST)

    def bn(z, g, b):
        mean = jnp.mean(z, axis=(0, 2, 3), keepdims=True)
        var = jnp.mean(jnp.square(z - mean), axis=(0, 2, 3), keepdims=True)
        return (z - mean) * jax.lax.rsqrt(var + EPS) * g.reshape(1, -1, 1, 1) \
            + b.reshape(1, -1, 1, 1)

    h = jax.nn.relu(bn(conv(x, params["w1"]), params["g1"], params["b1"]))
    out = bn(conv(h, params["w2"]), params["g2"], params["b2"]) + x
    return jax.nn.relu(out)


# ----------------------------------- main ------------------------------------ #
if __name__ == "__main__":
    N, C, H, W = 2, 4, 16, 16

    key = jax.random.PRNGKey(0)
    kx, kw1, kw2, kg1, kb1, kg2, kb2 = jax.random.split(key, 7)

    x = jax.random.normal(kx, (N, C, H, W), dtype=jnp.float32)
    params = {
        # conv weights: (Cout, Cin, 3, 3), bias=False in the module
        "w1": 0.2 * jax.random.normal(kw1, (C, C, 3, 3), dtype=jnp.float32),
        "w2": 0.2 * jax.random.normal(kw2, (C, C, 3, 3), dtype=jnp.float32),
        # BatchNorm affine params (perturbed from the PyTorch init so the
        # test is non-trivial)
        "g1": 1.0 + 0.1 * jax.random.normal(kg1, (C,), dtype=jnp.float32),
        "b1": 0.1 * jax.random.normal(kb1, (C,), dtype=jnp.float32),
        "g2": 1.0 + 0.1 * jax.random.normal(kg2, (C,), dtype=jnp.float32),
        "b2": 0.1 * jax.random.normal(kb2, (C,), dtype=jnp.float32),
    }

    out = jax.block_until_ready(residual_block_pallas(x, params))
    ref = jax.block_until_ready(residual_block_ref(x, params))

    assert out.shape == (N, C, H, W) and out.dtype == jnp.float32
    err = jnp.max(jnp.abs(out - ref))
    assert jnp.allclose(out, ref, rtol=1e-3, atol=1e-3), f"max abs err = {err}"

    print("KERNEL_OK")
</pallas_src>

<mosaic_0001>
module attributes {stable_mosaic.version = 11 : i64} {
  func.func @_resblock_kernel(%arg0: memref<4x896xf32, #tpu.memory_space<vmem>>, %arg1: memref<4x36xf32, #tpu.memory_space<vmem>>, %arg2: memref<4x36xf32, #tpu.memory_space<vmem>>, %arg3: memref<4x1xf32, #tpu.memory_space<vmem>>, %arg4: memref<4x1xf32, #tpu.memory_space<vmem>>, %arg5: memref<4x1xf32, #tpu.memory_space<vmem>>, %arg6: memref<4x1xf32, #tpu.memory_space<vmem>>, %arg7: memref<1x768xf32, #tpu.memory_space<vmem>>, %arg8: memref<4x768xf32, #tpu.memory_space<vmem>>, %arg9: memref<4x896xf32, #tpu.memory_space<vmem>>) attributes {dimension_semantics = [], scalar_prefetch = 0 : i64, scratch_operands = 1 : i64, tpu.core_type = #tpu.core_type<tc>} {
    %c0 = arith.constant 0 : index
    %c0_0 = arith.constant 0 : index
    %0 = vector.load %arg7[%c0, %c0_0] : memref<1x768xf32, #tpu.memory_space<vmem>>, vector<1x768xf32>
    %c0_1 = arith.constant 0 : index
    %c0_2 = arith.constant 0 : index
    %1 = vector.load %arg1[%c0_1, %c0_2] : memref<4x36xf32, #tpu.memory_space<vmem>>, vector<4x36xf32>
    %cst = arith.constant 0.000000e+00 : f32
    %2 = vector.broadcast %cst : f32 to vector<4x768xf32>
    %cst_3 = arith.constant 0.000000e+00 : f32
    %3 = vector.broadcast %cst_3 : f32 to vector<4x768xf32>
    %cst_4 = arith.constant 0.000000e+00 : f32
    %4 = vector.broadcast %cst_4 : f32 to vector<4x768xf32>
    %c0_5 = arith.constant 0 : index
    %c0_6 = arith.constant 0 : index
    %5 = vector.load %arg0[%c0_5, %c0_6] : memref<4x896xf32, #tpu.memory_space<vmem>>, vector<4x768xf32>
    %6 = vector.extract_strided_slice %1 {offsets = [0, 0], sizes = [4, 1], strides = [1, 1]} : vector<4x36xf32> to vector<4x1xf32>
    %7 = vector.extract_strided_slice %5 {offsets = [0, 0], sizes = [1, 768], strides = [1, 1]} : vector<4x768xf32> to vector<1x768xf32>
    %8 = vector.broadcast %6 : vector<4x1xf32> to vector<4x768xf32>
    %9 = vector.broadcast %7 : vector<1x768xf32> to vector<4x768xf32>
    %10 = arith.mulf %8, %9 : vector<4x768xf32>
    %11 = arith.addf %2, %10 : vector<4x768xf32>
    %12 = vector.extract_strided_slice %1 {offsets = [0, 1], sizes = [4, 1], strides = [1, 1]} : vector<4x36xf32> to vector<4x1xf32>
    %13 = vector.extract_strided_slice %5 {offsets = [1, 0], sizes = [1, 768], strides = [1, 1]} : vector<4x768xf32> to vector<1x768xf32>
    %14 = vector.broadcast %12 : vector<4x1xf32> to vector<4x768xf32>
    %15 = vector.broadcast %13 : vector<1x768xf32> to vector<4x768xf32>
    %16 = arith.mulf %14, %15 : vector<4x768xf32>
    %17 = arith.addf %11, %16 : vector<4x768xf32>
    %18 = vector.extract_strided_slice %1 {offsets = [0, 2], sizes = [4, 1], strides = [1, 1]} : vector<4x36xf32> to vector<4x1xf32>
    %19 = vector.extract_strided_slice %5 {offsets = [2, 0], sizes = [1, 768], strides = [1, 1]} : vector<4x768xf32> to vector<1x768xf32>
    %20 = vector.broadcast %18 : vector<4x1xf32> to vector<4x768xf32>
    %21 = vector.broadcast %19 : vector<1x768xf32> to vector<4x768xf32>
    %22 = arith.mulf %20, %21 : vector<4x768xf32>
    %23 = arith.addf %17, %22 : vector<4x768xf32>
    %24 = vector.extract_strided_slice %1 {offsets = [0, 3], sizes = [4, 1], strides = [1, 1]} : vector<4x36xf32> to vector<4x1xf32>
    %25 = vector.extract_strided_slice %5 {offsets = [3, 0], sizes = [1, 768], strides = [1, 1]} : vector<4x768xf32> to vector<1x768xf32>
    %26 = vector.broadcast %24 : vector<4x1xf32> to vector<4x768xf32>
    %27 = vector.broadcast %25 : vector<1x768xf32> to vector<4x768xf32>
    %28 = arith.mulf %26, %27 : vector<4x768xf32>
    %29 = arith.addf %23, %28 : vector<4x768xf32>
    %c0_7 = arith.constant 0 : index
    %c1 = arith.constant 1 : index
    %30 = vector.load %arg0[%c0_7, %c1] : memref<4x896xf32, #tpu.memory_space<vmem>>, vector<4x768xf32>
    %31 = vector.extract_strided_slice %1 {offsets = [0, 4], sizes = [4, 1], strides = [1, 1]} : vector<4x36xf32> to vector<4x1xf32>
    %32 = vector.extract_strided_slice %30 {offsets = [0, 0], sizes = [1, 768], strides = [1, 1]} : vector<4x768xf32> to vector<1x768xf32>
    %33 = vector.broadcast %31 : vector<4x1xf32> to vector<4x768xf32>
    %34 = vector.broadcast %32 : vector<1x768xf32> to vector<4x768xf32>
    %35 = arith.mulf %33, %34 : vector<4x768xf32>
    %36 = arith.addf %29, %35 : vector<4x768xf32>
    %37 = vector.extract_strided_slice %1 {offsets = [0, 5], sizes = [4, 1], strides = [1, 1]} : vector<4x36xf32> to vector<4x1xf32>
    %38 = vector.extract_strided_slice %30 {offsets = [1, 0], sizes = [1, 768], strides = [1, 1]} : vector<4x768xf32> to vector<1x768xf32>
    %39 = vector.broadcast %37 : vector<4x1xf32> to vector<4x768xf32>
    %40 = vector.broadcast %38 : vector<1x768xf32> to vector<4x768xf32>
    %41 = arith.mulf %39, %40 : vector<4x768xf32>
    %42 = arith.addf %36, %41 : vector<4x768xf32>
    %43 = vector.extract_strided_slice %1 {offsets = [0, 6], sizes = [4, 1], strides = [1, 1]} : vector<4x36xf32> to vector<4x1xf32>
    %44 = vector.extract_strided_slice %30 {offsets = [2, 0], sizes = [1, 768], strides = [1, 1]} : vector<4x768xf32> to vector<1x768xf32>
    %45 = vector.broadcast %43 : vector<4x1xf32> to vector<4x768xf32>
    %46 = vector.broadcast %44 : vector<1x768xf32> to vector<4x768xf32>
    %47 = arith.mulf %45, %46 : vector<4x768xf32>
    %48 = arith.addf %42, %47 : vector<4x768xf32>
    %49 = vector.extract_strided_slice %1 {offsets = [0, 7], sizes = [4, 1], strides = [1, 1]} : vector<4x36xf32> to vector<4x1xf32>
    %50 = vector.extract_strided_slice %30 {offsets = [3, 0], sizes = [1, 768], strides = [1, 1]} : vector<4x768xf32> to vector<1x768xf32>
    %51 = vector.broadcast %49 : vector<4x1xf32> to vector<4x768xf32>
    %52 = vector.broadcast %50 : vector<1x768xf32> to vector<4x768xf32>
    %53 = arith.mulf %51, %52 : vector<4x768xf32>
    %54 = arith.addf %48, %53 : vector<4x768xf32>
    %c0_8 = arith.constant 0 : index
    %c2 = arith.constant 2 : index
    %55 = vector.load %arg0[%c0_8, %c2] : memref<4x896xf32, #tpu.memory_space<vmem>>, vector<4x768xf32>
    %56 = vector.extract_strided_slice %1 {offsets = [0, 8], sizes = [4, 1], strides = [1, 1]} : vector<4x36xf32> to vector<4x1xf32>
    %57 = vector.extract_strided_slice %55 {offsets = [0, 0], sizes = [1, 768], strides = [1, 1]} : vector<4x768xf32> to vector<1x768xf32>
    %58 = vector.broadcast %56 : vector<4x1xf32> to vector<4x768xf32>
    %59 = vector.broadcast %57 : vector<1x768xf32> to vector<4x768xf32>
    %60 = arith.mulf %58, %59 : vector<4x768xf32>
    %61 = arith.addf %54, %60 : vector<4x768xf32>
    %62 = vector.extract_strided_slice %1 {offsets = [0, 9], sizes = [4, 1], strides = [1, 1]} : vector<4x36xf32> to vector<4x1xf32>
    %63 = vector.extract_strided_slice %55 {offsets = [1, 0], sizes = [1, 768], strides = [1, 1]} : vector<4x768xf32> to vector<1x768xf32>
    %64 = vector.broadcast %62 : vector<4x1xf32> to vector<4x768xf32>
    %65 = vector.broadcast %63 : vector<1x768xf32> to vector<4x768xf32>
    %66 = arith.mulf %64, %65 : vector<4x768xf32>
    %67 = arith.addf %61, %66 : vector<4x768xf32>
    %68 = vector.extract_strided_slice %1 {offsets = [0, 10], sizes = [4, 1], strides = [1, 1]} : vector<4x36xf32> to vector<4x1xf32>
    %69 = vector.extract_strided_slice %55 {offsets = [2, 0], sizes = [1, 768], strides = [1, 1]} : vector<4x768xf32> to vector<1x768xf32>
    %70 = vector.broadcast %68 : vector<4x1xf32> to vector<4x768xf32>
    %71 = vector.broadcast %69 : vector<1x768xf32> to vector<4x768xf32>
    %72 = arith.mulf %70, %71 : vector<4x768xf32>
    %73 = arith.addf %67, %72 : vector<4x768xf32>
    %74 = vector.extract_strided_slice %1 {offsets = [0, 11], sizes = [4, 1], strides = [1, 1]} : vector<4x36xf32> to vector<4x1xf32>
    %75 = vector.extract_strided_slice %55 {offsets = [3, 0], sizes = [1, 768], strides = [1, 1]} : vector<4x768xf32> to vector<1x768xf32>
    %76 = vector.broadcast %74 : vector<4x1xf32> to vector<4x768xf32>
    %77 = vector.broadcast %75 : vector<1x768xf32> to vector<4x768xf32>
    %78 = arith.mulf %76, %77 : vector<4x768xf32>
    %79 = arith.addf %73, %78 : vector<4x768xf32>
    %c0_9 = arith.constant 0 : index
    %c18 = arith.constant 18 : index
    %80 = vector.load %arg0[%c0_9, %c18] : memref<4x896xf32, #tpu.memory_space<vmem>>, vector<4x768xf32>
    %81 = vector.extract_strided_slice %1 {offsets = [0, 12], sizes = [4, 1], strides = [1, 1]} : vector<4x36xf32> to vector<4x1xf32>
    %82 = vector.extract_strided_slice %80 {offsets = [0, 0], sizes = [1, 768], strides = [1, 1]} : vector<4x768xf32> to vector<1x768xf32>
    %83 = vector.broadcast %81 : vector<4x1xf32> to vector<4x768xf32>
    %84 = vector.broadcast %82 : vector<1x768xf32> to vector<4x768xf32>
    %85 = arith.mulf %83, %84 : vector<4x768xf32>
    %86 = arith.addf %3, %85 : vector<4x768xf32>
    %87 = vector.extract_strided_slice %1 {offsets = [0, 13], sizes = [4, 1], strides = [1, 1]} : vector<4x36xf32> to vector<4x1xf32>
    %88 = vector.extract_strided_slice %80 {offsets = [1, 0], sizes = [1, 768], strides = [1, 1]} : vector<4x768xf32> to vector<1x768xf32>
    %89 = vector.broadcast %87 : vector<4x1xf32> to vector<4x768xf32>
    %90 = vector.broadcast %88 : vector<1x768xf32> to vector<4x768xf32>
    %91 = arith.mulf %89, %90 : vector<4x768xf32>
    %92 = arith.addf %86, %91 : vector<4x768xf32>
    %93 = vector.extract_strided_slice %1 {offsets = [0, 14], sizes = [4, 1], strides = [1, 1]} : vector<4x36xf32> to vector<4x1xf32>
    %94 = vector.extract_strided_slice %80 {offsets = [2, 0], sizes = [1, 768], strides = [1, 1]} : vector<4x768xf32> to vector<1x768xf32>
    %95 = vector.broadcast %93 : vector<4x1xf32> to vector<4x768xf32>
    %96 = vector.broadcast %94 : vector<1x768xf32> to vector<4x768xf32>
    %97 = arith.mulf %95, %96 : vector<4x768xf32>
    %98 = arith.addf %92, %97 : vector<4x768xf32>
    %99 = vector.extract_strided_slice %1 {offsets = [0, 15], sizes = [4, 1], strides = [1, 1]} : vector<4x36xf32> to vector<4x1xf32>
    %100 = vector.extract_strided_slice %80 {offsets = [3, 0], sizes = [1, 768], strides = [1, 1]} : vector<4x768xf32> to vector<1x768xf32>
    %101 = vector.broadcast %99 : vector<4x1xf32> to vector<4x768xf32>
    %102 = vector.broadcast %100 : vector<1x768xf32> to vector<4x768xf32>
    %103 = arith.mulf %101, %102 : vector<4x768xf32>
    %104 = arith.addf %98, %103 : vector<4x768xf32>
    %c0_10 = arith.constant 0 : index
    %c19 = arith.constant 19 : index
    %105 = vector.load %arg0[%c0_10, %c19] : memref<4x896xf32, #tpu.memory_space<vmem>>, vector<4x768xf32>
    %106 = vector.extract_strided_slice %1 {offsets = [0, 16], sizes = [4, 1], strides = [1, 1]} : vector<4x36xf32> to vector<4x1xf32>
    %107 = vector.extract_strided_slice %105 {offsets = [0, 0], sizes = [1, 768], strides = [1, 1]} : vector<4x768xf32> to vector<1x768xf32>
    %108 = vector.broadcast %106 : vector<4x1xf32> to vector<4x768xf32>
    %109 = vector.broadcast %107 : vector<1x768xf32> to vector<4x768xf32>
    %110 = arith.mulf %108, %109 : vector<4x768xf32>
    %111 = arith.addf %104, %110 : vector<4x768xf32>
    %112 = vector.extract_strided_slice %1 {offsets = [0, 17], sizes = [4, 1], strides = [1, 1]} : vector<4x36xf32> to vector<4x1xf32>
    %113 = vector.extract_strided_slice %105 {offsets = [1, 0], sizes = [1, 768], strides = [1, 1]} : vector<4x768xf32> to vector<1x768xf32>
    %114 = vector.broadcast %112 : vector<4x1xf32> to vector<4x768xf32>
    %115 = vector.broadcast %113 : vector<1x768xf32> to vector<4x768xf32>
    %116 = arith.mulf %114, %115 : vector<4x768xf32>
    %117 = arith.addf %111, %116 : vector<4x768xf32>
    %118 = vector.extract_strided_slice %1 {offsets = [0, 18], sizes = [4, 1], strides = [1, 1]} : vector<4x36xf32> to vector<4x1xf32>
    %119 = vector.extract_strided_slice %105 {offsets = [2, 0], sizes = [1, 768], strides = [1, 1]} : vector<4x768xf32> to vector<1x768xf32>
    %120 = vector.broadcast %118 : vector<4x1xf32> to vector<4x768xf32>
    %121 = vector.broadcast %119 : vector<1x768xf32> to vector<4x768xf32>
    %122 = arith.mulf %120, %121 : vector<4x768xf32>
    %123 = arith.addf %117, %122 : vector<4x768xf32>
    %124 = vector.extract_strided_slice %1 {offsets = [0, 19], sizes = [4, 1], strides = [1, 1]} : vector<4x36xf32> to vector<4x1xf32>
    %125 = vector.extract_strided_slice %105 {offsets = [3, 0], sizes = [1, 768], strides = [1, 1]} : vector<4x768xf32> to vector<1x768xf32>
    %126 = vector.broadcast %124 : vector<4x1xf32> to vector<4x768xf32>
    %127 = vector.broadcast %125 : vector<1x768xf32> to vector<4x768xf32>
    %128 = arith.mulf %126, %127 : vector<4x768xf32>
    %129 = arith.addf %123, %128 : vector<4x768xf32>
    %c0_11 = arith.constant 0 : index
    %c20 = arith.constant 20 : index
    %130 = vector.load %arg0[%c0_11, %c20] : memref<4x896xf32, #tpu.memory_space<vmem>>, vector<4x768xf32>
    %131 = vector.extract_strided_slice %1 {offsets = [0, 20], sizes = [4, 1], strides = [1, 1]} : vector<4x36xf32> to vector<4x1xf32>
    %132 = vector.extract_strided_slice %130 {offsets = [0, 0], sizes = [1, 768], strides = [1, 1]} : vector<4x768xf32> to vector<1x768xf32>
    %133 = vector.broadcast %131 : vector<4x1xf32> to vector<4x768xf32>
    %134 = vector.broadcast %132 : vector<1x768xf32> to vector<4x768xf32>
    %135 = arith.mulf %133, %134 : vector<4x768xf32>
    %136 = arith.addf %129, %135 : vector<4x768xf32>
    %137 = vector.extract_strided_slice %1 {offsets = [0, 21], sizes = [4, 1], strides = [1, 1]} : vector<4x36xf32> to vector<4x1xf32>
    %138 = vector.extract_strided_slice %130 {offsets = [1, 0], sizes = [1, 768], strides = [1, 1]} : vector<4x768xf32> to vector<1x768xf32>
    %139 = vector.broadcast %137 : vector<4x1xf32> to vector<4x768xf32>
    %140 = vector.broadcast %138 : vector<1x768xf32> to vector<4x768xf32>
    %141 = arith.mulf %139, %140 : vector<4x768xf32>
    %142 = arith.addf %136, %141 : vector<4x768xf32>
    %143 = vector.extract_strided_slice %1 {offsets = [0, 22], sizes = [4, 1], strides = [1, 1]} : vector<4x36xf32> to vector<4x1xf32>
    %144 = vector.extract_strided_slice %130 {offsets = [2, 0], sizes = [1, 768], strides = [1, 1]} : vector<4x768xf32> to vector<1x768xf32>
    %145 = vector.broadcast %143 : vector<4x1xf32> to vector<4x768xf32>
    %146 = vector.broadcast %144 : vector<1x768xf32> to vector<4x768xf32>
    %147 = arith.mulf %145, %146 : vector<4x768xf32>
    %148 = arith.addf %142, %147 : vector<4x768xf32>
    %149 = vector.extract_strided_slice %1 {offsets = [0, 23], sizes = [4, 1], strides = [1, 1]} : vector<4x36xf32> to vector<4x1xf32>
    %150 = vector.extract_strided_slice %130 {offsets = [3, 0], sizes = [1, 768], strides = [1, 1]} : vector<4x768xf32> to vector<1x768xf32>
    %151 = vector.broadcast %149 : vector<4x1xf32> to vector<4x768xf32>
    %152 = vector.broadcast %150 : vector<1x768xf32> to vector<4x768xf32>
    %153 = arith.mulf %151, %152 : vector<4x768xf32>
    %154 = arith.addf %148, %153 : vector<4x768xf32>
    %c0_12 = arith.constant 0 : index
    %c36 = arith.constant 36 : index
    %155 = vector.load %arg0[%c0_12, %c36] : memref<4x896xf32, #tpu.memory_space<vmem>>, vector<4x768xf32>
    %156 = vector.extract_strided_slice %1 {offsets = [0, 24], sizes = [4, 1], strides = [1, 1]} : vector<4x36xf32> to vector<4x1xf32>
    %157 = vector.extract_strided_slice %155 {offsets = [0, 0], sizes = [1, 768], strides = [1, 1]} : vector<4x768xf32> to vector<1x768xf32>
    %158 = vector.broadcast %156 : vector<4x1xf32> to vector<4x768xf32>
    %159 = vector.broadcast %157 : vector<1x768xf32> to vector<4x768xf32>
    %160 = arith.mulf %158, %159 : vector<4x768xf32>
    %161 = arith.addf %4, %160 : vector<4x768xf32>
    %162 = vector.extract_strided_slice %1 {offsets = [0, 25], sizes = [4, 1], strides = [1, 1]} : vector<4x36xf32> to vector<4x1xf32>
    %163 = vector.extract_strided_slice %155 {offsets = [1, 0], sizes = [1, 768], strides = [1, 1]} : vector<4x768xf32> to vector<1x768xf32>
    %164 = vector.broadcast %162 : vector<4x1xf32> to vector<4x768xf32>
    %165 = vector.broadcast %163 : vector<1x768xf32> to vector<4x768xf32>
    %166 = arith.mulf %164, %165 : vector<4x768xf32>
    %167 = arith.addf %161, %166 : vector<4x768xf32>
    %168 = vector.extract_strided_slice %1 {offsets = [0, 26], sizes = [4, 1], strides = [1, 1]} : vector<4x36xf32> to vector<4x1xf32>
    %169 = vector.extract_strided_slice %155 {offsets = [2, 0], sizes = [1, 768], strides = [1, 1]} : vector<4x768xf32> to vector<1x768xf32>
    %170 = vector.broadcast %168 : vector<4x1xf32> to vector<4x768xf32>
    %171 = vector.broadcast %169 : vector<1x768xf32> to vector<4x768xf32>
    %172 = arith.mulf %170, %171 : vector<4x768xf32>
    %173 = arith.addf %167, %172 : vector<4x768xf32>
    %174 = vector.extract_strided_slice %1 {offsets = [0, 27], sizes = [4, 1], strides = [1, 1]} : vector<4x36xf32> to vector<4x1xf32>
    %175 = vector.extract_strided_slice %155 {offsets = [3, 0], sizes = [1, 768], strides = [1, 1]} : vector<4x768xf32> to vector<1x768xf32>
    %176 = vector.broadcast %174 : vector<4x1xf32> to vector<4x768xf32>
    %177 = vector.broadcast %175 : vector<1x768xf32> to vector<4x768xf32>
    %178 = arith.mulf %176, %177 : vector<4x768xf32>
    %179 = arith.addf %173, %178 : vector<4x768xf32>
    %c0_13 = arith.constant 0 : index
    %c37 = arith.constant 37 : index
    %180 = vector.load %arg0[%c0_13, %c37] : memref<4x896xf32, #tpu.memory_space<vmem>>, vector<4x768xf32>
    %181 = vector.extract_strided_slice %1 {offsets = [0, 28], sizes = [4, 1], strides = [1, 1]} : vector<4x36xf32> to vector<4x1xf32>
    %182 = vector.extract_strided_slice %180 {offsets = [0, 0], sizes = [1, 768], strides = [1, 1]} : vector<4x768xf32> to vector<1x768xf32>
    %183 = vector.broadcast %181 : vector<4x1xf32> to vector<4x768xf32>
    %184 = vector.broadcast %182 : vector<1x768xf32> to vector<4x768xf32>
    %185 = arith.mulf %183, %184 : vector<4x768xf32>
    %186 = arith.addf %179, %185 : vector<4x768xf32>
    %187 = vector.extract_strided_slice %1 {offsets = [0, 29], sizes = [4, 1], strides = [1, 1]} : vector<4x36xf32> to vector<4x1xf32>
    %188 = vector.extract_strided_slice %180 {offsets = [1, 0], sizes = [1, 768], strides = [1, 1]} : vector<4x768xf32> to vector<1x768xf32>
    %189 = vector.broadcast %187 : vector<4x1xf32> to vector<4x768xf32>
    %190 = vector.broadcast %188 : vector<1x768xf32> to vector<4x768xf32>
    %191 = arith.mulf %189, %190 : vector<4x768xf32>
    %192 = arith.addf %186, %191 : vector<4x768xf32>
    %193 = vector.extract_strided_slice %1 {offsets = [0, 30], sizes = [4, 1], strides = [1, 1]} : vector<4x36xf32> to vector<4x1xf32>
    %194 = vector.extract_strided_slice %180 {offsets = [2, 0], sizes = [1, 768], strides = [1, 1]} : vector<4x768xf32> to vector<1x768xf32>
    %195 = vector.broadcast %193 : vector<4x1xf32> to vector<4x768xf32>
    %196 = vector.broadcast %194 : vector<1x768xf32> to vector<4x768xf32>
    %197 = arith.mulf %195, %196 : vector<4x768xf32>
    %198 = arith.addf %192, %197 : vector<4x768xf32>
    %199 = vector.extract_strided_slice %1 {offsets = [0, 31], sizes = [4, 1], strides = [1, 1]} : vector<4x36xf32> to vector<4x1xf32>
    %200 = vector.extract_strided_slice %180 {offsets = [3, 0], sizes = [1, 768], strides = [1, 1]} : vector<4x768xf32> to vector<1x768xf32>
    %201 = vector.broadcast %199 : vector<4x1xf32> to vector<4x768xf32>
    %202 = vector.broadcast %200 : vector<1x768xf32> to vector<4x768xf32>
    %203 = arith.mulf %201, %202 : vector<4x768xf32>
    %204 = arith.addf %198, %203 : vector<4x768xf32>
    %c0_14 = arith.constant 0 : index
    %c38 = arith.constant 38 : index
    %205 = vector.load %arg0[%c0_14, %c38] : memref<4x896xf32, #tpu.memory_space<vmem>>, vector<4x768xf32>
    %206 = vector.extract_strided_slice %1 {offsets = [0, 32], sizes = [4, 1], strides = [1, 1]} : vector<4x36xf32> to vector<4x1xf32>
    %207 = vector.extract_strided_slice %205 {offsets = [0, 0], sizes = [1, 768], strides = [1, 1]} : vector<4x768xf32> to vector<1x768xf32>
    %208 = vector.broadcast %206 : vector<4x1xf32> to vector<4x768xf32>
    %209 = vector.broadcast %207 : vector<1x768xf32> to vector<4x768xf32>
    %210 = arith.mulf %208, %209 : vector<4x768xf32>
    %211 = arith.addf %204, %210 : vector<4x768xf32>
    %212 = vector.extract_strided_slice %1 {offsets = [0, 33], sizes = [4, 1], strides = [1, 1]} : vector<4x36xf32> to vector<4x1xf32>
    %213 = vector.extract_strided_slice %205 {offsets = [1, 0], sizes = [1, 768], strides = [1, 1]} : vector<4x768xf32> to vector<1x768xf32>
    %214 = vector.broadcast %212 : vector<4x1xf32> to vector<4x768xf32>
    %215 = vector.broadcast %213 : vector<1x768xf32> to vector<4x768xf32>
    %216 = arith.mulf %214, %215 : vector<4x768xf32>
    %217 = arith.addf %211, %216 : vector<4x768xf32>
    %218 = vector.extract_strided_slice %1 {offsets = [0, 34], sizes = [4, 1], strides = [1, 1]} : vector<4x36xf32> to vector<4x1xf32>
    %219 = vector.extract_strided_slice %205 {offsets = [2, 0], sizes = [1, 768], strides = [1, 1]} : vector<4x768xf32> to vector<1x768xf32>
    %220 = vector.broadcast %218 : vector<4x1xf32> to vector<4x768xf32>
    %221 = vector.broadcast %219 : vector<1x768xf32> to vector<4x768xf32>
    %222 = arith.mulf %220, %221 : vector<4x768xf32>
    %223 = arith.addf %217, %222 : vector<4x768xf32>
    %224 = vector.extract_strided_slice %1 {offsets = [0, 35], sizes = [4, 1], strides = [1, 1]} : vector<4x36xf32> to vector<4x1xf32>
    %225 = vector.extract_strided_slice %205 {offsets = [3, 0], sizes = [1, 768], strides = [1, 1]} : vector<4x768xf32> to vector<1x768xf32>
    %226 = vector.broadcast %224 : vector<4x1xf32> to vector<4x768xf32>
    %227 = vector.broadcast %225 : vector<1x768xf32> to vector<4x768xf32>
    %228 = arith.mulf %226, %227 : vector<4x768xf32>
    %229 = arith.addf %223, %228 : vector<4x768xf32>
    %230 = arith.addf %79, %154 : vector<4x768xf32>
    %231 = arith.addf %230, %229 : vector<4x768xf32>
    %c0_15 = arith.constant 0 : index
    %c0_16 = arith.constant 0 : index
    %232 = vector.load %arg3[%c0_15, %c0_16] : memref<4x1xf32, #tpu.memory_space<vmem>>, vector<4x1xf32>
    %c0_17 = arith.constant 0 : index
    %c0_18 = arith.constant 0 : index
    %233 = vector.load %arg4[%c0_17, %c0_18] : memref<4x1xf32, #tpu.memory_space<vmem>>, vector<4x1xf32>
    %234 = vector.broadcast %0 : vector<1x768xf32> to vector<4x768xf32>
    %235 = arith.mulf %231, %234 : vector<4x768xf32>
    %cst_19 = arith.constant dense<0.000000e+00> : vector<4xf32>
    %236 = vector.multi_reduction <add>, %235, %cst_19 [1] : vector<4x768xf32> to vector<4xf32>
    %237 = vector.shape_cast %236 : vector<4xf32> to vector<4x1xf32>
    %cst_20 = arith.constant 0.001953125 : f32
    %238 = vector.broadcast %cst_20 : f32 to vector<4x1xf32>
    %239 = arith.mulf %237, %238 : vector<4x1xf32>
    %240 = vector.broadcast %239 : vector<4x1xf32> to vector<4x768xf32>
    %241 = arith.subf %231, %240 : vector<4x768xf32>
    %242 = arith.mulf %241, %241 : vector<4x768xf32>
    %243 = vector.broadcast %0 : vector<1x768xf32> to vector<4x768xf32>
    %244 = arith.mulf %242, %243 : vector<4x768xf32>
    %cst_21 = arith.constant dense<0.000000e+00> : vector<4xf32>
    %245 = vector.multi_reduction <add>, %244, %cst_21 [1] : vector<4x768xf32> to vector<4xf32>
    %246 = vector.shape_cast %245 : vector<4xf32> to vector<4x1xf32>
    %cst_22 = arith.constant 0.001953125 : f32
    %247 = vector.broadcast %cst_22 : f32 to vector<4x1xf32>
    %248 = arith.mulf %246, %247 : vector<4x1xf32>
    %cst_23 = arith.constant 9.99999974E-6 : f32
    %249 = vector.broadcast %cst_23 : f32 to vector<4x1xf32>
    %250 = arith.addf %248, %249 : vector<4x1xf32>
    %251 = math.rsqrt %250 : vector<4x1xf32>
    %252 = arith.mulf %232, %251 : vector<4x1xf32>
    %253 = vector.broadcast %252 : vector<4x1xf32> to vector<4x768xf32>
    %254 = arith.mulf %241, %253 : vector<4x768xf32>
    %255 = vector.broadcast %233 : vector<4x1xf32> to vector<4x768xf32>
    %256 = arith.addf %254, %255 : vector<4x768xf32>
    %cst_24 = arith.constant 0.000000e+00 : f32
    %257 = vector.broadcast %cst_24 : f32 to vector<4x768xf32>
    %258 = arith.maximumf %256, %257 : vector<4x768xf32>
    %259 = vector.broadcast %0 : vector<1x768xf32> to vector<4x768xf32>
    %260 = arith.mulf %258, %259 : vector<4x768xf32>
    %cst_25 = arith.constant 0.000000e+00 : f32
    %261 = vector.broadcast %cst_25 : f32 to vector<4x896xf32>
    %c0_26 = arith.constant 0 : index
    %c0_27 = arith.constant 0 : index
    %262 = vector.load %arg9[%c0_26, %c0_27] : memref<4x896xf32, #tpu.memory_space<vmem>>, vector<4x896xf32>
    tpu.vector_store %arg9[%c0_26, %c0_27], %261 {strides = array<i32>} : memref<4x896xf32, #tpu.memory_space<vmem>>, vector<4x896xf32>,
    %c0_28 = arith.constant 0 : index
    %c19_29 = arith.constant 19 : index
    %263 = vector.load %arg9[%c0_28, %c19_29] : memref<4x896xf32, #tpu.memory_space<vmem>>, vector<4x768xf32>
    tpu.vector_store %arg9[%c0_28, %c19_29], %260 {strides = array<i32>} : memref<4x896xf32, #tpu.memory_space<vmem>>, vector<4x768xf32>,
    %c0_30 = arith.constant 0 : index
    %c0_31 = arith.constant 0 : index
    %264 = vector.load %arg2[%c0_30, %c0_31] : memref<4x36xf32, #tpu.memory_space<vmem>>, vector<4x36xf32>
    %cst_32 = arith.constant 0.000000e+00 : f32
    %265 = vector.broadcast %cst_32 : f32 to vector<4x768xf32>
    %cst_33 = arith.constant 0.000000e+00 : f32
    %266 = vector.broadcast %cst_33 : f32 to vector<4x768xf32>
    %cst_34 = arith.constant 0.000000e+00 : f32
    %267 = vector.broadcast %cst_34 : f32 to vector<4x768xf32>
    %c0_35 = arith.constant 0 : index
    %c0_36 = arith.constant 0 : index
    %268 = vector.load %arg9[%c0_35, %c0_36] : memref<4x896xf32, #tpu.memory_space<vmem>>, vector<4x768xf32>
    %269 = vector.extract_strided_slice %264 {offsets = [0, 0], sizes = [4, 1], strides = [1, 1]} : vector<4x36xf32> to vector<4x1xf32>
    %270 = vector.extract_strided_slice %268 {offsets = [0, 0], sizes = [1, 768], strides = [1, 1]} : vector<4x768xf32> to vector<1x768xf32>
    %271 = vector.broadcast %269 : vector<4x1xf32> to vector<4x768xf32>
    %272 = vector.broadcast %270 : vector<1x768xf32> to vector<4x768xf32>
    %273 = arith.mulf %271, %272 : vector<4x768xf32>
    %274 = arith.addf %265, %273 : vector<4x768xf32>
    %275 = vector.extract_strided_slice %264 {offsets = [0, 1], sizes = [4, 1], strides = [1, 1]} : vector<4x36xf32> to vector<4x1xf32>
    %276 = vector.extract_strided_slice %268 {offsets = [1, 0], sizes = [1, 768], strides = [1, 1]} : vector<4x768xf32> to vector<1x768xf32>
    %277 = vector.broadcast %275 : vector<4x1xf32> to vector<4x768xf32>
    %278 = vector.broadcast %276 : vector<1x768xf32> to vector<4x768xf32>
    %279 = arith.mulf %277, %278 : vector<4x768xf32>
    %280 = arith.addf %274, %279 : vector<4x768xf32>
    %281 = vector.extract_strided_slice %264 {offsets = [0, 2], sizes = [4, 1], strides = [1, 1]} : vector<4x36xf32> to vector<4x1xf32>
    %282 = vector.extract_strided_slice %268 {offsets = [2, 0], sizes = [1, 768], strides = [1, 1]} : vector<4x768xf32> to vector<1x768xf32>
    %283 = vector.broadcast %281 : vector<4x1xf32> to vector<4x768xf32>
    %284 = vector.broadcast %282 : vector<1x768xf32> to vector<4x768xf32>
    %285 = arith.mulf %283, %284 : vector<4x768xf32>
    %286 = arith.addf %280, %285 : vector<4x768xf32>
    %287 = vector.extract_strided_slice %264 {offsets = [0, 3], sizes = [4, 1], strides = [1, 1]} : vector<4x36xf32> to vector<4x1xf32>
    %288 = vector.extract_strided_slice %268 {offsets = [3, 0], sizes = [1, 768], strides = [1, 1]} : vector<4x768xf32> to vector<1x768xf32>
    %289 = vector.broadcast %287 : vector<4x1xf32> to vector<4x768xf32>
    %290 = vector.broadcast %288 : vector<1x768xf32> to vector<4x768xf32>
    %291 = arith.mulf %289, %290 : vector<4x768xf32>
    %292 = arith.addf %286, %291 : vector<4x768xf32>
    %c0_37 = arith.constant 0 : index
    %c1_38 = arith.constant 1 : index
    %293 = vector.load %arg9[%c0_37, %c1_38] : memref<4x896xf32, #tpu.memory_space<vmem>>, vector<4x768xf32>
    %294 = vector.extract_strided_slice %264 {offsets = [0, 4], sizes = [4, 1], strides = [1, 1]} : vector<4x36xf32> to vector<4x1xf32>
    %295 = vector.extract_strided_slice %293 {offsets = [0, 0], sizes = [1, 768], strides = [1, 1]} : vector<4x768xf32> to vector<1x768xf32>
    %296 = vector.broadcast %294 : vector<4x1xf32> to vector<4x768xf32>
    %297 = vector.broadcast %295 : vector<1x768xf32> to vector<4x768xf32>
    %298 = arith.mulf %296, %297 : vector<4x768xf32>
    %299 = arith.addf %292, %298 : vector<4x768xf32>
    %300 = vector.extract_strided_slice %264 {offsets = [0, 5], sizes = [4, 1], strides = [1, 1]} : vector<4x36xf32> to vector<4x1xf32>
    %301 = vector.extract_strided_slice %293 {offsets = [1, 0], sizes = [1, 768], strides = [1, 1]} : vector<4x768xf32> to vector<1x768xf32>
    %302 = vector.broadcast %300 : vector<4x1xf32> to vector<4x768xf32>
    %303 = vector.broadcast %301 : vector<1x768xf32> to vector<4x768xf32>
    %304 = arith.mulf %302, %303 : vector<4x768xf32>
    %305 = arith.addf %299, %304 : vector<4x768xf32>
    %306 = vector.extract_strided_slice %264 {offsets = [0, 6], sizes = [4, 1], strides = [1, 1]} : vector<4x36xf32> to vector<4x1xf32>
    %307 = vector.extract_strided_slice %293 {offsets = [2, 0], sizes = [1, 768], strides = [1, 1]} : vector<4x768xf32> to vector<1x768xf32>
    %308 = vector.broadcast %306 : vector<4x1xf32> to vector<4x768xf32>
    %309 = vector.broadcast %307 : vector<1x768xf32> to vector<4x768xf32>
    %310 = arith.mulf %308, %309 : vector<4x768xf32>
    %311 = arith.addf %305, %310 : vector<4x768xf32>
    %312 = vector.extract_strided_slice %264 {offsets = [0, 7], sizes = [4, 1], strides = [1, 1]} : vector<4x36xf32> to vector<4x1xf32>
    %313 = vector.extract_strided_slice %293 {offsets = [3, 0], sizes = [1, 768], strides = [1, 1]} : vector<4x768xf32> to vector<1x768xf32>
    %314 = vector.broadcast %312 : vector<4x1xf32> to vector<4x768xf32>
    %315 = vector.broadcast %313 : vector<1x768xf32> to vector<4x768xf32>
    %316 = arith.mulf %314, %315 : vector<4x768xf32>
    %317 = arith.addf %311, %316 : vector<4x768xf32>
    %c0_39 = arith.constant 0 : index
    %c2_40 = arith.constant 2 : index
    %318 = vector.load %arg9[%c0_39, %c2_40] : memref<4x896xf32, #tpu.memory_space<vmem>>, vector<4x768xf32>
    %319 = vector.extract_strided_slice %264 {offsets = [0, 8], sizes = [4, 1], strides = [1, 1]} : vector<4x36xf32> to vector<4x1xf32>
    %320 = vector.extract_strided_slice %318 {offsets = [0, 0], sizes = [1, 768], strides = [1, 1]} : vector<4x768xf32> to vector<1x768xf32>
    %321 = vector.broadcast %319 : vector<4x1xf32> to vector<4x768xf32>
    %322 = vector.broadcast %320 : vector<1x768xf32> to vector<4x768xf32>
    %323 = arith.mulf %321, %322 : vector<4x768xf32>
    %324 = arith.addf %317, %323 : vector<4x768xf32>
    %325 = vector.extract_strided_slice %264 {offsets = [0, 9], sizes = [4, 1], strides = [1, 1]} : vector<4x36xf32> to vector<4x1xf32>
    %326 = vector.extract_strided_slice %318 {offsets = [1, 0], sizes = [1, 768], strides = [1, 1]} : vector<4x768xf32> to vector<1x768xf32>
    %327 = vector.broadcast %325 : vector<4x1xf32> to vector<4x768xf32>
    %328 = vector.broadcast %326 : vector<1x768xf32> to vector<4x768xf32>
    %329 = arith.mulf %327, %328 : vector<4x768xf32>
    %330 = arith.addf %324, %329 : vector<4x768xf32>
    %331 = vector.extract_strided_slice %264 {offsets = [0, 10], sizes = [4, 1], strides = [1, 1]} : vector<4x36xf32> to vector<4x1xf32>
    %332 = vector.extract_strided_slice %318 {offsets = [2, 0], sizes = [1, 768], strides = [1, 1]} : vector<4x768xf32> to vector<1x768xf32>
    %333 = vector.broadcast %331 : vector<4x1xf32> to vector<4x768xf32>
    %334 = vector.broadcast %332 : vector<1x768xf32> to vector<4x768xf32>
    %335 = arith.mulf %333, %334 : vector<4x768xf32>
    %336 = arith.addf %330, %335 : vector<4x768xf32>
    %337 = vector.extract_strided_slice %264 {offsets = [0, 11], sizes = [4, 1], strides = [1, 1]} : vector<4x36xf32> to vector<4x1xf32>
    %338 = vector.extract_strided_slice %318 {offsets = [3, 0], sizes = [1, 768], strides = [1, 1]} : vector<4x768xf32> to vector<1x768xf32>
    %339 = vector.broadcast %337 : vector<4x1xf32> to vector<4x768xf32>
    %340 = vector.broadcast %338 : vector<1x768xf32> to vector<4x768xf32>
    %341 = arith.mulf %339, %340 : vector<4x768xf32>
    %342 = arith.addf %336, %341 : vector<4x768xf32>
    %c0_41 = arith.constant 0 : index
    %c18_42 = arith.constant 18 : index
    %343 = vector.load %arg9[%c0_41, %c18_42] : memref<4x896xf32, #tpu.memory_space<vmem>>, vector<4x768xf32>
    %344 = vector.extract_strided_slice %264 {offsets = [0, 12], sizes = [4, 1], strides = [1, 1]} : vector<4x36xf32> to vector<4x1xf32>
    %345 = vector.extract_strided_slice %343 {offsets = [0, 0], sizes = [1, 768], strides = [1, 1]} : vector<4x768xf32> to vector<1x768xf32>
    %346 = vector.broadcast %344 : vector<4x1xf32> to vector<4x768xf32>
    %347 = vector.broadcast %345 : vector<1x768xf32> to vector<4x768xf32>
    %348 = arith.mulf %346, %347 : vector<4x768xf32>
    %349 = arith.addf %266, %348 : vector<4x768xf32>
    %350 = vector.extract_strided_slice %264 {offsets = [0, 13], sizes = [4, 1], strides = [1, 1]} : vector<4x36xf32> to vector<4x1xf32>
    %351 = vector.extract_strided_slice %343 {offsets = [1, 0], sizes = [1, 768], strides = [1, 1]} : vector<4x768xf32> to vector<1x768xf32>
    %352 = vector.broadcast %350 : vector<4x1xf32> to vector<4x768xf32>
    %353 = vector.broadcast %351 : vector<1x768xf32> to vector<4x768xf32>
    %354 = arith.mulf %352, %353 : vector<4x768xf32>
    %355 = arith.addf %349, %354 : vector<4x768xf32>
    %356 = vector.extract_strided_slice %264 {offsets = [0, 14], sizes = [4, 1], strides = [1, 1]} : vector<4x36xf32> to vector<4x1xf32>
    %357 = vector.extract_strided_slice %343 {offsets = [2, 0], sizes = [1, 768], strides = [1, 1]} : vector<4x768xf32> to vector<1x768xf32>
    %358 = vector.broadcast %356 : vector<4x1xf32> to vector<4x768xf32>
    %359 = vector.broadcast %357 : vector<1x768xf32> to vector<4x768xf32>
    %360 = arith.mulf %358, %359 : vector<4x768xf32>
    %361 = arith.addf %355, %360 : vector<4x768xf32>
    %362 = vector.extract_strided_slice %264 {offsets = [0, 15], sizes = [4, 1], strides = [1, 1]} : vector<4x36xf32> to vector<4x1xf32>
    %363 = vector.extract_strided_slice %343 {offsets = [3, 0], sizes = [1, 768], strides = [1, 1]} : vector<4x768xf32> to vector<1x768xf32>
    %364 = vector.broadcast %362 : vector<4x1xf32> to vector<4x768xf32>
    %365 = vector.broadcast %363 : vector<1x768xf32> to vector<4x768xf32>
    %366 = arith.mulf %364, %365 : vector<4x768xf32>
    %367 = arith.addf %361, %366 : vector<4x768xf32>
    %c0_43 = arith.constant 0 : index
    %c19_44 = arith.constant 19 : index
    %368 = vector.load %arg9[%c0_43, %c19_44] : memref<4x896xf32, #tpu.memory_space<vmem>>, vector<4x768xf32>
    %369 = vector.extract_strided_slice %264 {offsets = [0, 16], sizes = [4, 1], strides = [1, 1]} : vector<4x36xf32> to vector<4x1xf32>
    %370 = vector.extract_strided_slice %368 {offsets = [0, 0], sizes = [1, 768], strides = [1, 1]} : vector<4x768xf32> to vector<1x768xf32>
    %371 = vector.broadcast %369 : vector<4x1xf32> to vector<4x768xf32>
    %372 = vector.broadcast %370 : vector<1x768xf32> to vector<4x768xf32>
    %373 = arith.mulf %371, %372 : vector<4x768xf32>
    %374 = arith.addf %367, %373 : vector<4x768xf32>
    %375 = vector.extract_strided_slice %264 {offsets = [0, 17], sizes = [4, 1], strides = [1, 1]} : vector<4x36xf32> to vector<4x1xf32>
    %376 = vector.extract_strided_slice %368 {offsets = [1, 0], sizes = [1, 768], strides = [1, 1]} : vector<4x768xf32> to vector<1x768xf32>
    %377 = vector.broadcast %375 : vector<4x1xf32> to vector<4x768xf32>
    %378 = vector.broadcast %376 : vector<1x768xf32> to vector<4x768xf32>
    %379 = arith.mulf %377, %378 : vector<4x768xf32>
    %380 = arith.addf %374, %379 : vector<4x768xf32>
    %381 = vector.extract_strided_slice %264 {offsets = [0, 18], sizes = [4, 1], strides = [1, 1]} : vector<4x36xf32> to vector<4x1xf32>
    %382 = vector.extract_strided_slice %368 {offsets = [2, 0], sizes = [1, 768], strides = [1, 1]} : vector<4x768xf32> to vector<1x768xf32>
    %383 = vector.broadcast %381 : vector<4x1xf32> to vector<4x768xf32>
    %384 = vector.broadcast %382 : vector<1x768xf32> to vector<4x768xf32>
    %385 = arith.mulf %383, %384 : vector<4x768xf32>
    %386 = arith.addf %380, %385 : vector<4x768xf32>
    %387 = vector.extract_strided_slice %264 {offsets = [0, 19], sizes = [4, 1], strides = [1, 1]} : vector<4x36xf32> to vector<4x1xf32>
    %388 = vector.extract_strided_slice %368 {offsets = [3, 0], sizes = [1, 768], strides = [1, 1]} : vector<4x768xf32> to vector<1x768xf32>
    %389 = vector.broadcast %387 : vector<4x1xf32> to vector<4x768xf32>
    %390 = vector.broadcast %388 : vector<1x768xf32> to vector<4x768xf32>
    %391 = arith.mulf %389, %390 : vector<4x768xf32>
    %392 = arith.addf %386, %391 : vector<4x768xf32>
    %c0_45 = arith.constant 0 : index
    %c20_46 = arith.constant 20 : index
    %393 = vector.load %arg9[%c0_45, %c20_46] : memref<4x896xf32, #tpu.memory_space<vmem>>, vector<4x768xf32>
    %394 = vector.extract_strided_slice %264 {offsets = [0, 20], sizes = [4, 1], strides = [1, 1]} : vector<4x36xf32> to vector<4x1xf32>
    %395 = vector.extract_strided_slice %393 {offsets = [0, 0], sizes = [1, 768], strides = [1, 1]} : vector<4x768xf32> to vector<1x768xf32>
    %396 = vector.broadcast %394 : vector<4x1xf32> to vector<4x768xf32>
    %397 = vector.broadcast %395 : vector<1x768xf32> to vector<4x768xf32>
    %398 = arith.mulf %396, %397 : vector<4x768xf32>
    %399 = arith.addf %392, %398 : vector<4x768xf32>
    %400 = vector.extract_strided_slice %264 {offsets = [0, 21], sizes = [4, 1], strides = [1, 1]} : vector<4x36xf32> to vector<4x1xf32>
    %401 = vector.extract_strided_slice %393 {offsets = [1, 0], sizes = [1, 768], strides = [1, 1]} : vector<4x768xf32> to vector<1x768xf32>
    %402 = vector.broadcast %400 : vector<4x1xf32> to vector<4x768xf32>
    %403 = vector.broadcast %401 : vector<1x768xf32> to vector<4x768xf32>
    %404 = arith.mulf %402, %403 : vector<4x768xf32>
    %405 = arith.addf %399, %404 : vector<4x768xf32>
    %406 = vector.extract_strided_slice %264 {offsets = [0, 22], sizes = [4, 1], strides = [1, 1]} : vector<4x36xf32> to vector<4x1xf32>
    %407 = vector.extract_strided_slice %393 {offsets = [2, 0], sizes = [1, 768], strides = [1, 1]} : vector<4x768xf32> to vector<1x768xf32>
    %408 = vector.broadcast %406 : vector<4x1xf32> to vector<4x768xf32>
    %409 = vector.broadcast %407 : vector<1x768xf32> to vector<4x768xf32>
    %410 = arith.mulf %408, %409 : vector<4x768xf32>
    %411 = arith.addf %405, %410 : vector<4x768xf32>
    %412 = vector.extract_strided_slice %264 {offsets = [0, 23], sizes = [4, 1], strides = [1, 1]} : vector<4x36xf32> to vector<4x1xf32>
    %413 = vector.extract_strided_slice %393 {offsets = [3, 0], sizes = [1, 768], strides = [1, 1]} : vector<4x768xf32> to vector<1x768xf32>
    %414 = vector.broadcast %412 : vector<4x1xf32> to vector<4x768xf32>
    %415 = vector.broadcast %413 : vector<1x768xf32> to vector<4x768xf32>
    %416 = arith.mulf %414, %415 : vector<4x768xf32>
    %417 = arith.addf %411, %416 : vector<4x768xf32>
    %c0_47 = arith.constant 0 : index
    %c36_48 = arith.constant 36 : index
    %418 = vector.load %arg9[%c0_47, %c36_48] : memref<4x896xf32, #tpu.memory_space<vmem>>, vector<4x768xf32>
    %419 = vector.extract_strided_slice %264 {offsets = [0, 24], sizes = [4, 1], strides = [1, 1]} : vector<4x36xf32> to vector<4x1xf32>
    %420 = vector.extract_strided_slice %418 {offsets = [0, 0], sizes = [1, 768], strides = [1, 1]} : vector<4x768xf32> to vector<1x768xf32>
    %421 = vector.broadcast %419 : vector<4x1xf32> to vector<4x768xf32>
    %422 = vector.broadcast %420 : vector<1x768xf32> to vector<4x768xf32>
    %423 = arith.mulf %421, %422 : vector<4x768xf32>
    %424 = arith.addf %267, %423 : vector<4x768xf32>
    %425 = vector.extract_strided_slice %264 {offsets = [0, 25], sizes = [4, 1], strides = [1, 1]} : vector<4x36xf32> to vector<4x1xf32>
    %426 = vector.extract_strided_slice %418 {offsets = [1, 0], sizes = [1, 768], strides = [1, 1]} : vector<4x768xf32> to vector<1x768xf32>
    %427 = vector.broadcast %425 : vector<4x1xf32> to vector<4x768xf32>
    %428 = vector.broadcast %426 : vector<1x768xf32> to vector<4x768xf32>
    %429 = arith.mulf %427, %428 : vector<4x768xf32>
    %430 = arith.addf %424, %429 : vector<4x768xf32>
    %431 = vector.extract_strided_slice %264 {offsets = [0, 26], sizes = [4, 1], strides = [1, 1]} : vector<4x36xf32> to vector<4x1xf32>
    %432 = vector.extract_strided_slice %418 {offsets = [2, 0], sizes = [1, 768], strides = [1, 1]} : vector<4x768xf32> to vector<1x768xf32>
    %433 = vector.broadcast %431 : vector<4x1xf32> to vector<4x768xf32>
    %434 = vector.broadcast %432 : vector<1x768xf32> to vector<4x768xf32>
    %435 = arith.mulf %433, %434 : vector<4x768xf32>
    %436 = arith.addf %430, %435 : vector<4x768xf32>
    %437 = vector.extract_strided_slice %264 {offsets = [0, 27], sizes = [4, 1], strides = [1, 1]} : vector<4x36xf32> to vector<4x1xf32>
    %438 = vector.extract_strided_slice %418 {offsets = [3, 0], sizes = [1, 768], strides = [1, 1]} : vector<4x768xf32> to vector<1x768xf32>
    %439 = vector.broadcast %437 : vector<4x1xf32> to vector<4x768xf32>
    %440 = vector.broadcast %438 : vector<1x768xf32> to vector<4x768xf32>
    %441 = arith.mulf %439, %440 : vector<4x768xf32>
    %442 = arith.addf %436, %441 : vector<4x768xf32>
    %c0_49 = arith.constant 0 : index
    %c37_50 = arith.constant 37 : index
    %443 = vector.load %arg9[%c0_49, %c37_50] : memref<4x896xf32, #tpu.memory_space<vmem>>, vector<4x768xf32>
    %444 = vector.extract_strided_slice %264 {offsets = [0, 28], sizes = [4, 1], strides = [1, 1]} : vector<4x36xf32> to vector<4x1xf32>
    %445 = vector.extract_strided_slice %443 {offsets = [0, 0], sizes = [1, 768], strides = [1, 1]} : vector<4x768xf32> to vector<1x768xf32>
    %446 = vector.broadcast %444 : vector<4x1xf32> to vector<4x768xf32>
    %447 = vector.broadcast %445 : vector<1x768xf32> to vector<4x768xf32>
    %448 = arith.mulf %446, %447 : vector<4x768xf32>
    %449 = arith.addf %442, %448 : vector<4x768xf32>
    %450 = vector.extract_strided_slice %264 {offsets = [0, 29], sizes = [4, 1], strides = [1, 1]} : vector<4x36xf32> to vector<4x1xf32>
    %451 = vector.extract_strided_slice %443 {offsets = [1, 0], sizes = [1, 768], strides = [1, 1]} : vector<4x768xf32> to vector<1x768xf32>
    %452 = vector.broadcast %450 : vector<4x1xf32> to vector<4x768xf32>
    %453 = vector.broadcast %451 : vector<1x768xf32> to vector<4x768xf32>
    %454 = arith.mulf %452, %453 : vector<4x768xf32>
    %455 = arith.addf %449, %454 : vector<4x768xf32>
    %456 = vector.extract_strided_slice %264 {offsets = [0, 30], sizes = [4, 1], strides = [1, 1]} : vector<4x36xf32> to vector<4x1xf32>
    %457 = vector.extract_strided_slice %443 {offsets = [2, 0], sizes = [1, 768], strides = [1, 1]} : vector<4x768xf32> to vector<1x768xf32>
    %458 = vector.broadcast %456 : vector<4x1xf32> to vector<4x768xf32>
    %459 = vector.broadcast %457 : vector<1x768xf32> to vector<4x768xf32>
    %460 = arith.mulf %458, %459 : vector<4x768xf32>
    %461 = arith.addf %455, %460 : vector<4x768xf32>
    %462 = vector.extract_strided_slice %264 {offsets = [0, 31], sizes = [4, 1], strides = [1, 1]} : vector<4x36xf32> to vector<4x1xf32>
    %463 = vector.extract_strided_slice %443 {offsets = [3, 0], sizes = [1, 768], strides = [1, 1]} : vector<4x768xf32> to vector<1x768xf32>
    %464 = vector.broadcast %462 : vector<4x1xf32> to vector<4x768xf32>
    %465 = vector.broadcast %463 : vector<1x768xf32> to vector<4x768xf32>
    %466 = arith.mulf %464, %465 : vector<4x768xf32>
    %467 = arith.addf %461, %466 : vector<4x768xf32>
    %c0_51 = arith.constant 0 : index
    %c38_52 = arith.constant 38 : index
    %468 = vector.load %arg9[%c0_51, %c38_52] : memref<4x896xf32, #tpu.memory_space<vmem>>, vector<4x768xf32>
    %469 = vector.extract_strided_slice %264 {offsets = [0, 32], sizes = [4, 1], strides = [1, 1]} : vector<4x36xf32> to vector<4x1xf32>
    %470 = vector.extract_strided_slice %468 {offsets = [0, 0], sizes = [1, 768], strides = [1, 1]} : vector<4x768xf32> to vector<1x768xf32>
    %471 = vector.broadcast %469 : vector<4x1xf32> to vector<4x768xf32>
    %472 = vector.broadcast %470 : vector<1x768xf32> to vector<4x768xf32>
    %473 = arith.mulf %471, %472 : vector<4x768xf32>
    %474 = arith.addf %467, %473 : vector<4x768xf32>
    %475 = vector.extract_strided_slice %264 {offsets = [0, 33], sizes = [4, 1], strides = [1, 1]} : vector<4x36xf32> to vector<4x1xf32>
    %476 = vector.extract_strided_slice %468 {offsets = [1, 0], sizes = [1, 768], strides = [1, 1]} : vector<4x768xf32> to vector<1x768xf32>
    %477 = vector.broadcast %475 : vector<4x1xf32> to vector<4x768xf32>
    %478 = vector.broadcast %476 : vector<1x768xf32> to vector<4x768xf32>
    %479 = arith.mulf %477, %478 : vector<4x768xf32>
    %480 = arith.addf %474, %479 : vector<4x768xf32>
    %481 = vector.extract_strided_slice %264 {offsets = [0, 34], sizes = [4, 1], strides = [1, 1]} : vector<4x36xf32> to vector<4x1xf32>
    %482 = vector.extract_strided_slice %468 {offsets = [2, 0], sizes = [1, 768], strides = [1, 1]} : vector<4x768xf32> to vector<1x768xf32>
    %483 = vector.broadcast %481 : vector<4x1xf32> to vector<4x768xf32>
    %484 = vector.broadcast %482 : vector<1x768xf32> to vector<4x768xf32>
    %485 = arith.mulf %483, %484 : vector<4x768xf32>
    %486 = arith.addf %480, %485 : vector<4x768xf32>
    %487 = vector.extract_strided_slice %264 {offsets = [0, 35], sizes = [4, 1], strides = [1, 1]} : vector<4x36xf32> to vector<4x1xf32>
    %488 = vector.extract_strided_slice %468 {offsets = [3, 0], sizes = [1, 768], strides = [1, 1]} : vector<4x768xf32> to vector<1x768xf32>
    %489 = vector.broadcast %487 : vector<4x1xf32> to vector<4x768xf32>
    %490 = vector.broadcast %488 : vector<1x768xf32> to vector<4x768xf32>
    %491 = arith.mulf %489, %490 : vector<4x768xf32>
    %492 = arith.addf %486, %491 : vector<4x768xf32>
    %493 = arith.addf %342, %417 : vector<4x768xf32>
    %494 = arith.addf %493, %492 : vector<4x768xf32>
    %c0_53 = arith.constant 0 : index
    %c0_54 = arith.constant 0 : index
    %495 = vector.load %arg5[%c0_53, %c0_54] : memref<4x1xf32, #tpu.memory_space<vmem>>, vector<4x1xf32>
    %c0_55 = arith.constant 0 : index
    %c0_56 = arith.constant 0 : index
    %496 = vector.load %arg6[%c0_55, %c0_56] : memref<4x1xf32, #tpu.memory_space<vmem>>, vector<4x1xf32>
    %497 = vector.broadcast %0 : vector<1x768xf32> to vector<4x768xf32>
    %498 = arith.mulf %494, %497 : vector<4x768xf32>
    %cst_57 = arith.constant dense<0.000000e+00> : vector<4xf32>
    %499 = vector.multi_reduction <add>, %498, %cst_57 [1] : vector<4x768xf32> to vector<4xf32>
    %500 = vector.shape_cast %499 : vector<4xf32> to vector<4x1xf32>
    %cst_58 = arith.constant 0.001953125 : f32
    %501 = vector.broadcast %cst_58 : f32 to vector<4x1xf32>
    %502 = arith.mulf %500, %501 : vector<4x1xf32>
    %503 = vector.broadcast %502 : vector<4x1xf32> to vector<4x768xf32>
    %504 = arith.subf %494, %503 : vector<4x768xf32>
    %505 = arith.mulf %504, %504 : vector<4x768xf32>
    %506 = vector.broadcast %0 : vector<1x768xf32> to vector<4x768xf32>
    %507 = arith.mulf %505, %506 : vector<4x768xf32>
    %cst_59 = arith.constant dense<0.000000e+00> : vector<4xf32>
    %508 = vector.multi_reduction <add>, %507, %cst_59 [1] : vector<4x768xf32> to vector<4xf32>
    %509 = vector.shape_cast %508 : vector<4xf32> to vector<4x1xf32>
    %cst_60 = arith.constant 0.001953125 : f32
    %510 = vector.broadcast %cst_60 : f32 to vector<4x1xf32>
    %511 = arith.mulf %509, %510 : vector<4x1xf32>
    %cst_61 = arith.constant 9.99999974E-6 : f32
    %512 = vector.broadcast %cst_61 : f32 to vector<4x1xf32>
    %513 = arith.addf %511, %512 : vector<4x1xf32>
    %514 = math.rsqrt %513 : vector<4x1xf32>
    %515 = arith.mulf %495, %514 : vector<4x1xf32>
    %516 = vector.broadcast %515 : vector<4x1xf32> to vector<4x768xf32>
    %517 = arith.mulf %504, %516 : vector<4x768xf32>
    %518 = vector.broadcast %496 : vector<4x1xf32> to vector<4x768xf32>
    %519 = arith.addf %517, %518 : vector<4x768xf32>
    %c0_62 = arith.constant 0 : index
    %c19_63 = arith.constant 19 : index
    %520 = vector.load %arg0[%c0_62, %c19_63] : memref<4x896xf32, #tpu.memory_space<vmem>>, vector<4x768xf32>
    %521 = arith.addf %519, %520 : vector<4x768xf32>
    %cst_64 = arith.constant 0.000000e+00 : f32
    %522 = vector.broadcast %cst_64 : f32 to vector<4x768xf32>
    %523 = arith.maximumf %521, %522 : vector<4x768xf32>
    %c0_65 = arith.constant 0 : index
    %c0_66 = arith.constant 0 : index
    %524 = vector.load %arg8[%c0_65, %c0_66] : memref<4x768xf32, #tpu.memory_space<vmem>>, vector<4x768xf32>
    tpu.vector_store %arg8[%c0_65, %c0_66], %523 {strides = array<i32>} : memref<4x768xf32, #tpu.memory_space<vmem>>, vector<4x768xf32>,
    return
  }
}

</mosaic_0001>

<llo_original>
// kernel: tpu_custom_call.1
$region0: #{tpu_custom_call.1}
  #allocation0 [shape = 'u32[]', space=smem, size = 0x4, offset = 0x4, fixed_abs, tag = 'smem constant byte address 0x4 - core index']
  #allocation1 [shape = 'u32[72,128]{1,0:T(1,128)}', space=vmem, size = 0x9000, scoped, tag = 'internal scratch']
  #allocation2 [shape = 'f32[4,896]{1,0:T(4,128)}', space=vmem, size = 0x3800, scoped, tag = 'scratch operand']
  %s0 = inlined_call_operand.hbm [shape: f32[4,896], index: 0, kind: input, shape index: {}]
  %s1 = inlined_call_operand.vmem [shape: f32[4,36], index: 1, kind: input, shape index: {}]
  %s2 = inlined_call_operand.vmem [shape: f32[4,36], index: 2, kind: input, shape index: {}]
  %s3 = inlined_call_operand.vmem [shape: f32[4,1], index: 3, kind: input, shape index: {}]
  %s4 = inlined_call_operand.vmem [shape: f32[4,1], index: 4, kind: input, shape index: {}]
  %s5 = inlined_call_operand.vmem [shape: f32[4,1], index: 5, kind: input, shape index: {}]
  %s6 = inlined_call_operand.vmem [shape: f32[4,1], index: 6, kind: input, shape index: {}]
  %s7 = inlined_call_operand.vmem [shape: f32[1,768], index: 7, kind: input, shape index: {}]
  %s8 = inlined_call_operand.hbm [shape: f32[4,768], index: 8, kind: output, shape index: {}]
  %s9 = sld [smem:[#allocation0]]
  $region46: #{tpu_custom_call.1} parent=0
    _
  %s11 = ssub.s32 1, %s9
  %s12 = scalar_select 0, %s11, %s9
  $region1: #{tpu_custom_call.1} parent=0
    #allocation3 [shape = 'u8[14336]{0}', space=vmem, size = 0x3800, scoped, tag = 'input window, operand 0, single buffered']
    #allocation4 [shape = 's32[1]{0}', space=sflag, size = 0x4, scoped, tag = 'scoped memory for tpu_custom_call.1']
    #allocation5 [shape = 's32[1]{0}', space=sflag, size = 0x4, scoped, tag = 'scoped memory for tpu_custom_call.1']
    #allocation6 [shape = 'u8[12288]{0}', space=vmem, size = 0x3000, scoped, tag = 'output window, operand 0, single buffered']
    %13 = vsyncpa [#allocation4], 0
    %14 = vsyncpa [#allocation5], 0
    // Predicated region
    $region2: #{tpu_custom_call.1} parent=1 // pred_check
      _
    $region3: #{tpu_custom_call.1} parent=1 // pred_check_branch
      %16 = sbr.rel (0) target = $region5
    $region4: #{tpu_custom_call.1} parent=1 // pred_region
      %18 = vsyncadd [#allocation4], 0
      %s20 = sshll.u32 %s0, 4
      %s21 = int_to_ptr.hbm [resolvable:$true] %s20
      %s22 = sshll.u32 [#allocation3], 4
      %s23 = int_to_ptr.vmem [resolvable:$true] %s22
      %25 = dma.hbm_to_vmem [thread:$0]  %s21, 448, %s23, [#allocation4]
    $region5: #{tpu_custom_call.1} parent=1 // pred_fallthru
      _
    // Predicated region
    $region6: #{tpu_custom_call.1} parent=1 // pred_check
      _
    $region7: #{tpu_custom_call.1} parent=1 // pred_check_branch
      %27 = sbr.rel (0) target = $region9
    $region8: #{tpu_custom_call.1} parent=1 // pred_region
      _
    $region9: #{tpu_custom_call.1} parent=1 // pred_fallthru
      _
    // Predicated region
    $region10: #{tpu_custom_call.1} parent=1 // pred_check
      _
    $region11: #{tpu_custom_call.1} parent=1 // pred_check_branch
      %29 = sbr.rel (0) target = $region13
    $region12: #{tpu_custom_call.1} parent=1 // pred_region
      _
    $region13: #{tpu_custom_call.1} parent=1 // pred_fallthru
      _
    // Predicated region
    $region14: #{tpu_custom_call.1} parent=1 // pred_check
      _
    $region15: #{tpu_custom_call.1} parent=1 // pred_check_branch
      %31 = sbr.rel (0) target = $region17
    $region16: #{tpu_custom_call.1} parent=1 // pred_region
      _
    $region17: #{tpu_custom_call.1} parent=1 // pred_fallthru
      _
    // Predicated region
    $region18: #{tpu_custom_call.1} parent=1 // pred_check
      _
    $region19: #{tpu_custom_call.1} parent=1 // pred_check_branch
      %33 = sbr.rel (0) target = $region21
    $region20: #{tpu_custom_call.1} parent=1 // pred_region
      _
    $region21: #{tpu_custom_call.1} parent=1 // pred_fallthru
      _
    // Predicated region
    $region22: #{tpu_custom_call.1} parent=1 // pred_check
      _
    $region23: #{tpu_custom_call.1} parent=1 // pred_check_branch
      %35 = sbr.rel (0) target = $region25
    $region24: #{tpu_custom_call.1} parent=1 // pred_region
      _
    $region25: #{tpu_custom_call.1} parent=1 // pred_fallthru
      _
    // Predicated region
    $region26: #{tpu_custom_call.1} parent=1 // pred_check
      _
    $region27: #{tpu_custom_call.1} parent=1 // pred_check_branch
      %37 = sbr.rel (0) target = $region29
    $region28: #{tpu_custom_call.1} parent=1 // pred_region
      _
    $region29: #{tpu_custom_call.1} parent=1 // pred_fallthru
      _
    // Predicated region
    $region30: #{tpu_custom_call.1} parent=1 // pred_check
      _
    $region31: #{tpu_custom_call.1} parent=1 // pred_check_branch
      %39 = sbr.rel (0) target = $region33
    $region32: #{tpu_custom_call.1} parent=1 // pred_region
      _
    $region33: #{tpu_custom_call.1} parent=1 // pred_fallthru
      _
    // Predicated region
    $region34: #{tpu_custom_call.1} parent=1 // pred_check
      _
    $region35: #{tpu_custom_call.1} parent=1 // pred_check_branch
      %41 = sbr.rel (0) target = $region37
    $region36: #{tpu_custom_call.1} parent=1 // pred_region
      %43 = dma.done [#allocation4], 448
    $region37: #{tpu_custom_call.1} parent=1 // pred_fallthru
      _
    %v44 = vld [vmem:[%s7] sm:$0x3f]
    %v45 = vld [vmem:[%s1] sm:$0xf]
    %v46 = vld [vmem:[#allocation3] sm:$0xff]
    %v47 = vld [vmem:[#allocation3 + $0x8] sm:$0xff]
    %v48 = vld [vmem:[#allocation3 + $0x10] sm:$0xff]
    %50 = vset.pattern.permute.xlu0 0
    %51 = vperm.xlu0 %50, %v45
    %v52 = vpop.permute.xlu0 %51
    %v57 = vperm.slane %v46, 0
    %v58 = vperm.slane %v46, 4
    %v59 = vperm.slane %v47, 0
    %v60 = vperm.slane %v47, 4
    %v61 = vperm.slane %v48, 0
    %v62 = vperm.slane %v48, 4
    %v69 = vperm.slane %v57, 0
    %v70 = vperm.slane %v58, 0
    %v71 = vperm.slane %v59, 0
    %v72 = vperm.slane %v60, 0
    %v73 = vperm.slane %v61, 0
    %v74 = vperm.slane %v62, 0
    %v75 = vmul.f32 %v52, %v69
    %v76 = vmul.f32 %v52, %v70
    %v77 = vmul.f32 %v52, %v71
    %v78 = vmul.f32 %v52, %v72
    %v79 = vmul.f32 %v52, %v73
    %v80 = vmul.f32 %v52, %v74
    %v81 = vadd.f32 %v75, 0.0
    %v82 = vadd.f32 %v76, 0.0
    %v83 = vadd.f32 %v77, 0.0
    %v84 = vadd.f32 %v78, 0.0
    %v85 = vadd.f32 %v79, 0.0
    %v86 = vadd.f32 %v80, 0.0
    %87 = vset.pattern.permute.xlu0 1
    %88 = vperm.xlu0 %87, %v45
    %v89 = vpop.permute.xlu0 %88
    %v91 = vperm.slane %v46, 1
    %v92 = vperm.slane %v46, 5
    %v93 = vperm.slane %v47, 1
    %v94 = vperm.slane %v47, 5
    %v95 = vperm.slane %v48, 1
    %v96 = vperm.slane %v48, 5
    %v103 = vperm.slane %v91, 1
    %v104 = vperm.slane %v92, 1
    %v105 = vperm.slane %v93, 1
    %v106 = vperm.slane %v94, 1
    %v107 = vperm.slane %v95, 1
    %v108 = vperm.slane %v96, 1
    %v109 = vmul.f32 %v89, %v103
    %v110 = vmul.f32 %v89, %v104
    %v111 = vmul.f32 %v89, %v105
    %v112 = vmul.f32 %v89, %v106
    %v113 = vmul.f32 %v89, %v107
    %v114 = vmul.f32 %v89, %v108
    %v115 = vadd.f32 %v81, %v109
    %v116 = vadd.f32 %v82, %v110
    %v117 = vadd.f32 %v83, %v111
    %v118 = vadd.f32 %v84, %v112
    %v119 = vadd.f32 %v85, %v113
    %v120 = vadd.f32 %v86, %v114
    %121 = vset.pattern.permute.xlu0 2
    %122 = vperm.xlu0 %121, %v45
    %v123 = vpop.permute.xlu0 %122
    %v125 = vperm.slane %v46, 2
    %v126 = vperm.slane %v46, 6
    %v127 = vperm.slane %v47, 2
    %v128 = vperm.slane %v47, 6
    %v129 = vperm.slane %v48, 2
    %v130 = vperm.slane %v48, 6
    %v137 = vperm.slane %v125, 2
    %v138 = vperm.slane %v126, 2
    %v139 = vperm.slane %v127, 2
    %v140 = vperm.slane %v128, 2
    %v141 = vperm.slane %v129, 2
    %v142 = vperm.slane %v130, 2
    %v143 = vmul.f32 %v123, %v137
    %v144 = vmul.f32 %v123, %v138
    %v145 = vmul.f32 %v123, %v139
    %v146 = vmul.f32 %v123, %v140
    %v147 = vmul.f32 %v123, %v141
    %v148 = vmul.f32 %v123, %v142
    %v149 = vadd.f32 %v115, %v143
    %v150 = vadd.f32 %v116, %v144
    %v151 = vadd.f32 %v117, %v145
    %v152 = vadd.f32 %v118, %v146
    %v153 = vadd.f32 %v119, %v147
    %v154 = vadd.f32 %v120, %v148
    %155 = vset.pattern.permute.xlu0 3
    %156 = vperm.xlu0 %155, %v45
    %v157 = vpop.permute.xlu0 %156
    %v159 = vperm.slane %v46, 3
    %v160 = vperm.slane %v46, 7
    %v161 = vperm.slane %v47, 3
    %v162 = vperm.slane %v47, 7
    %v163 = vperm.slane %v48, 3
    %v164 = vperm.slane %v48, 7
    %v171 = vperm.slane %v159, 3
    %v172 = vperm.slane %v160, 3
    %v173 = vperm.slane %v161, 3
    %v174 = vperm.slane %v162, 3
    %v175 = vperm.slane %v163, 3
    %v176 = vperm.slane %v164, 3
    %v177 = vmul.f32 %v157, %v171
    %v178 = vmul.f32 %v157, %v172
    %v179 = vmul.f32 %v157, %v173
    %v180 = vmul.f32 %v157, %v174
    %v181 = vmul.f32 %v157, %v175
    %v182 = vmul.f32 %v157, %v176
    %v183 = vadd.f32 %v149, %v177
    %v184 = vadd.f32 %v150, %v178
    %v185 = vadd.f32 %v151, %v179
    %v186 = vadd.f32 %v152, %v180
    %v187 = vadd.f32 %v153, %v181
    %v188 = vadd.f32 %v154, %v182
    %v189 = vld [vmem:[#allocation3] sm:$0xff]
    %v190 = vld [vmem:[#allocation3 + $0x8] sm:$0xff]
    %v191 = vld [vmem:[#allocation3 + $0x10] sm:$0xff]
    %v192 = vld [vmem:[#allocation3 + $0x18] sm:$0xf]
    %193 = vset.pattern.permute.xlu0 4
    %194 = vperm.xlu0 %193, %v45
    %v195 = vpop.permute.xlu0 %194
    %v201 = vperm.slane %v189, 0
    %v202 = vperm.slane %v189, 4
    %v203 = vperm.slane %v190, 0
    %v204 = vperm.slane %v190, 4
    %v205 = vperm.slane %v191, 0
    %v206 = vperm.slane %v191, 4
    %v207 = vperm.slane %v192, 0
    %v215 = vperm.slane %v201, 0
    %v216 = vperm.slane %v202, 0
    %v217 = vperm.slane %v203, 0
    %v218 = vperm.slane %v204, 0
    %v219 = vperm.slane %v205, 0
    %v220 = vperm.slane %v206, 0
    %v221 = vperm.slane %v207, 0
    %v222 = vmul.f32 %v195, %v215
    %v223 = vmul.f32 %v195, %v216
    %v224 = vmul.f32 %v195, %v217
    %v225 = vmul.f32 %v195, %v218
    %v226 = vmul.f32 %v195, %v219
    %v227 = vmul.f32 %v195, %v220
    %v228 = vmul.f32 %v195, %v221
    %236 = vrot.lane.b32.xlu0 %v222, 127
    %v237 = vpop.permute.xlu0 %236
    %238 = vrot.lane.b32.xlu0 %v223, 127
    %v239 = vpop.permute.xlu0 %238
    %240 = vrot.lane.b32.xlu0 %v224, 127
    %v241 = vpop.permute.xlu0 %240
    %242 = vrot.lane.b32.xlu0 %v225, 127
    %v243 = vpop.permute.xlu0 %242
    %244 = vrot.lane.b32.xlu0 %v226, 127
    %v245 = vpop.permute.xlu0 %244
    %246 = vrot.lane.b32.xlu0 %v227, 127
    %v247 = vpop.permute.xlu0 %246
    %248 = vrot.lane.b32.xlu0 %v228, 127
    %v249 = vpop.permute.xlu0 %248
    %vm250 = vcmask 1039360
    %v251 = vsel %vm250, %v237, %v239
    %v252 = vsel %vm250, %v239, %v241
    %v253 = vsel %vm250, %v241, %v243
    %v254 = vsel %vm250, %v243, %v245
    %v255 = vsel %vm250, %v245, %v247
    %v256 = vsel %vm250, %v247, %v249
    %v263 = vadd.f32 %v183, %v251
    %v264 = vadd.f32 %v184, %v252
    %v265 = vadd.f32 %v185, %v253
    %v266 = vadd.f32 %v186, %v254
    %v267 = vadd.f32 %v187, %v255
    %v268 = vadd.f32 %v188, %v256
    %269 = vset.pattern.permute.xlu0 5
    %270 = vperm.xlu0 %269, %v45
    %v271 = vpop.permute.xlu0 %270
    %v273 = vperm.slane %v189, 1
    %v274 = vperm.slane %v189, 5
    %v275 = vperm.slane %v190, 1
    %v276 = vperm.slane %v190, 5
    %v277 = vperm.slane %v191, 1
    %v278 = vperm.slane %v191, 5
    %v279 = vperm.slane %v192, 1
    %v287 = vperm.slane %v273, 1
    %v288 = vperm.slane %v274, 1
    %v289 = vperm.slane %v275, 1
    %v290 = vperm.slane %v276, 1
    %v291 = vperm.slane %v277, 1
    %v292 = vperm.slane %v278, 1
    %v293 = vperm.slane %v279, 1
    %v294 = vmul.f32 %v271, %v287
    %v295 = vmul.f32 %v271, %v288
    %v296 = vmul.f32 %v271, %v289
    %v297 = vmul.f32 %v271, %v290
    %v298 = vmul.f32 %v271, %v291
    %v299 = vmul.f32 %v271, %v292
    %v300 = vmul.f32 %v271, %v293
    %308 = vrot.lane.b32.xlu0 %v294, 127
    %v309 = vpop.permute.xlu0 %308
    %310 = vrot.lane.b32.xlu0 %v295, 127
    %v311 = vpop.permute.xlu0 %310
    %312 = vrot.lane.b32.xlu0 %v296, 127
    %v313 = vpop.permute.xlu0 %312
    %314 = vrot.lane.b32.xlu0 %v297, 127
    %v315 = vpop.permute.xlu0 %314
    %316 = vrot.lane.b32.xlu0 %v298, 127
    %v317 = vpop.permute.xlu0 %316
    %318 = vrot.lane.b32.xlu0 %v299, 127
    %v319 = vpop.permute.xlu0 %318
    %320 = vrot.lane.b32.xlu0 %v300, 127
    %v321 = vpop.permute.xlu0 %320
    %v322 = vsel %vm250, %v309, %v311
    %v323 = vsel %vm250, %v311, %v313
    %v324 = vsel %vm250, %v313, %v315
    %v325 = vsel %vm250, %v315, %v317
    %v326 = vsel %vm250, %v317, %v319
    %v327 = vsel %vm250, %v319, %v321
    %v334 = vadd.f32 %v263, %v322
    %v335 = vadd.f32 %v264, %v323
    %v336 = vadd.f32 %v265, %v324
    %v337 = vadd.f32 %v266, %v325
    %v338 = vadd.f32 %v267, %v326
    %v339 = vadd.f32 %v268, %v327
    %340 = vset.pattern.permute.xlu0 6
    %341 = vperm.xlu0 %340, %v45
    %v342 = vpop.permute.xlu0 %341
    %v344 = vperm.slane %v189, 2
    %v345 = vperm.slane %v189, 6
    %v346 = vperm.slane %v190, 2
    %v347 = vperm.slane %v190, 6
    %v348 = vperm.slane %v191, 2
    %v349 = vperm.slane %v191, 6
    %v350 = vperm.slane %v192, 2
    %v358 = vperm.slane %v344, 2
    %v359 = vperm.slane %v345, 2
    %v360 = vperm.slane %v346, 2
    %v361 = vperm.slane %v347, 2
    %v362 = vperm.slane %v348, 2
    %v363 = vperm.slane %v349, 2
    %v364 = vperm.slane %v350, 2
    %v365 = vmul.f32 %v342, %v358
    %v366 = vmul.f32 %v342, %v359
    %v367 = vmul.f32 %v342, %v360
    %v368 = vmul.f32 %v342, %v361
    %v369 = vmul.f32 %v342, %v362
    %v370 = vmul.f32 %v342, %v363
    %v371 = vmul.f32 %v342, %v364
    %379 = vrot.lane.b32.xlu0 %v365, 127
    %v380 = vpop.permute.xlu0 %379
    %381 = vrot.lane.b32.xlu0 %v366, 127
    %v382 = vpop.permute.xlu0 %381
    %383 = vrot.lane.b32.xlu0 %v367, 127
    %v384 = vpop.permute.xlu0 %383
    %385 = vrot.lane.b32.xlu0 %v368, 127
    %v386 = vpop.permute.xlu0 %385
    %387 = vrot.lane.b32.xlu0 %v369, 127
    %v388 = vpop.permute.xlu0 %387
    %389 = vrot.lane.b32.xlu0 %v370, 127
    %v390 = vpop.permute.xlu0 %389
    %391 = vrot.lane.b32.xlu0 %v371, 127
    %v392 = vpop.permute.xlu0 %391
    %v393 = vsel %vm250, %v380, %v382
    %v394 = vsel %vm250, %v382, %v384
    %v395 = vsel %vm250, %v384, %v386
    %v396 = vsel %vm250, %v386, %v388
    %v397 = vsel %vm250, %v388, %v390
    %v398 = vsel %vm250, %v390, %v392
    %v405 = vadd.f32 %v334, %v393
    %v406 = vadd.f32 %v335, %v394
    %v407 = vadd.f32 %v336, %v395
    %v408 = vadd.f32 %v337, %v396
    %v409 = vadd.f32 %v338, %v397
    %v410 = vadd.f32 %v339, %v398
    %411 = vset.pattern.permute.xlu0 7
    %412 = vperm.xlu0 %411, %v45
    %v413 = vpop.permute.xlu0 %412
    %v415 = vperm.slane %v189, 3
    %v416 = vperm.slane %v189, 7
    %v417 = vperm.slane %v190, 3
    %v418 = vperm.slane %v190, 7
    %v419 = vperm.slane %v191, 3
    %v420 = vperm.slane %v191, 7
    %v421 = vperm.slane %v192, 3
    %v429 = vperm.slane %v415, 3
    %v430 = vperm.slane %v416, 3
    %v431 = vperm.slane %v417, 3
    %v432 = vperm.slane %v418, 3
    %v433 = vperm.slane %v419, 3
    %v434 = vperm.slane %v420, 3
    %v435 = vperm.slane %v421, 3
    %v436 = vmul.f32 %v413, %v429
    %v437 = vmul.f32 %v413, %v430
    %v438 = vmul.f32 %v413, %v431
    %v439 = vmul.f32 %v413, %v432
    %v440 = vmul.f32 %v413, %v433
    %v441 = vmul.f32 %v413, %v434
    %v442 = vmul.f32 %v413, %v435
    %450 = vrot.lane.b32.xlu0 %v436, 127
    %v451 = vpop.permute.xlu0 %450
    %452 = vrot.lane.b32.xlu0 %v437, 127
    %v453 = vpop.permute.xlu0 %452
    %454 = vrot.lane.b32.xlu0 %v438, 127
    %v455 = vpop.permute.xlu0 %454
    %456 = vrot.lane.b32.xlu0 %v439, 127
    %v457 = vpop.permute.xlu0 %456
    %458 = vrot.lane.b32.xlu0 %v440, 127
    %v459 = vpop.permute.xlu0 %458
    %460 = vrot.lane.b32.xlu0 %v441, 127
    %v461 = vpop.permute.xlu0 %460
    %462 = vrot.lane.b32.xlu0 %v442, 127
    %v463 = vpop.permute.xlu0 %462
    %v464 = vsel %vm250, %v451, %v453
    %v465 = vsel %vm250, %v453, %v455
    %v466 = vsel %vm250, %v455, %v457
    %v467 = vsel %vm250, %v457, %v459
    %v468 = vsel %vm250, %v459, %v461
    %v469 = vsel %vm250, %v461, %v463
    %v476 = vadd.f32 %v405, %v464
    %v477 = vadd.f32 %v406, %v465
    %v478 = vadd.f32 %v407, %v466
    %v479 = vadd.f32 %v408, %v467
    %v480 = vadd.f32 %v409, %v468
    %v481 = vadd.f32 %v410, %v469
    %482 = vset.pattern.permute.xlu0 8
    %483 = vperm.xlu0 %482, %v45
    %v484 = vpop.permute.xlu0 %483
    %v486 = vmul.f32 %v484, %v215
    %v487 = vmul.f32 %v484, %v216
    %v488 = vmul.f32 %v484, %v217
    %v489 = vmul.f32 %v484, %v218
    %v490 = vmul.f32 %v484, %v219
    %v491 = vmul.f32 %v484, %v220
    %v492 = vmul.f32 %v484, %v221
    %500 = vrot.lane.b32.xlu0 %v486, 126
    %v501 = vpop.permute.xlu0 %500
    %502 = vrot.lane.b32.xlu0 %v487, 126
    %v503 = vpop.permute.xlu0 %502
    %504 = vrot.lane.b32.xlu0 %v488, 126
    %v505 = vpop.permute.xlu0 %504
    %506 = vrot.lane.b32.xlu0 %v489, 126
    %v507 = vpop.permute.xlu0 %506
    %508 = vrot.lane.b32.xlu0 %v490, 126
    %v509 = vpop.permute.xlu0 %508
    %510 = vrot.lane.b32.xlu0 %v491, 126
    %v511 = vpop.permute.xlu0 %510
    %512 = vrot.lane.b32.xlu0 %v492, 126
    %v513 = vpop.permute.xlu0 %512
    %vm514 = vcmask 1031168
    %v515 = vsel %vm514, %v501, %v503
    %v516 = vsel %vm514, %v503, %v505
    %v517 = vsel %vm514, %v505, %v507
    %v518 = vsel %vm514, %v507, %v509
    %v519 = vsel %vm514, %v509, %v511
    %v520 = vsel %vm514, %v511, %v513
    %v527 = vadd.f32 %v476, %v515
    %v528 = vadd.f32 %v477, %v516
    %v529 = vadd.f32 %v478, %v517
    %v530 = vadd.f32 %v479, %v518
    %v531 = vadd.f32 %v480, %v519
    %v532 = vadd.f32 %v481, %v520
    %533 = vset.pattern.permute.xlu0 9
    %534 = vperm.xlu0 %533, %v45
    %v535 = vpop.permute.xlu0 %534
    %v537 = vmul.f32 %v535, %v287
    %v538 = vmul.f32 %v535, %v288
    %v539 = vmul.f32 %v535, %v289
    %v540 = vmul.f32 %v535, %v290
    %v541 = vmul.f32 %v535, %v291
    %v542 = vmul.f32 %v535, %v292
    %v543 = vmul.f32 %v535, %v293
    %551 = vrot.lane.b32.xlu0 %v537, 126
    %v552 = vpop.permute.xlu0 %551
    %553 = vrot.lane.b32.xlu0 %v538, 126
    %v554 = vpop.permute.xlu0 %553
    %555 = vrot.lane.b32.xlu0 %v539, 126
    %v556 = vpop.permute.xlu0 %555
    %557 = vrot.lane.b32.xlu0 %v540, 126
    %v558 = vpop.permute.xlu0 %557
    %559 = vrot.lane.b32.xlu0 %v541, 126
    %v560 = vpop.permute.xlu0 %559
    %561 = vrot.lane.b32.xlu0 %v542, 126
    %v562 = vpop.permute.xlu0 %561
    %563 = vrot.lane.b32.xlu0 %v543, 126
    %v564 = vpop.permute.xlu0 %563
    %v565 = vsel %vm514, %v552, %v554
    %v566 = vsel %vm514, %v554, %v556
    %v567 = vsel %vm514, %v556, %v558
    %v568 = vsel %vm514, %v558, %v560
    %v569 = vsel %vm514, %v560, %v562
    %v570 = vsel %vm514, %v562, %v564
    %v577 = vadd.f32 %v527, %v565
    %v578 = vadd.f32 %v528, %v566
    %v579 = vadd.f32 %v529, %v567
    %v580 = vadd.f32 %v530, %v568
    %v581 = vadd.f32 %v531, %v569
    %v582 = vadd.f32 %v532, %v570
    %583 = vset.pattern.permute.xlu0 10
    %584 = vperm.xlu0 %583, %v45
    %v585 = vpop.permute.xlu0 %584
    %v587 = vmul.f32 %v585, %v358
    %v588 = vmul.f32 %v585, %v359
    %v589 = vmul.f32 %v585, %v360
    %v590 = vmul.f32 %v585, %v361
    %v591 = vmul.f32 %v585, %v362
    %v592 = vmul.f32 %v585, %v363
    %v593 = vmul.f32 %v585, %v364
    %601 = vrot.lane.b32.xlu0 %v587, 126
    %v602 = vpop.permute.xlu0 %601
    %603 = vrot.lane.b32.xlu0 %v588, 126
    %v604 = vpop.permute.xlu0 %603
    %605 = vrot.lane.b32.xlu0 %v589, 126
    %v606 = vpop.permute.xlu0 %605
    %607 = vrot.lane.b32.xlu0 %v590, 126
    %v608 = vpop.permute.xlu0 %607
    %609 = vrot.lane.b32.xlu0 %v591, 126
    %v610 = vpop.permute.xlu0 %609
    %611 = vrot.lane.b32.xlu0 %v592, 126
    %v612 = vpop.permute.xlu0 %611
    %613 = vrot.lane.b32.xlu0 %v593, 126
    %v614 = vpop.permute.xlu0 %613
    %v615 = vsel %vm514, %v602, %v604
    %v616 = vsel %vm514, %v604, %v606
    %v617 = vsel %vm514, %v606, %v608
    %v618 = vsel %vm514, %v608, %v610
    %v619 = vsel %vm514, %v610, %v612
    %v620 = vsel %vm514, %v612, %v614
    %v627 = vadd.f32 %v577, %v615
    %v628 = vadd.f32 %v578, %v616
    %v629 = vadd.f32 %v579, %v617
    %v630 = vadd.f32 %v580, %v618
    %v631 = vadd.f32 %v581, %v619
    %v632 = vadd.f32 %v582, %v620
    %633 = vset.pattern.permute.xlu0 11
    %634 = vperm.xlu0 %633, %v45
    %v635 = vpop.permute.xlu0 %634
    %v637 = vmul.f32 %v635, %v429
    %v638 = vmul.f32 %v635, %v430
    %v639 = vmul.f32 %v635, %v431
    %v640 = vmul.f32 %v635, %v432
    %v641 = vmul.f32 %v635, %v433
    %v642 = vmul.f32 %v635, %v434
    %v643 = vmul.f32 %v635, %v435
    %651 = vrot.lane.b32.xlu0 %v637, 126
    %v652 = vpop.permute.xlu0 %651
    %653 = vrot.lane.b32.xlu0 %v638, 126
    %v654 = vpop.permute.xlu0 %653
    %655 = vrot.lane.b32.xlu0 %v639, 126
    %v656 = vpop.permute.xlu0 %655
    %657 = vrot.lane.b32.xlu0 %v640, 126
    %v658 = vpop.permute.xlu0 %657
    %659 = vrot.lane.b32.xlu0 %v641, 126
    %v660 = vpop.permute.xlu0 %659
    %661 = vrot.lane.b32.xlu0 %v642, 126
    %v662 = vpop.permute.xlu0 %661
    %663 = vrot.lane.b32.xlu0 %v643, 126
    %v664 = vpop.permute.xlu0 %663
    %v665 = vsel %vm514, %v652, %v654
    %v666 = vsel %vm514, %v654, %v656
    %v667 = vsel %vm514, %v656, %v658
    %v668 = vsel %vm514, %v658, %v660
    %v669 = vsel %vm514, %v660, %v662
    %v670 = vsel %vm514, %v662, %v664
    %v677 = vadd.f32 %v627, %v665
    %v678 = vadd.f32 %v628, %v666
    %v679 = vadd.f32 %v629, %v667
    %v680 = vadd.f32 %v630, %v668
    %v681 = vadd.f32 %v631, %v669
    %v682 = vadd.f32 %v632, %v670
    %683 = vset.pattern.permute.xlu0 12
    %684 = vperm.xlu0 %683, %v45
    %v685 = vpop.permute.xlu0 %684
    %v687 = vmul.f32 %v685, %v215
    %v688 = vmul.f32 %v685, %v216
    %v689 = vmul.f32 %v685, %v217
    %v690 = vmul.f32 %v685, %v218
    %v691 = vmul.f32 %v685, %v219
    %v692 = vmul.f32 %v685, %v220
    %v693 = vmul.f32 %v685, %v221
    %v694 = vadd.f32 %v687, 0.0
    %v695 = vadd.f32 %v688, 0.0
    %v696 = vadd.f32 %v689, 0.0
    %v697 = vadd.f32 %v690, 0.0
    %v698 = vadd.f32 %v691, 0.0
    %v699 = vadd.f32 %v692, 0.0
    %v700 = vadd.f32 %v693, 0.0
    %701 = vset.pattern.permute.xlu0 13
    %702 = vperm.xlu0 %701, %v45
    %v703 = vpop.permute.xlu0 %702
    %v705 = vmul.f32 %v703, %v287
    %v706 = vmul.f32 %v703, %v288
    %v707 = vmul.f32 %v703, %v289
    %v708 = vmul.f32 %v703, %v290
    %v709 = vmul.f32 %v703, %v291
    %v710 = vmul.f32 %v703, %v292
    %v711 = vmul.f32 %v703, %v293
    %v712 = vadd.f32 %v694, %v705
    %v713 = vadd.f32 %v695, %v706
    %v714 = vadd.f32 %v696, %v707
    %v715 = vadd.f32 %v697, %v708
    %v716 = vadd.f32 %v698, %v709
    %v717 = vadd.f32 %v699, %v710
    %v718 = vadd.f32 %v700, %v711
    %719 = vset.pattern.permute.xlu0 14
    %720 = vperm.xlu0 %719, %v45
    %v721 = vpop.permute.xlu0 %720
    %v723 = vmul.f32 %v721, %v358
    %v724 = vmul.f32 %v721, %v359
    %v725 = vmul.f32 %v721, %v360
    %v726 = vmul.f32 %v721, %v361
    %v727 = vmul.f32 %v721, %v362
    %v728 = vmul.f32 %v721, %v363
    %v729 = vmul.f32 %v721, %v364
    %v730 = vadd.f32 %v712, %v723
    %v731 = vadd.f32 %v713, %v724
    %v732 = vadd.f32 %v714, %v725
    %v733 = vadd.f32 %v715, %v726
    %v734 = vadd.f32 %v716, %v727
    %v735 = vadd.f32 %v717, %v728
    %v736 = vadd.f32 %v718, %v729
    %737 = vset.pattern.permute.xlu0 15
    %738 = vperm.xlu0 %737, %v45
    %v739 = vpop.permute.xlu0 %738
    %v741 = vmul.f32 %v739, %v429
    %v742 = vmul.f32 %v739, %v430
    %v743 = vmul.f32 %v739, %v431
    %v744 = vmul.f32 %v739, %v432
    %v745 = vmul.f32 %v739, %v433
    %v746 = vmul.f32 %v739, %v434
    %v747 = vmul.f32 %v739, %v435
    %v748 = vadd.f32 %v730, %v741
    %v749 = vadd.f32 %v731, %v742
    %v750 = vadd.f32 %v732, %v743
    %v751 = vadd.f32 %v733, %v744
    %v752 = vadd.f32 %v734, %v745
    %v753 = vadd.f32 %v735, %v746
    %v754 = vadd.f32 %v736, %v747
    %755 = vset.pattern.permute.xlu0 16
    %756 = vperm.xlu0 %755, %v45
    %v757 = vpop.permute.xlu0 %756
    %v759 = vmul.f32 %v757, %v215
    %v760 = vmul.f32 %v757, %v216
    %v761 = vmul.f32 %v757, %v217
    %v762 = vmul.f32 %v757, %v218
    %v763 = vmul.f32 %v757, %v219
    %v764 = vmul.f32 %v757, %v220
    %v765 = vmul.f32 %v757, %v221
    %773 = vrot.lane.b32.xlu0 %v759, 127
    %v774 = vpop.permute.xlu0 %773
    %775 = vrot.lane.b32.xlu0 %v760, 127
    %v776 = vpop.permute.xlu0 %775
    %777 = vrot.lane.b32.xlu0 %v761, 127
    %v778 = vpop.permute.xlu0 %777
    %779 = vrot.lane.b32.xlu0 %v762, 127
    %v780 = vpop.permute.xlu0 %779
    %781 = vrot.lane.b32.xlu0 %v763, 127
    %v782 = vpop.permute.xlu0 %781
    %783 = vrot.lane.b32.xlu0 %v764, 127
    %v784 = vpop.permute.xlu0 %783
    %785 = vrot.lane.b32.xlu0 %v765, 127
    %v786 = vpop.permute.xlu0 %785
    %v787 = vsel %vm250, %v774, %v776
    %v788 = vsel %vm250, %v776, %v778
    %v789 = vsel %vm250, %v778, %v780
    %v790 = vsel %vm250, %v780, %v782
    %v791 = vsel %vm250, %v782, %v784
    %v792 = vsel %vm250, %v784, %v786
    %v800 = vadd.f32 %v748, %v787
    %v801 = vadd.f32 %v749, %v788
    %v802 = vadd.f32 %v750, %v789
    %v803 = vadd.f32 %v751, %v790
    %v804 = vadd.f32 %v752, %v791
    %v805 = vadd.f32 %v753, %v792
    %v806 = vadd.f32 %v754, %v786
    %807 = vset.pattern.permute.xlu0 17
    %808 = vperm.xlu0 %807, %v45
    %v809 = vpop.permute.xlu0 %808
    %v811 = vmul.f32 %v809, %v287
    %v812 = vmul.f32 %v809, %v288
    %v813 = vmul.f32 %v809, %v289
    %v814 = vmul.f32 %v809, %v290
    %v815 = vmul.f32 %v809, %v291
    %v816 = vmul.f32 %v809, %v292
    %v817 = vmul.f32 %v809, %v293
    %825 = vrot.lane.b32.xlu0 %v811, 127
    %v826 = vpop.permute.xlu0 %825
    %827 = vrot.lane.b32.xlu0 %v812, 127
    %v828 = vpop.permute.xlu0 %827
    %829 = vrot.lane.b32.xlu0 %v813, 127
    %v830 = vpop.permute.xlu0 %829
    %831 = vrot.lane.b32.xlu0 %v814, 127
    %v832 = vpop.permute.xlu0 %831
    %833 = vrot.lane.b32.xlu0 %v815, 127
    %v834 = vpop.permute.xlu0 %833
    %835 = vrot.lane.b32.xlu0 %v816, 127
    %v836 = vpop.permute.xlu0 %835
    %837 = vrot.lane.b32.xlu0 %v817, 127
    %v838 = vpop.permute.xlu0 %837
    %v839 = vsel %vm250, %v826, %v828
    %v840 = vsel %vm250, %v828, %v830
    %v841 = vsel %vm250, %v830, %v832
    %v842 = vsel %vm250, %v832, %v834
    %v843 = vsel %vm250, %v834, %v836
    %v844 = vsel %vm250, %v836, %v838
    %v852 = vadd.f32 %v800, %v839
    %v853 = vadd.f32 %v801, %v840
    %v854 = vadd.f32 %v802, %v841
    %v855 = vadd.f32 %v803, %v842
    %v856 = vadd.f32 %v804, %v843
    %v857 = vadd.f32 %v805, %v844
    %v858 = vadd.f32 %v806, %v838
    %859 = vset.pattern.permute.xlu0 18
    %860 = vperm.xlu0 %859, %v45
    %v861 = vpop.permute.xlu0 %860
    %v863 = vmul.f32 %v861, %v358
    %v864 = vmul.f32 %v861, %v359
    %v865 = vmul.f32 %v861, %v360
    %v866 = vmul.f32 %v861, %v361
    %v867 = vmul.f32 %v861, %v362
    %v868 = vmul.f32 %v861, %v363
    %v869 = vmul.f32 %v861, %v364
    %877 = vrot.lane.b32.xlu0 %v863, 127
    %v878 = vpop.permute.xlu0 %877
    %879 = vrot.lane.b32.xlu0 %v864, 127
    %v880 = vpop.permute.xlu0 %879
    %881 = vrot.lane.b32.xlu0 %v865, 127
    %v882 = vpop.permute.xlu0 %881
    %883 = vrot.lane.b32.xlu0 %v866, 127
    %v884 = vpop.permute.xlu0 %883
    %885 = vrot.lane.b32.xlu0 %v867, 127
    %v886 = vpop.permute.xlu0 %885
    %887 = vrot.lane.b32.xlu0 %v868, 127
    %v888 = vpop.permute.xlu0 %887
    %889 = vrot.lane.b32.xlu0 %v869, 127
    %v890 = vpop.permute.xlu0 %889
    %v891 = vsel %vm250, %v878, %v880
    %v892 = vsel %vm250, %v880, %v882
    %v893 = vsel %vm250, %v882, %v884
    %v894 = vsel %vm250, %v884, %v886
    %v895 = vsel %vm250, %v886, %v888
    %v896 = vsel %vm250, %v888, %v890
    %v904 = vadd.f32 %v852, %v891
    %v905 = vadd.f32 %v853, %v892
    %v906 = vadd.f32 %v854, %v893
    %v907 = vadd.f32 %v855, %v894
    %v908 = vadd.f32 %v856, %v895
    %v909 = vadd.f32 %v857, %v896
    %v910 = vadd.f32 %v858, %v890
    %911 = vset.pattern.permute.xlu0 19
    %912 = vperm.xlu0 %911, %v45
    %v913 = vpop.permute.xlu0 %912
    %v915 = vmul.f32 %v913, %v429
    %v916 = vmul.f32 %v913, %v430
    %v917 = vmul.f32 %v913, %v431
    %v918 = vmul.f32 %v913, %v432
    %v919 = vmul.f32 %v913, %v433
    %v920 = vmul.f32 %v913, %v434
    %v921 = vmul.f32 %v913, %v435
    %929 = vrot.lane.b32.xlu0 %v915, 127
    %v930 = vpop.permute.xlu0 %929
    %931 = vrot.lane.b32.xlu0 %v916, 127
    %v932 = vpop.permute.xlu0 %931
    %933 = vrot.lane.b32.xlu0 %v917, 127
    %v934 = vpop.permute.xlu0 %933
    %935 = vrot.lane.b32.xlu0 %v918, 127
    %v936 = vpop.permute.xlu0 %935
    %937 = vrot.lane.b32.xlu0 %v919, 127
    %v938 = vpop.permute.xlu0 %937
    %939 = vrot.lane.b32.xlu0 %v920, 127
    %v940 = vpop.permute.xlu0 %939
    %941 = vrot.lane.b32.xlu0 %v921, 127
    %v942 = vpop.permute.xlu0 %941
    %v943 = vsel %vm250, %v930, %v932
    %v944 = vsel %vm250, %v932, %v934
    %v945 = vsel %vm250, %v934, %v936
    %v946 = vsel %vm250, %v936, %v938
    %v947 = vsel %vm250, %v938, %v940
    %v948 = vsel %vm250, %v940, %v942
    %v956 = vadd.f32 %v904, %v943
    %v957 = vadd.f32 %v905, %v944
    %v958 = vadd.f32 %v906, %v945
    %v959 = vadd.f32 %v907, %v946
    %v960 = vadd.f32 %v908, %v947
    %v961 = vadd.f32 %v909, %v948
    %v962 = vadd.f32 %v910, %v942
    %963 = vset.pattern.permute.xlu0 20
    %964 = vperm.xlu0 %963, %v45
    %v965 = vpop.permute.xlu0 %964
    %v967 = vmul.f32 %v965, %v215
    %v968 = vmul.f32 %v965, %v216
    %v969 = vmul.f32 %v965, %v217
    %v970 = vmul.f32 %v965, %v218
    %v971 = vmul.f32 %v965, %v219
    %v972 = vmul.f32 %v965, %v220
    %v973 = vmul.f32 %v965, %v221
    %981 = vrot.lane.b32.xlu0 %v967, 126
    %v982 = vpop.permute.xlu0 %981
    %983 = vrot.lane.b32.xlu0 %v968, 126
    %v984 = vpop.permute.xlu0 %983
    %985 = vrot.lane.b32.xlu0 %v969, 126
    %v986 = vpop.permute.xlu0 %985
    %987 = vrot.lane.b32.xlu0 %v970, 126
    %v988 = vpop.permute.xlu0 %987
    %989 = vrot.lane.b32.xlu0 %v971, 126
    %v990 = vpop.permute.xlu0 %989
    %991 = vrot.lane.b32.xlu0 %v972, 126
    %v992 = vpop.permute.xlu0 %991
    %993 = vrot.lane.b32.xlu0 %v973, 126
    %v994 = vpop.permute.xlu0 %993
    %v995 = vsel %vm514, %v982, %v984
    %v996 = vsel %vm514, %v984, %v986
    %v997 = vsel %vm514, %v986, %v988
    %v998 = vsel %vm514, %v988, %v990
    %v999 = vsel %vm514, %v990, %v992
    %v1000 = vsel %vm514, %v992, %v994
    %v1008 = vadd.f32 %v956, %v995
    %v1009 = vadd.f32 %v957, %v996
    %v1010 = vadd.f32 %v958, %v997
    %v1011 = vadd.f32 %v959, %v998
    %v1012 = vadd.f32 %v960, %v999
    %v1013 = vadd.f32 %v961, %v1000
    %v1014 = vadd.f32 %v962, %v994
    %1015 = vset.pattern.permute.xlu0 21
    %1016 = vperm.xlu0 %1015, %v45
    %v1017 = vpop.permute.xlu0 %1016
    %v1019 = vmul.f32 %v1017, %v287
    %v1020 = vmul.f32 %v1017, %v288
    %v1021 = vmul.f32 %v1017, %v289
    %v1022 = vmul.f32 %v1017, %v290
    %v1023 = vmul.f32 %v1017, %v291
    %v1024 = vmul.f32 %v1017, %v292
    %v1025 = vmul.f32 %v1017, %v293
    %1033 = vrot.lane.b32.xlu0 %v1019, 126
    %v1034 = vpop.permute.xlu0 %1033
    %1035 = vrot.lane.b32.xlu0 %v1020, 126
    %v1036 = vpop.permute.xlu0 %1035
    %1037 = vrot.lane.b32.xlu0 %v1021, 126
    %v1038 = vpop.permute.xlu0 %1037
    %1039 = vrot.lane.b32.xlu0 %v1022, 126
    %v1040 = vpop.permute.xlu0 %1039
    %1041 = vrot.lane.b32.xlu0 %v1023, 126
    %v1042 = vpop.permute.xlu0 %1041
    %1043 = vrot.lane.b32.xlu0 %v1024, 126
    %v1044 = vpop.permute.xlu0 %1043
    %1045 = vrot.lane.b32.xlu0 %v1025, 126
    %v1046 = vpop.permute.xlu0 %1045
    %v1047 = vsel %vm514, %v1034, %v1036
    %v1048 = vsel %vm514, %v1036, %v1038
    %v1049 = vsel %vm514, %v1038, %v1040
    %v1050 = vsel %vm514, %v1040, %v1042
    %v1051 = vsel %vm514, %v1042, %v1044
    %v1052 = vsel %vm514, %v1044, %v1046
    %v1060 = vadd.f32 %v1008, %v1047
    %v1061 = vadd.f32 %v1009, %v1048
    %v1062 = vadd.f32 %v1010, %v1049
    %v1063 = vadd.f32 %v1011, %v1050
    %v1064 = vadd.f32 %v1012, %v1051
    %v1065 = vadd.f32 %v1013, %v1052
    %v1066 = vadd.f32 %v1014, %v1046
    %1067 = vset.pattern.permute.xlu0 22
    %1068 = vperm.xlu0 %1067, %v45
    %v1069 = vpop.permute.xlu0 %1068
    %v1071 = vmul.f32 %v1069, %v358
    %v1072 = vmul.f32 %v1069, %v359
    %v1073 = vmul.f32 %v1069, %v360
    %v1074 = vmul.f32 %v1069, %v361
    %v1075 = vmul.f32 %v1069, %v362
    %v1076 = vmul.f32 %v1069, %v363
    %v1077 = vmul.f32 %v1069, %v364
    %1085 = vrot.lane.b32.xlu0 %v1071, 126
    %v1086 = vpop.permute.xlu0 %1085
    %1087 = vrot.lane.b32.xlu0 %v1072, 126
    %v1088 = vpop.permute.xlu0 %1087
    %1089 = vrot.lane.b32.xlu0 %v1073, 126
    %v1090 = vpop.permute.xlu0 %1089
    %1091 = vrot.lane.b32.xlu0 %v1074, 126
    %v1092 = vpop.permute.xlu0 %1091
    %1093 = vrot.lane.b32.xlu0 %v1075, 126
    %v1094 = vpop.permute.xlu0 %1093
    %1095 = vrot.lane.b32.xlu0 %v1076, 126
    %v1096 = vpop.permute.xlu0 %1095
    %1097 = vrot.lane.b32.xlu0 %v1077, 126
    %v1098 = vpop.permute.xlu0 %1097
    %v1099 = vsel %vm514, %v1086, %v1088
    %v1100 = vsel %vm514, %v1088, %v1090
    %v1101 = vsel %vm514, %v1090, %v1092
    %v1102 = vsel %vm514, %v1092, %v1094
    %v1103 = vsel %vm514, %v1094, %v1096
    %v1104 = vsel %vm514, %v1096, %v1098
    %v1112 = vadd.f32 %v1060, %v1099
    %v1113 = vadd.f32 %v1061, %v1100
    %v1114 = vadd.f32 %v1062, %v1101
    %v1115 = vadd.f32 %v1063, %v1102
    %v1116 = vadd.f32 %v1064, %v1103
    %v1117 = vadd.f32 %v1065, %v1104
    %v1118 = vadd.f32 %v1066, %v1098
    %1119 = vset.pattern.permute.xlu0 23
    %1120 = vperm.xlu0 %1119, %v45
    %v1121 = vpop.permute.xlu0 %1120
    %v1123 = vmul.f32 %v1121, %v429
    %v1124 = vmul.f32 %v1121, %v430
    %v1125 = vmul.f32 %v1121, %v431
    %v1126 = vmul.f32 %v1121, %v432
    %v1127 = vmul.f32 %v1121, %v433
    %v1128 = vmul.f32 %v1121, %v434
    %v1129 = vmul.f32 %v1121, %v435
    %1137 = vrot.lane.b32.xlu0 %v1123, 126
    %v1138 = vpop.permute.xlu0 %1137
    %1139 = vrot.lane.b32.xlu0 %v1124, 126
    %v1140 = vpop.permute.xlu0 %1139
    %1141 = vrot.lane.b32.xlu0 %v1125, 126
    %v1142 = vpop.permute.xlu0 %1141
    %1143 = vrot.lane.b32.xlu0 %v1126, 126
    %v1144 = vpop.permute.xlu0 %1143
    %1145 = vrot.lane.b32.xlu0 %v1127, 126
    %v1146 = vpop.permute.xlu0 %1145
    %1147 = vrot.lane.b32.xlu0 %v1128, 126
    %v1148 = vpop.permute.xlu0 %1147
    %1149 = vrot.lane.b32.xlu0 %v1129, 126
    %v1150 = vpop.permute.xlu0 %1149
    %v1151 = vsel %vm514, %v1138, %v1140
    %v1152 = vsel %vm514, %v1140, %v1142
    %v1153 = vsel %vm514, %v1142, %v1144
    %v1154 = vsel %vm514, %v1144, %v1146
    %v1155 = vsel %vm514, %v1146, %v1148
    %v1156 = vsel %vm514, %v1148, %v1150
    %v1164 = vadd.f32 %v1112, %v1151
    %v1165 = vadd.f32 %v1113, %v1152
    %v1166 = vadd.f32 %v1114, %v1153
    %v1167 = vadd.f32 %v1115, %v1154
    %v1168 = vadd.f32 %v1116, %v1155
    %v1169 = vadd.f32 %v1117, %v1156
    %v1170 = vadd.f32 %v1118, %v1150
    %1171 = vset.pattern.permute.xlu0 24
    %1172 = vperm.xlu0 %1171, %v45
    %v1173 = vpop.permute.xlu0 %1172
    %v1175 = vmul.f32 %v1173, %v215
    %v1176 = vmul.f32 %v1173, %v216
    %v1177 = vmul.f32 %v1173, %v217
    %v1178 = vmul.f32 %v1173, %v218
    %v1179 = vmul.f32 %v1173, %v219
    %v1180 = vmul.f32 %v1173, %v220
    %v1181 = vmul.f32 %v1173, %v221
    %v1182 = vadd.f32 %v1175, 0.0
    %v1183 = vadd.f32 %v1176, 0.0
    %v1184 = vadd.f32 %v1177, 0.0
    %v1185 = vadd.f32 %v1178, 0.0
    %v1186 = vadd.f32 %v1179, 0.0
    %v1187 = vadd.f32 %v1180, 0.0
    %v1188 = vadd.f32 %v1181, 0.0
    %1189 = vset.pattern.permute.xlu0 25
    %1190 = vperm.xlu0 %1189, %v45
    %v1191 = vpop.permute.xlu0 %1190
    %v1193 = vmul.f32 %v1191, %v287
    %v1194 = vmul.f32 %v1191, %v288
    %v1195 = vmul.f32 %v1191, %v289
    %v1196 = vmul.f32 %v1191, %v290
    %v1197 = vmul.f32 %v1191, %v291
    %v1198 = vmul.f32 %v1191, %v292
    %v1199 = vmul.f32 %v1191, %v293
    %v1200 = vadd.f32 %v1182, %v1193
    %v1201 = vadd.f32 %v1183, %v1194
    %v1202 = vadd.f32 %v1184, %v1195
    %v1203 = vadd.f32 %v1185, %v1196
    %v1204 = vadd.f32 %v1186, %v1197
    %v1205 = vadd.f32 %v1187, %v1198
    %v1206 = vadd.f32 %v1188, %v1199
    %1207 = vset.pattern.permute.xlu0 26
    %1208 = vperm.xlu0 %1207, %v45
    %v1209 = vpop.permute.xlu0 %1208
    %v1211 = vmul.f32 %v1209, %v358
    %v1212 = vmul.f32 %v1209, %v359
    %v1213 = vmul.f32 %v1209, %v360
    %v1214 = vmul.f32 %v1209, %v361
    %v1215 = vmul.f32 %v1209, %v362
    %v1216 = vmul.f32 %v1209, %v363
    %v1217 = vmul.f32 %v1209, %v364
    %v1218 = vadd.f32 %v1200, %v1211
    %v1219 = vadd.f32 %v1201, %v1212
    %v1220 = vadd.f32 %v1202, %v1213
    %v1221 = vadd.f32 %v1203, %v1214
    %v1222 = vadd.f32 %v1204, %v1215
    %v1223 = vadd.f32 %v1205, %v1216
    %v1224 = vadd.f32 %v1206, %v1217
    %1225 = vset.pattern.permute.xlu0 27
    %1226 = vperm.xlu0 %1225, %v45
    %v1227 = vpop.permute.xlu0 %1226
    %v1229 = vmul.f32 %v1227, %v429
    %v1230 = vmul.f32 %v1227, %v430
    %v1231 = vmul.f32 %v1227, %v431
    %v1232 = vmul.f32 %v1227, %v432
    %v1233 = vmul.f32 %v1227, %v433
    %v1234 = vmul.f32 %v1227, %v434
    %v1235 = vmul.f32 %v1227, %v435
    %v1236 = vadd.f32 %v1218, %v1229
    %v1237 = vadd.f32 %v1219, %v1230
    %v1238 = vadd.f32 %v1220, %v1231
    %v1239 = vadd.f32 %v1221, %v1232
    %v1240 = vadd.f32 %v1222, %v1233
    %v1241 = vadd.f32 %v1223, %v1234
    %v1242 = vadd.f32 %v1224, %v1235
    %1243 = vset.pattern.permute.xlu0 28
    %1244 = vperm.xlu0 %1243, %v45
    %v1245 = vpop.permute.xlu0 %1244
    %v1247 = vmul.f32 %v1245, %v215
    %v1248 = vmul.f32 %v1245, %v216
    %v1249 = vmul.f32 %v1245, %v217
    %v1250 = vmul.f32 %v1245, %v218
    %v1251 = vmul.f32 %v1245, %v219
    %v1252 = vmul.f32 %v1245, %v220
    %v1253 = vmul.f32 %v1245, %v221
    %1261 = vrot.lane.b32.xlu0 %v1247, 127
    %v1262 = vpop.permute.xlu0 %1261
    %1263 = vrot.lane.b32.xlu0 %v1248, 127
    %v1264 = vpop.permute.xlu0 %1263
    %1265 = vrot.lane.b32.xlu0 %v1249, 127
    %v1266 = vpop.permute.xlu0 %1265
    %1267 = vrot.lane.b32.xlu0 %v1250, 127
    %v1268 = vpop.permute.xlu0 %1267
    %1269 = vrot.lane.b32.xlu0 %v1251, 127
    %v1270 = vpop.permute.xlu0 %1269
    %1271 = vrot.lane.b32.xlu0 %v1252, 127
    %v1272 = vpop.permute.xlu0 %1271
    %1273 = vrot.lane.b32.xlu0 %v1253, 127
    %v1274 = vpop.permute.xlu0 %1273
    %v1275 = vsel %vm250, %v1262, %v1264
    %v1276 = vsel %vm250, %v1264, %v1266
    %v1277 = vsel %vm250, %v1266, %v1268
    %v1278 = vsel %vm250, %v1268, %v1270
    %v1279 = vsel %vm250, %v1270, %v1272
    %v1280 = vsel %vm250, %v1272, %v1274
    %v1288 = vadd.f32 %v1236, %v1275
    %v1289 = vadd.f32 %v1237, %v1276
    %v1290 = vadd.f32 %v1238, %v1277
    %v1291 = vadd.f32 %v1239, %v1278
    %v1292 = vadd.f32 %v1240, %v1279
    %v1293 = vadd.f32 %v1241, %v1280
    %v1294 = vadd.f32 %v1242, %v1274
    %1295 = vset.pattern.permute.xlu0 29
    %1296 = vperm.xlu0 %1295, %v45
    %v1297 = vpop.permute.xlu0 %1296
    %v1299 = vmul.f32 %v1297, %v287
    %v1300 = vmul.f32 %v1297, %v288
    %v1301 = vmul.f32 %v1297, %v289
    %v1302 = vmul.f32 %v1297, %v290
    %v1303 = vmul.f32 %v1297, %v291
    %v1304 = vmul.f32 %v1297, %v292
    %v1305 = vmul.f32 %v1297, %v293
    %1313 = vrot.lane.b32.xlu0 %v1299, 127
    %v1314 = vpop.permute.xlu0 %1313
    %1315 = vrot.lane.b32.xlu0 %v1300, 127
    %v1316 = vpop.permute.xlu0 %1315
    %1317 = vrot.lane.b32.xlu0 %v1301, 127
    %v1318 = vpop.permute.xlu0 %1317
    %1319 = vrot.lane.b32.xlu0 %v1302, 127
    %v1320 = vpop.permute.xlu0 %1319
    %1321 = vrot.lane.b32.xlu0 %v1303, 127
    %v1322 = vpop.permute.xlu0 %1321
    %1323 = vrot.lane.b32.xlu0 %v1304, 127
    %v1324 = vpop.permute.xlu0 %1323
    %1325 = vrot.lane.b32.xlu0 %v1305, 127
    %v1326 = vpop.permute.xlu0 %1325
    %v1327 = vsel %vm250, %v1314, %v1316
    %v1328 = vsel %vm250, %v1316, %v1318
    %v1329 = vsel %vm250, %v1318, %v1320
    %v1330 = vsel %vm250, %v1320, %v1322
    %v1331 = vsel %vm250, %v1322, %v1324
    %v1332 = vsel %vm250, %v1324, %v1326
    %v1340 = vadd.f32 %v1288, %v1327
    %v1341 = vadd.f32 %v1289, %v1328
    %v1342 = vadd.f32 %v1290, %v1329
    %v1343 = vadd.f32 %v1291, %v1330
    %v1344 = vadd.f32 %v1292, %v1331
    %v1345 = vadd.f32 %v1293, %v1332
    %v1346 = vadd.f32 %v1294, %v1326
    %1347 = vset.pattern.permute.xlu0 30
    %1348 = vperm.xlu0 %1347, %v45
    %v1349 = vpop.permute.xlu0 %1348
    %v1351 = vmul.f32 %v1349, %v358
    %v1352 = vmul.f32 %v1349, %v359
    %v1353 = vmul.f32 %v1349, %v360
    %v1354 = vmul.f32 %v1349, %v361
    %v1355 = vmul.f32 %v1349, %v362
    %v1356 = vmul.f32 %v1349, %v363
    %v1357 = vmul.f32 %v1349, %v364
    %1365 = vrot.lane.b32.xlu0 %v1351, 127
    %v1366 = vpop.permute.xlu0 %1365
    %1367 = vrot.lane.b32.xlu0 %v1352, 127
    %v1368 = vpop.permute.xlu0 %1367
    %1369 = vrot.lane.b32.xlu0 %v1353, 127
    %v1370 = vpop.permute.xlu0 %1369
    %1371 = vrot.lane.b32.xlu0 %v1354, 127
    %v1372 = vpop.permute.xlu0 %1371
    %1373 = vrot.lane.b32.xlu0 %v1355, 127
    %v1374 = vpop.permute.xlu0 %1373
    %1375 = vrot.lane.b32.xlu0 %v1356, 127
    %v1376 = vpop.permute.xlu0 %1375
    %1377 = vrot.lane.b32.xlu0 %v1357, 127
    %v1378 = vpop.permute.xlu0 %1377
    %v1379 = vsel %vm250, %v1366, %v1368
    %v1380 = vsel %vm250, %v1368, %v1370
    %v1381 = vsel %vm250, %v1370, %v1372
    %v1382 = vsel %vm250, %v1372, %v1374
    %v1383 = vsel %vm250, %v1374, %v1376
    %v1384 = vsel %vm250, %v1376, %v1378
    %v1392 = vadd.f32 %v1340, %v1379
    %v1393 = vadd.f32 %v1341, %v1380
    %v1394 = vadd.f32 %v1342, %v1381
    %v1395 = vadd.f32 %v1343, %v1382
    %v1396 = vadd.f32 %v1344, %v1383
    %v1397 = vadd.f32 %v1345, %v1384
    %v1398 = vadd.f32 %v1346, %v1378
    %1399 = vset.pattern.permute.xlu0 31
    %1400 = vperm.xlu0 %1399, %v45
    %v1401 = vpop.permute.xlu0 %1400
    %v1403 = vmul.f32 %v1401, %v429
    %v1404 = vmul.f32 %v1401, %v430
    %v1405 = vmul.f32 %v1401, %v431
    %v1406 = vmul.f32 %v1401, %v432
    %v1407 = vmul.f32 %v1401, %v433
    %v1408 = vmul.f32 %v1401, %v434
    %v1409 = vmul.f32 %v1401, %v435
    %1417 = vrot.lane.b32.xlu0 %v1403, 127
    %v1418 = vpop.permute.xlu0 %1417
    %1419 = vrot.lane.b32.xlu0 %v1404, 127
    %v1420 = vpop.permute.xlu0 %1419
    %1421 = vrot.lane.b32.xlu0 %v1405, 127
    %v1422 = vpop.permute.xlu0 %1421
    %1423 = vrot.lane.b32.xlu0 %v1406, 127
    %v1424 = vpop.permute.xlu0 %1423
    %1425 = vrot.lane.b32.xlu0 %v1407, 127
    %v1426 = vpop.permute.xlu0 %1425
    %1427 = vrot.lane.b32.xlu0 %v1408, 127
    %v1428 = vpop.permute.xlu0 %1427
    %1429 = vrot.lane.b32.xlu0 %v1409, 127
    %v1430 = vpop.permute.xlu0 %1429
    %v1431 = vsel %vm250, %v1418, %v1420
    %v1432 = vsel %vm250, %v1420, %v1422
    %v1433 = vsel %vm250, %v1422, %v1424
    %v1434 = vsel %vm250, %v1424, %v1426
    %v1435 = vsel %vm250, %v1426, %v1428
    %v1436 = vsel %vm250, %v1428, %v1430
    %v1444 = vadd.f32 %v1392, %v1431
    %v1445 = vadd.f32 %v1393, %v1432
    %v1446 = vadd.f32 %v1394, %v1433
    %v1447 = vadd.f32 %v1395, %v1434
    %v1448 = vadd.f32 %v1396, %v1435
    %v1449 = vadd.f32 %v1397, %v1436
    %v1450 = vadd.f32 %v1398, %v1430
    %1451 = vset.pattern.permute.xlu0 32
    %1452 = vperm.xlu0 %1451, %v45
    %v1453 = vpop.permute.xlu0 %1452
    %v1455 = vmul.f32 %v1453, %v215
    %v1456 = vmul.f32 %v1453, %v216
    %v1457 = vmul.f32 %v1453, %v217
    %v1458 = vmul.f32 %v1453, %v218
    %v1459 = vmul.f32 %v1453, %v219
    %v1460 = vmul.f32 %v1453, %v220
    %v1461 = vmul.f32 %v1453, %v221
    %1469 = vrot.lane.b32.xlu0 %v1455, 126
    %v1470 = vpop.permute.xlu0 %1469
    %1471 = vrot.lane.b32.xlu0 %v1456, 126
    %v1472 = vpop.permute.xlu0 %1471
    %1473 = vrot.lane.b32.xlu0 %v1457, 126
    %v1474 = vpop.permute.xlu0 %1473
    %1475 = vrot.lane.b32.xlu0 %v1458, 126
    %v1476 = vpop.permute.xlu0 %1475
    %1477 = vrot.lane.b32.xlu0 %v1459, 126
    %v1478 = vpop.permute.xlu0 %1477
    %1479 = vrot.lane.b32.xlu0 %v1460, 126
    %v1480 = vpop.permute.xlu0 %1479
    %1481 = vrot.lane.b32.xlu0 %v1461, 126
    %v1482 = vpop.permute.xlu0 %1481
    %v1483 = vsel %vm514, %v1470, %v1472
    %v1484 = vsel %vm514, %v1472, %v1474
    %v1485 = vsel %vm514, %v1474, %v1476
    %v1486 = vsel %vm514, %v1476, %v1478
    %v1487 = vsel %vm514, %v1478, %v1480
    %v1488 = vsel %vm514, %v1480, %v1482
    %v1496 = vadd.f32 %v1444, %v1483
    %v1497 = vadd.f32 %v1445, %v1484
    %v1498 = vadd.f32 %v1446, %v1485
    %v1499 = vadd.f32 %v1447, %v1486
    %v1500 = vadd.f32 %v1448, %v1487
    %v1501 = vadd.f32 %v1449, %v1488
    %v1502 = vadd.f32 %v1450, %v1482
    %1503 = vset.pattern.permute.xlu0 33
    %1504 = vperm.xlu0 %1503, %v45
    %v1505 = vpop.permute.xlu0 %1504
    %v1507 = vmul.f32 %v1505, %v287
    %v1508 = vmul.f32 %v1505, %v288
    %v1509 = vmul.f32 %v1505, %v289
    %v1510 = vmul.f32 %v1505, %v290
    %v1511 = vmul.f32 %v1505, %v291
    %v1512 = vmul.f32 %v1505, %v292
    %v1513 = vmul.f32 %v1505, %v293
    %1521 = vrot.lane.b32.xlu0 %v1507, 126
    %v1522 = vpop.permute.xlu0 %1521
    %1523 = vrot.lane.b32.xlu0 %v1508, 126
    %v1524 = vpop.permute.xlu0 %1523
    %1525 = vrot.lane.b32.xlu0 %v1509, 126
    %v1526 = vpop.permute.xlu0 %1525
    %1527 = vrot.lane.b32.xlu0 %v1510, 126
    %v1528 = vpop.permute.xlu0 %1527
    %1529 = vrot.lane.b32.xlu0 %v1511, 126
    %v1530 = vpop.permute.xlu0 %1529
    %1531 = vrot.lane.b32.xlu0 %v1512, 126
    %v1532 = vpop.permute.xlu0 %1531
    %1533 = vrot.lane.b32.xlu0 %v1513, 126
    %v1534 = vpop.permute.xlu0 %1533
    %v1535 = vsel %vm514, %v1522, %v1524
    %v1536 = vsel %vm514, %v1524, %v1526
    %v1537 = vsel %vm514, %v1526, %v1528
    %v1538 = vsel %vm514, %v1528, %v1530
    %v1539 = vsel %vm514, %v1530, %v1532
    %v1540 = vsel %vm514, %v1532, %v1534
    %v1548 = vadd.f32 %v1496, %v1535
    %v1549 = vadd.f32 %v1497, %v1536
    %v1550 = vadd.f32 %v1498, %v1537
    %v1551 = vadd.f32 %v1499, %v1538
    %v1552 = vadd.f32 %v1500, %v1539
    %v1553 = vadd.f32 %v1501, %v1540
    %v1554 = vadd.f32 %v1502, %v1534
    %1555 = vset.pattern.permute.xlu0 34
    %1556 = vperm.xlu0 %1555, %v45
    %v1557 = vpop.permute.xlu0 %1556
    %v1559 = vmul.f32 %v1557, %v358
    %v1560 = vmul.f32 %v1557, %v359
    %v1561 = vmul.f32 %v1557, %v360
    %v1562 = vmul.f32 %v1557, %v361
    %v1563 = vmul.f32 %v1557, %v362
    %v1564 = vmul.f32 %v1557, %v363
    %v1565 = vmul.f32 %v1557, %v364
    %1573 = vrot.lane.b32.xlu0 %v1559, 126
    %v1574 = vpop.permute.xlu0 %1573
    %1575 = vrot.lane.b32.xlu0 %v1560, 126
    %v1576 = vpop.permute.xlu0 %1575
    %1577 = vrot.lane.b32.xlu0 %v1561, 126
    %v1578 = vpop.permute.xlu0 %1577
    %1579 = vrot.lane.b32.xlu0 %v1562, 126
    %v1580 = vpop.permute.xlu0 %1579
    %1581 = vrot.lane.b32.xlu0 %v1563, 126
    %v1582 = vpop.permute.xlu0 %1581
    %1583 = vrot.lane.b32.xlu0 %v1564, 126
    %v1584 = vpop.permute.xlu0 %1583
    %1585 = vrot.lane.b32.xlu0 %v1565, 126
    %v1586 = vpop.permute.xlu0 %1585
    %v1587 = vsel %vm514, %v1574, %v1576
    %v1588 = vsel %vm514, %v1576, %v1578
    %v1589 = vsel %vm514, %v1578, %v1580
    %v1590 = vsel %vm514, %v1580, %v1582
    %v1591 = vsel %vm514, %v1582, %v1584
    %v1592 = vsel %vm514, %v1584, %v1586
    %v1600 = vadd.f32 %v1548, %v1587
    %v1601 = vadd.f32 %v1549, %v1588
    %v1602 = vadd.f32 %v1550, %v1589
    %v1603 = vadd.f32 %v1551, %v1590
    %v1604 = vadd.f32 %v1552, %v1591
    %v1605 = vadd.f32 %v1553, %v1592
    %v1606 = vadd.f32 %v1554, %v1586
    %1607 = vset.pattern.permute.xlu0 35
    %1608 = vperm.xlu0 %1607, %v45
    %v1609 = vpop.permute.xlu0 %1608
    %v1611 = vmul.f32 %v1609, %v429
    %v1612 = vmul.f32 %v1609, %v430
    %v1613 = vmul.f32 %v1609, %v431
    %v1614 = vmul.f32 %v1609, %v432
    %v1615 = vmul.f32 %v1609, %v433
    %v1616 = vmul.f32 %v1609, %v434
    %v1617 = vmul.f32 %v1609, %v435
    %1625 = vrot.lane.b32.xlu0 %v1611, 126
    %v1626 = vpop.permute.xlu0 %1625
    %1627 = vrot.lane.b32.xlu0 %v1612, 126
    %v1628 = vpop.permute.xlu0 %1627
    %1629 = vrot.lane.b32.xlu0 %v1613, 126
    %v1630 = vpop.permute.xlu0 %1629
    %1631 = vrot.lane.b32.xlu0 %v1614, 126
    %v1632 = vpop.permute.xlu0 %1631
    %1633 = vrot.lane.b32.xlu0 %v1615, 126
    %v1634 = vpop.permute.xlu0 %1633
    %1635 = vrot.lane.b32.xlu0 %v1616, 126
    %v1636 = vpop.permute.xlu0 %1635
    %1637 = vrot.lane.b32.xlu0 %v1617, 126
    %v1638 = vpop.permute.xlu0 %1637
    %v1639 = vsel %vm514, %v1626, %v1628
    %v1640 = vsel %vm514, %v1628, %v1630
    %v1641 = vsel %vm514, %v1630, %v1632
    %v1642 = vsel %vm514, %v1632, %v1634
    %v1643 = vsel %vm514, %v1634, %v1636
    %v1644 = vsel %vm514, %v1636, %v1638
    %v1652 = vadd.f32 %v1600, %v1639
    %v1653 = vadd.f32 %v1601, %v1640
    %v1654 = vadd.f32 %v1602, %v1641
    %v1655 = vadd.f32 %v1603, %v1642
    %v1656 = vadd.f32 %v1604, %v1643
    %v1657 = vadd.f32 %v1605, %v1644
    %v1658 = vadd.f32 %v1606, %v1638
    %1666 = vrot.lane.b32.xlu0 %v1164, 110
    %v1667 = vpop.permute.xlu0 %1666
    %1668 = vrot.lane.b32.xlu0 %v1165, 110
    %v1669 = vpop.permute.xlu0 %1668
    %1670 = vrot.lane.b32.xlu0 %v1166, 110
    %v1671 = vpop.permute.xlu0 %1670
    %1672 = vrot.lane.b32.xlu0 %v1167, 110
    %v1673 = vpop.permute.xlu0 %1672
    %1674 = vrot.lane.b32.xlu0 %v1168, 110
    %v1675 = vpop.permute.xlu0 %1674
    %1676 = vrot.lane.b32.xlu0 %v1169, 110
    %v1677 = vpop.permute.xlu0 %1676
    %1678 = vrot.lane.b32.xlu0 %v1170, 110
    %v1679 = vpop.permute.xlu0 %1678
    %vm1680 = vcmask 900096
    %v1681 = vsel %vm1680, %v1667, %v1669
    %v1682 = vsel %vm1680, %v1669, %v1671
    %v1683 = vsel %vm1680, %v1671, %v1673
    %v1684 = vsel %vm1680, %v1673, %v1675
    %v1685 = vsel %vm1680, %v1675, %v1677
    %v1686 = vsel %vm1680, %v1677, %v1679
    %v1693 = vadd.f32 %v677, %v1681
    %v1694 = vadd.f32 %v678, %v1682
    %v1695 = vadd.f32 %v679, %v1683
    %v1696 = vadd.f32 %v680, %v1684
    %v1697 = vadd.f32 %v681, %v1685
    %v1698 = vadd.f32 %v682, %v1686
    %1706 = vrot.lane.b32.xlu0 %v1652, 92
    %v1707 = vpop.permute.xlu0 %1706
    %1708 = vrot.lane.b32.xlu0 %v1653, 92
    %v1709 = vpop.permute.xlu0 %1708
    %1710 = vrot.lane.b32.xlu0 %v1654, 92
    %v1711 = vpop.permute.xlu0 %1710
    %1712 = vrot.lane.b32.xlu0 %v1655, 92
    %v1713 = vpop.permute.xlu0 %1712
    %1714 = vrot.lane.b32.xlu0 %v1656, 92
    %v1715 = vpop.permute.xlu0 %1714
    %1716 = vrot.lane.b32.xlu0 %v1657, 92
    %v1717 = vpop.permute.xlu0 %1716
    %1718 = vrot.lane.b32.xlu0 %v1658, 92
    %v1719 = vpop.permute.xlu0 %1718
    %vm1720 = vcmask 752640
    %v1721 = vsel %vm1720, %v1707, %v1709
    %v1722 = vsel %vm1720, %v1709, %v1711
    %v1723 = vsel %vm1720, %v1711, %v1713
    %v1724 = vsel %vm1720, %v1713, %v1715
    %v1725 = vsel %vm1720, %v1715, %v1717
    %v1726 = vsel %vm1720, %v1717, %v1719
    %v1733 = vadd.f32 %v1693, %v1721
    %v1734 = vadd.f32 %v1694, %v1722
    %v1735 = vadd.f32 %v1695, %v1723
    %v1736 = vadd.f32 %v1696, %v1724
    %v1737 = vadd.f32 %v1697, %v1725
    %v1738 = vadd.f32 %v1698, %v1726
    %v1739 = vld [vmem:[%s3] sm:$0xf]
    %v1740 = vld [vmem:[%s4] sm:$0xf]
    %v1742 = vperm.slane %v44, 0
    %v1743 = vperm.slane %v44, 1
    %v1744 = vperm.slane %v44, 2
    %v1745 = vperm.slane %v44, 3
    %v1746 = vperm.slane %v44, 4
    %v1747 = vperm.slane %v44, 5
    %v1754 = vmul.f32 %v1733, %v1742
    %v1755 = vmul.f32 %v1734, %v1743
    %v1756 = vmul.f32 %v1735, %v1744
    %v1757 = vmul.f32 %v1736, %v1745
    %v1758 = vmul.f32 %v1737, %v1746
    %v1759 = vmul.f32 %v1738, %v1747
    %vm1760 = vcmask 1043456
    %v1761 = vsel %vm1760, %v1754, 0.0
    %v1762 = vsel %vm1760, %v1755, 0.0
    %v1763 = vadd.f32 %v1761, %v1762
    %v1764 = vsel %vm1760, %v1756, 0.0
    %v1765 = vadd.f32 %v1763, %v1764
    %v1766 = vsel %vm1760, %v1757, 0.0
    %v1767 = vadd.f32 %v1765, %v1766
    %v1768 = vsel %vm1760, %v1758, 0.0
    %v1769 = vadd.f32 %v1767, %v1768
    %v1770 = vsel %vm1760, %v1759, 0.0
    %v1771 = vadd.f32 %v1769, %v1770
    %1772 = vadd.xlane.f32.xlu0 %v1771
    %v1773 = vpop.xlane.xlu0 %1772
    %v1774 = vmul.f32 %v1773, 0.001953125
    %v1775 = vsub.f32 %v1733, %v1774
    %v1776 = vsub.f32 %v1734, %v1774
    %v1777 = vsub.f32 %v1735, %v1774
    %v1778 = vsub.f32 %v1736, %v1774
    %v1779 = vsub.f32 %v1737, %v1774
    %v1780 = vsub.f32 %v1738, %v1774
    %v1781 = vmul.f32 %v1775, %v1775
    %v1782 = vmul.f32 %v1776, %v1776
    %v1783 = vmul.f32 %v1777, %v1777
    %v1784 = vmul.f32 %v1778, %v1778
    %v1785 = vmul.f32 %v1779, %v1779
    %v1786 = vmul.f32 %v1780, %v1780
    %v1787 = vmul.f32 %v1781, %v1742
    %v1788 = vmul.f32 %v1782, %v1743
    %v1789 = vmul.f32 %v1783, %v1744
    %v1790 = vmul.f32 %v1784, %v1745
    %v1791 = vmul.f32 %v1785, %v1746
    %v1792 = vmul.f32 %v1786, %v1747
    %v1793 = vsel %vm1760, %v1787, 0.0
    %v1794 = vsel %vm1760, %v1788, 0.0
    %v1795 = vadd.f32 %v1793, %v1794
    %v1796 = vsel %vm1760, %v1789, 0.0
    %v1797 = vadd.f32 %v1795, %v1796
    %v1798 = vsel %vm1760, %v1790, 0.0
    %v1799 = vadd.f32 %v1797, %v1798
    %v1800 = vsel %vm1760, %v1791, 0.0
    %v1801 = vadd.f32 %v1799, %v1800
    %v1802 = vsel %vm1760, %v1792, 0.0
    %v1803 = vadd.f32 %v1801, %v1802
    %1804 = vadd.xlane.f32.xlu0 %v1803
    %v1805 = vpop.xlane.xlu0 %1804
    %v1806 = vmul.f32 %v1805, 0.001953125
    %v1807 = vadd.f32 %v1806, 1e-05
    %v1808 = vrsqrt.pop %v1807
    %v1809 = vmul.f32 %v1808, %v1807
    %v1810 = vmul.f32 %v1809, %v1808
    %v1811 = vmul.f32 0.5, %v1810
    %v1812 = vsub.f32 1.5, %v1811
    %v1813 = vmul.f32 %v1808, %v1812
    %vm1814 = vweird.f32 %v1807
    %vm1815 = vweird.f32 %v1808
    %vm1816 = vmor %vm1814, %vm1815
    %v1817 = vsel %vm1816, %v1808, %v1813
    %v1818 = vmul.f32 %v1739, %v1817
    %1820 = vset.pattern.permute.xlu0 0
    %1821 = vperm.xlu0 %1820, %v1818
    %v1822 = vpop.permute.xlu0 %1821
    %v1824 = vmul.f32 %v1775, %v1822
    %v1825 = vmul.f32 %v1776, %v1822
    %v1826 = vmul.f32 %v1777, %v1822
    %v1827 = vmul.f32 %v1778, %v1822
    %v1828 = vmul.f32 %v1779, %v1822
    %v1829 = vmul.f32 %v1780, %v1822
    %1831 = vset.pattern.permute.xlu0 0
    %1832 = vperm.xlu0 %1831, %v1740
    %v1833 = vpop.permute.xlu0 %1832
    %v1835 = vadd.f32 %v1824, %v1833
    %v1836 = vadd.f32 %v1825, %v1833
    %v1837 = vadd.f32 %v1826, %v1833
    %v1838 = vadd.f32 %v1827, %v1833
    %v1839 = vadd.f32 %v1828, %v1833
    %v1840 = vadd.f32 %v1829, %v1833
    %v1841 = vmax.f32 %v1835, 0.0
    %v1842 = vmax.f32 %v1836, 0.0
    %v1843 = vmax.f32 %v1837, 0.0
    %v1844 = vmax.f32 %v1838, 0.0
    %v1845 = vmax.f32 %v1839, 0.0
    %v1846 = vmax.f32 %v1840, 0.0
    %v1847 = vmul.f32 %v1841, %v1742
    %v1848 = vmul.f32 %v1842, %v1743
    %v1849 = vmul.f32 %v1843, %v1744
    %v1850 = vmul.f32 %v1844, %v1745
    %v1851 = vmul.f32 %v1845, %v1746
    %v1852 = vmul.f32 %v1846, %v1747
    %1853 = vst [vmem:[#allocation2] sm:$0xff] 0.0
    %1854 = vst [vmem:[#allocation2 + $0x8] sm:$0xff] 0.0
    %1855 = vst [vmem:[#allocation2 + $0x10] sm:$0xff] 0.0
    %1856 = vst [vmem:[#allocation2 + $0x18] sm:$0xf] 0.0
    %v1863 = vrot.slane %v1848, 4
    %v1864 = vrot.slane %v1850, 4
    %v1865 = vrot.slane %v1852, 4
    %v1866 = vsel %vm1760, %v1847, %v1863
    %v1867 = vsel %vm1760, %v1849, %v1864
    %v1868 = vsel %vm1760, %v1851, %v1865
    %1869 = vrot.lane.b32.xlu0 %v1866, 19
    %v1870 = vpop.permute.xlu0 %1869
    %1871 = vrot.lane.b32.xlu0 %v1867, 19
    %v1872 = vpop.permute.xlu0 %1871
    %1873 = vrot.lane.b32.xlu0 %v1868, 19
    %v1874 = vpop.permute.xlu0 %1873
    %v1875 = vrot.slane %v1870, 4
    %v1876 = vrot.slane %v1872, 4
    %v1877 = vrot.slane %v1874, 4
    %vm1878 = vcmask 154624
    %v1879 = vsel %vm1878, %v1875, %v1870
    %v1880 = vsel %vm1760, %v1875, %v1876
    %v1881 = vsel %vm1878, %v1880, %v1872
    %v1882 = vsel %vm1760, %v1876, %v1877
    %v1883 = vsel %vm1878, %v1882, %v1874
    %vm1888 = vcmask 1043608
    %vm1889 = vcmask 1047556
    %vm1890 = vmor %vm1889, %vm1888
    %1891 = vst.msk [vmem:[#allocation2] sm:$0xff] %vm1890, %v1879
    %1892 = vst [vmem:[#allocation2 + $0x8] sm:$0xff] %v1881
    %1893 = vst [vmem:[#allocation2 + $0x10] sm:$0xff] %v1883
    %vm1894 = vcmask 150528
    %1895 = vst.msk [vmem:[#allocation2 + $0x18] sm:$0xf] %vm1894, %v1877
    %v1896 = vld [vmem:[%s2] sm:$0xf]
    %v1897 = vld [vmem:[#allocation2] sm:$0xff]
    %v1898 = vld [vmem:[#allocation2 + $0x8] sm:$0xff]
    %v1899 = vld [vmem:[#allocation2 + $0x10] sm:$0xff]
    %1901 = vset.pattern.permute.xlu0 0
    %1902 = vperm.xlu0 %1901, %v1896
    %v1903 = vpop.permute.xlu0 %1902
    %v1908 = vperm.slane %v1897, 0
    %v1909 = vperm.slane %v1897, 4
    %v1910 = vperm.slane %v1898, 0
    %v1911 = vperm.slane %v1898, 4
    %v1912 = vperm.slane %v1899, 0
    %v1913 = vperm.slane %v1899, 4
    %v1920 = vperm.slane %v1908, 0
    %v1921 = vperm.slane %v1909, 0
    %v1922 = vperm.slane %v1910, 0
    %v1923 = vperm.slane %v1911, 0
    %v1924 = vperm.slane %v1912, 0
    %v1925 = vperm.slane %v1913, 0
    %v1926 = vmul.f32 %v1903, %v1920
    %v1927 = vmul.f32 %v1903, %v1921
    %v1928 = vmul.f32 %v1903, %v1922
    %v1929 = vmul.f32 %v1903, %v1923
    %v1930 = vmul.f32 %v1903, %v1924
    %v1931 = vmul.f32 %v1903, %v1925
    %v1932 = vadd.f32 %v1926, 0.0
    %v1933 = vadd.f32 %v1927, 0.0
    %v1934 = vadd.f32 %v1928, 0.0
    %v1935 = vadd.f32 %v1929, 0.0
    %v1936 = vadd.f32 %v1930, 0.0
    %v1937 = vadd.f32 %v1931, 0.0
    %1938 = vset.pattern.permute.xlu0 1
    %1939 = vperm.xlu0 %1938, %v1896
    %v1940 = vpop.permute.xlu0 %1939
    %v1942 = vperm.slane %v1897, 1
    %v1943 = vperm.slane %v1897, 5
    %v1944 = vperm.slane %v1898, 1
    %v1945 = vperm.slane %v1898, 5
    %v1946 = vperm.slane %v1899, 1
    %v1947 = vperm.slane %v1899, 5
    %v1954 = vperm.slane %v1942, 1
    %v1955 = vperm.slane %v1943, 1
    %v1956 = vperm.slane %v1944, 1
    %v1957 = vperm.slane %v1945, 1
    %v1958 = vperm.slane %v1946, 1
    %v1959 = vperm.slane %v1947, 1
    %v1960 = vmul.f32 %v1940, %v1954
    %v1961 = vmul.f32 %v1940, %v1955
    %v1962 = vmul.f32 %v1940, %v1956
    %v1963 = vmul.f32 %v1940, %v1957
    %v1964 = vmul.f32 %v1940, %v1958
    %v1965 = vmul.f32 %v1940, %v1959
    %v1966 = vadd.f32 %v1932, %v1960
    %v1967 = vadd.f32 %v1933, %v1961
    %v1968 = vadd.f32 %v1934, %v1962
    %v1969 = vadd.f32 %v1935, %v1963
    %v1970 = vadd.f32 %v1936, %v1964
    %v1971 = vadd.f32 %v1937, %v1965
    %1972 = vset.pattern.permute.xlu0 2
    %1973 = vperm.xlu0 %1972, %v1896
    %v1974 = vpop.permute.xlu0 %1973
    %v1976 = vperm.slane %v1897, 2
    %v1977 = vperm.slane %v1897, 6
    %v1978 = vperm.slane %v1898, 2
    %v1979 = vperm.slane %v1898, 6
    %v1980 = vperm.slane %v1899, 2
    %v1981 = vperm.slane %v1899, 6
    %v1988 = vperm.slane %v1976, 2
    %v1989 = vperm.slane %v1977, 2
    %v1990 = vperm.slane %v1978, 2
    %v1991 = vperm.slane %v1979, 2
    %v1992 = vperm.slane %v1980, 2
    %v1993 = vperm.slane %v1981, 2
    %v1994 = vmul.f32 %v1974, %v1988
    %v1995 = vmul.f32 %v1974, %v1989
    %v1996 = vmul.f32 %v1974, %v1990
    %v1997 = vmul.f32 %v1974, %v1991
    %v1998 = vmul.f32 %v1974, %v1992
    %v1999 = vmul.f32 %v1974, %v1993
    %v2000 = vadd.f32 %v1966, %v1994
    %v2001 = vadd.f32 %v1967, %v1995
    %v2002 = vadd.f32 %v1968, %v1996
    %v2003 = vadd.f32 %v1969, %v1997
    %v2004 = vadd.f32 %v1970, %v1998
    %v2005 = vadd.f32 %v1971, %v1999
    %2006 = vset.pattern.permute.xlu0 3
    %2007 = vperm.xlu0 %2006, %v1896
    %v2008 = vpop.permute.xlu0 %2007
    %v2010 = vperm.slane %v1897, 3
    %v2011 = vperm.slane %v1897, 7
    %v2012 = vperm.slane %v1898, 3
    %v2013 = vperm.slane %v1898, 7
    %v2014 = vperm.slane %v1899, 3
    %v2015 = vperm.slane %v1899, 7
    %v2022 = vperm.slane %v2010, 3
    %v2023 = vperm.slane %v2011, 3
    %v2024 = vperm.slane %v2012, 3
    %v2025 = vperm.slane %v2013, 3
    %v2026 = vperm.slane %v2014, 3
    %v2027 = vperm.slane %v2015, 3
    %v2028 = vmul.f32 %v2008, %v2022
    %v2029 = vmul.f32 %v2008, %v2023
    %v2030 = vmul.f32 %v2008, %v2024
    %v2031 = vmul.f32 %v2008, %v2025
    %v2032 = vmul.f32 %v2008, %v2026
    %v2033 = vmul.f32 %v2008, %v2027
    %v2034 = vadd.f32 %v2000, %v2028
    %v2035 = vadd.f32 %v2001, %v2029
    %v2036 = vadd.f32 %v2002, %v2030
    %v2037 = vadd.f32 %v2003, %v2031
    %v2038 = vadd.f32 %v2004, %v2032
    %v2039 = vadd.f32 %v2005, %v2033
    %v2040 = vld [vmem:[#allocation2] sm:$0xff]
    %v2041 = vld [vmem:[#allocation2 + $0x8] sm:$0xff]
    %v2042 = vld [vmem:[#allocation2 + $0x10] sm:$0xff]
    %v2043 = vld [vmem:[#allocation2 + $0x18] sm:$0xf]
    %2044 = vset.pattern.permute.xlu0 4
    %2045 = vperm.xlu0 %2044, %v1896
    %v2046 = vpop.permute.xlu0 %2045
    %v2052 = vperm.slane %v2040, 0
    %v2053 = vperm.slane %v2040, 4
    %v2054 = vperm.slane %v2041, 0
    %v2055 = vperm.slane %v2041, 4
    %v2056 = vperm.slane %v2042, 0
    %v2057 = vperm.slane %v2042, 4
    %v2058 = vperm.slane %v2043, 0
    %v2066 = vperm.slane %v2052, 0
    %v2067 = vperm.slane %v2053, 0
    %v2068 = vperm.slane %v2054, 0
    %v2069 = vperm.slane %v2055, 0
    %v2070 = vperm.slane %v2056, 0
    %v2071 = vperm.slane %v2057, 0
    %v2072 = vperm.slane %v2058, 0
    %v2073 = vmul.f32 %v2046, %v2066
    %v2074 = vmul.f32 %v2046, %v2067
    %v2075 = vmul.f32 %v2046, %v2068
    %v2076 = vmul.f32 %v2046, %v2069
    %v2077 = vmul.f32 %v2046, %v2070
    %v2078 = vmul.f32 %v2046, %v2071
    %v2079 = vmul.f32 %v2046, %v2072
    %2087 = vrot.lane.b32.xlu0 %v2073, 127
    %v2088 = vpop.permute.xlu0 %2087
    %2089 = vrot.lane.b32.xlu0 %v2074, 127
    %v2090 = vpop.permute.xlu0 %2089
    %2091 = vrot.lane.b32.xlu0 %v2075, 127
    %v2092 = vpop.permute.xlu0 %2091
    %2093 = vrot.lane.b32.xlu0 %v2076, 127
    %v2094 = vpop.permute.xlu0 %2093
    %2095 = vrot.lane.b32.xlu0 %v2077, 127
    %v2096 = vpop.permute.xlu0 %2095
    %2097 = vrot.lane.b32.xlu0 %v2078, 127
    %v2098 = vpop.permute.xlu0 %2097
    %2099 = vrot.lane.b32.xlu0 %v2079, 127
    %v2100 = vpop.permute.xlu0 %2099
    %v2101 = vsel %vm250, %v2088, %v2090
    %v2102 = vsel %vm250, %v2090, %v2092
    %v2103 = vsel %vm250, %v2092, %v2094
    %v2104 = vsel %vm250, %v2094, %v2096
    %v2105 = vsel %vm250, %v2096, %v2098
    %v2106 = vsel %vm250, %v2098, %v2100
    %v2113 = vadd.f32 %v2034, %v2101
    %v2114 = vadd.f32 %v2035, %v2102
    %v2115 = vadd.f32 %v2036, %v2103
    %v2116 = vadd.f32 %v2037, %v2104
    %v2117 = vadd.f32 %v2038, %v2105
    %v2118 = vadd.f32 %v2039, %v2106
    %2119 = vset.pattern.permute.xlu0 5
    %2120 = vperm.xlu0 %2119, %v1896
    %v2121 = vpop.permute.xlu0 %2120
    %v2123 = vperm.slane %v2040, 1
    %v2124 = vperm.slane %v2040, 5
    %v2125 = vperm.slane %v2041, 1
    %v2126 = vperm.slane %v2041, 5
    %v2127 = vperm.slane %v2042, 1
    %v2128 = vperm.slane %v2042, 5
    %v2129 = vperm.slane %v2043, 1
    %v2137 = vperm.slane %v2123, 1
    %v2138 = vperm.slane %v2124, 1
    %v2139 = vperm.slane %v2125, 1
    %v2140 = vperm.slane %v2126, 1
    %v2141 = vperm.slane %v2127, 1
    %v2142 = vperm.slane %v2128, 1
    %v2143 = vperm.slane %v2129, 1
    %v2144 = vmul.f32 %v2121, %v2137
    %v2145 = vmul.f32 %v2121, %v2138
    %v2146 = vmul.f32 %v2121, %v2139
    %v2147 = vmul.f32 %v2121, %v2140
    %v2148 = vmul.f32 %v2121, %v2141
    %v2149 = vmul.f32 %v2121, %v2142
    %v2150 = vmul.f32 %v2121, %v2143
    %2158 = vrot.lane.b32.xlu0 %v2144, 127
    %v2159 = vpop.permute.xlu0 %2158
    %2160 = vrot.lane.b32.xlu0 %v2145, 127
    %v2161 = vpop.permute.xlu0 %2160
    %2162 = vrot.lane.b32.xlu0 %v2146, 127
    %v2163 = vpop.permute.xlu0 %2162
    %2164 = vrot.lane.b32.xlu0 %v2147, 127
    %v2165 = vpop.permute.xlu0 %2164
    %2166 = vrot.lane.b32.xlu0 %v2148, 127
    %v2167 = vpop.permute.xlu0 %2166
    %2168 = vrot.lane.b32.xlu0 %v2149, 127
    %v2169 = vpop.permute.xlu0 %2168
    %2170 = vrot.lane.b32.xlu0 %v2150, 127
    %v2171 = vpop.permute.xlu0 %2170
    %v2172 = vsel %vm250, %v2159, %v2161
    %v2173 = vsel %vm250, %v2161, %v2163
    %v2174 = vsel %vm250, %v2163, %v2165
    %v2175 = vsel %vm250, %v2165, %v2167
    %v2176 = vsel %vm250, %v2167, %v2169
    %v2177 = vsel %vm250, %v2169, %v2171
    %v2184 = vadd.f32 %v2113, %v2172
    %v2185 = vadd.f32 %v2114, %v2173
    %v2186 = vadd.f32 %v2115, %v2174
    %v2187 = vadd.f32 %v2116, %v2175
    %v2188 = vadd.f32 %v2117, %v2176
    %v2189 = vadd.f32 %v2118, %v2177
    %2190 = vset.pattern.permute.xlu0 6
    %2191 = vperm.xlu0 %2190, %v1896
    %v2192 = vpop.permute.xlu0 %2191
    %v2194 = vperm.slane %v2040, 2
    %v2195 = vperm.slane %v2040, 6
    %v2196 = vperm.slane %v2041, 2
    %v2197 = vperm.slane %v2041, 6
    %v2198 = vperm.slane %v2042, 2
    %v2199 = vperm.slane %v2042, 6
    %v2200 = vperm.slane %v2043, 2
    %v2208 = vperm.slane %v2194, 2
    %v2209 = vperm.slane %v2195, 2
    %v2210 = vperm.slane %v2196, 2
    %v2211 = vperm.slane %v2197, 2
    %v2212 = vperm.slane %v2198, 2
    %v2213 = vperm.slane %v2199, 2
    %v2214 = vperm.slane %v2200, 2
    %v2215 = vmul.f32 %v2192, %v2208
    %v2216 = vmul.f32 %v2192, %v2209
    %v2217 = vmul.f32 %v2192, %v2210
    %v2218 = vmul.f32 %v2192, %v2211
    %v2219 = vmul.f32 %v2192, %v2212
    %v2220 = vmul.f32 %v2192, %v2213
    %v2221 = vmul.f32 %v2192, %v2214
    %2229 = vrot.lane.b32.xlu0 %v2215, 127
    %v2230 = vpop.permute.xlu0 %2229
    %2231 = vrot.lane.b32.xlu0 %v2216, 127
    %v2232 = vpop.permute.xlu0 %2231
    %2233 = vrot.lane.b32.xlu0 %v2217, 127
    %v2234 = vpop.permute.xlu0 %2233
    %2235 = vrot.lane.b32.xlu0 %v2218, 127
    %v2236 = vpop.permute.xlu0 %2235
    %2237 = vrot.lane.b32.xlu0 %v2219, 127
    %v2238 = vpop.permute.xlu0 %2237
    %2239 = vrot.lane.b32.xlu0 %v2220, 127
    %v2240 = vpop.permute.xlu0 %2239
    %2241 = vrot.lane.b32.xlu0 %v2221, 127
    %v2242 = vpop.permute.xlu0 %2241
    %v2243 = vsel %vm250, %v2230, %v2232
    %v2244 = vsel %vm250, %v2232, %v2234
    %v2245 = vsel %vm250, %v2234, %v2236
    %v2246 = vsel %vm250, %v2236, %v2238
    %v2247 = vsel %vm250, %v2238, %v2240
    %v2248 = vsel %vm250, %v2240, %v2242
    %v2255 = vadd.f32 %v2184, %v2243
    %v2256 = vadd.f32 %v2185, %v2244
    %v2257 = vadd.f32 %v2186, %v2245
    %v2258 = vadd.f32 %v2187, %v2246
    %v2259 = vadd.f32 %v2188, %v2247
    %v2260 = vadd.f32 %v2189, %v2248
    %2261 = vset.pattern.permute.xlu0 7
    %2262 = vperm.xlu0 %2261, %v1896
    %v2263 = vpop.permute.xlu0 %2262
    %v2265 = vperm.slane %v2040, 3
    %v2266 = vperm.slane %v2040, 7
    %v2267 = vperm.slane %v2041, 3
    %v2268 = vperm.slane %v2041, 7
    %v2269 = vperm.slane %v2042, 3
    %v2270 = vperm.slane %v2042, 7
    %v2271 = vperm.slane %v2043, 3
    %v2279 = vperm.slane %v2265, 3
    %v2280 = vperm.slane %v2266, 3
    %v2281 = vperm.slane %v2267, 3
    %v2282 = vperm.slane %v2268, 3
    %v2283 = vperm.slane %v2269, 3
    %v2284 = vperm.slane %v2270, 3
    %v2285 = vperm.slane %v2271, 3
    %v2286 = vmul.f32 %v2263, %v2279
    %v2287 = vmul.f32 %v2263, %v2280
    %v2288 = vmul.f32 %v2263, %v2281
    %v2289 = vmul.f32 %v2263, %v2282
    %v2290 = vmul.f32 %v2263, %v2283
    %v2291 = vmul.f32 %v2263, %v2284
    %v2292 = vmul.f32 %v2263, %v2285
    %2300 = vrot.lane.b32.xlu0 %v2286, 127
    %v2301 = vpop.permute.xlu0 %2300
    %2302 = vrot.lane.b32.xlu0 %v2287, 127
    %v2303 = vpop.permute.xlu0 %2302
    %2304 = vrot.lane.b32.xlu0 %v2288, 127
    %v2305 = vpop.permute.xlu0 %2304
    %2306 = vrot.lane.b32.xlu0 %v2289, 127
    %v2307 = vpop.permute.xlu0 %2306
    %2308 = vrot.lane.b32.xlu0 %v2290, 127
    %v2309 = vpop.permute.xlu0 %2308
    %2310 = vrot.lane.b32.xlu0 %v2291, 127
    %v2311 = vpop.permute.xlu0 %2310
    %2312 = vrot.lane.b32.xlu0 %v2292, 127
    %v2313 = vpop.permute.xlu0 %2312
    %v2314 = vsel %vm250, %v2301, %v2303
    %v2315 = vsel %vm250, %v2303, %v2305
    %v2316 = vsel %vm250, %v2305, %v2307
    %v2317 = vsel %vm250, %v2307, %v2309
    %v2318 = vsel %vm250, %v2309, %v2311
    %v2319 = vsel %vm250, %v2311, %v2313
    %v2326 = vadd.f32 %v2255, %v2314
    %v2327 = vadd.f32 %v2256, %v2315
    %v2328 = vadd.f32 %v2257, %v2316
    %v2329 = vadd.f32 %v2258, %v2317
    %v2330 = vadd.f32 %v2259, %v2318
    %v2331 = vadd.f32 %v2260, %v2319
    %2332 = vset.pattern.permute.xlu0 8
    %2333 = vperm.xlu0 %2332, %v1896
    %v2334 = vpop.permute.xlu0 %2333
    %v2336 = vmul.f32 %v2334, %v2066
    %v2337 = vmul.f32 %v2334, %v2067
    %v2338 = vmul.f32 %v2334, %v2068
    %v2339 = vmul.f32 %v2334, %v2069
    %v2340 = vmul.f32 %v2334, %v2070
    %v2341 = vmul.f32 %v2334, %v2071
    %v2342 = vmul.f32 %v2334, %v2072
    %2350 = vrot.lane.b32.xlu0 %v2336, 126
    %v2351 = vpop.permute.xlu0 %2350
    %2352 = vrot.lane.b32.xlu0 %v2337, 126
    %v2353 = vpop.permute.xlu0 %2352
    %2354 = vrot.lane.b32.xlu0 %v2338, 126
    %v2355 = vpop.permute.xlu0 %2354
    %2356 = vrot.lane.b32.xlu0 %v2339, 126
    %v2357 = vpop.permute.xlu0 %2356
    %2358 = vrot.lane.b32.xlu0 %v2340, 126
    %v2359 = vpop.permute.xlu0 %2358
    %2360 = vrot.lane.b32.xlu0 %v2341, 126
    %v2361 = vpop.permute.xlu0 %2360
    %2362 = vrot.lane.b32.xlu0 %v2342, 126
    %v2363 = vpop.permute.xlu0 %2362
    %v2364 = vsel %vm514, %v2351, %v2353
    %v2365 = vsel %vm514, %v2353, %v2355
    %v2366 = vsel %vm514, %v2355, %v2357
    %v2367 = vsel %vm514, %v2357, %v2359
    %v2368 = vsel %vm514, %v2359, %v2361
    %v2369 = vsel %vm514, %v2361, %v2363
    %v2376 = vadd.f32 %v2326, %v2364
    %v2377 = vadd.f32 %v2327, %v2365
    %v2378 = vadd.f32 %v2328, %v2366
    %v2379 = vadd.f32 %v2329, %v2367
    %v2380 = vadd.f32 %v2330, %v2368
    %v2381 = vadd.f32 %v2331, %v2369
    %2382 = vset.pattern.permute.xlu0 9
    %2383 = vperm.xlu0 %2382, %v1896
    %v2384 = vpop.permute.xlu0 %2383
    %v2386 = vmul.f32 %v2384, %v2137
    %v2387 = vmul.f32 %v2384, %v2138
    %v2388 = vmul.f32 %v2384, %v2139
    %v2389 = vmul.f32 %v2384, %v2140
    %v2390 = vmul.f32 %v2384, %v2141
    %v2391 = vmul.f32 %v2384, %v2142
    %v2392 = vmul.f32 %v2384, %v2143
    %2400 = vrot.lane.b32.xlu0 %v2386, 126
    %v2401 = vpop.permute.xlu0 %2400
    %2402 = vrot.lane.b32.xlu0 %v2387, 126
    %v2403 = vpop.permute.xlu0 %2402
    %2404 = vrot.lane.b32.xlu0 %v2388, 126
    %v2405 = vpop.permute.xlu0 %2404
    %2406 = vrot.lane.b32.xlu0 %v2389, 126
    %v2407 = vpop.permute.xlu0 %2406
    %2408 = vrot.lane.b32.xlu0 %v2390, 126
    %v2409 = vpop.permute.xlu0 %2408
    %2410 = vrot.lane.b32.xlu0 %v2391, 126
    %v2411 = vpop.permute.xlu0 %2410
    %2412 = vrot.lane.b32.xlu0 %v2392, 126
    %v2413 = vpop.permute.xlu0 %2412
    %v2414 = vsel %vm514, %v2401, %v2403
    %v2415 = vsel %vm514, %v2403, %v2405
    %v2416 = vsel %vm514, %v2405, %v2407
    %v2417 = vsel %vm514, %v2407, %v2409
    %v2418 = vsel %vm514, %v2409, %v2411
    %v2419 = vsel %vm514, %v2411, %v2413
    %v2426 = vadd.f32 %v2376, %v2414
    %v2427 = vadd.f32 %v2377, %v2415
    %v2428 = vadd.f32 %v2378, %v2416
    %v2429 = vadd.f32 %v2379, %v2417
    %v2430 = vadd.f32 %v2380, %v2418
    %v2431 = vadd.f32 %v2381, %v2419
    %2432 = vset.pattern.permute.xlu0 10
    %2433 = vperm.xlu0 %2432, %v1896
    %v2434 = vpop.permute.xlu0 %2433
    %v2436 = vmul.f32 %v2434, %v2208
    %v2437 = vmul.f32 %v2434, %v2209
    %v2438 = vmul.f32 %v2434, %v2210
    %v2439 = vmul.f32 %v2434, %v2211
    %v2440 = vmul.f32 %v2434, %v2212
    %v2441 = vmul.f32 %v2434, %v2213
    %v2442 = vmul.f32 %v2434, %v2214
    %2450 = vrot.lane.b32.xlu0 %v2436, 126
    %v2451 = vpop.permute.xlu0 %2450
    %2452 = vrot.lane.b32.xlu0 %v2437, 126
    %v2453 = vpop.permute.xlu0 %2452
    %2454 = vrot.lane.b32.xlu0 %v2438, 126
    %v2455 = vpop.permute.xlu0 %2454
    %2456 = vrot.lane.b32.xlu0 %v2439, 126
    %v2457 = vpop.permute.xlu0 %2456
    %2458 = vrot.lane.b32.xlu0 %v2440, 126
    %v2459 = vpop.permute.xlu0 %2458
    %2460 = vrot.lane.b32.xlu0 %v2441, 126
    %v2461 = vpop.permute.xlu0 %2460
    %2462 = vrot.lane.b32.xlu0 %v2442, 126
    %v2463 = vpop.permute.xlu0 %2462
    %v2464 = vsel %vm514, %v2451, %v2453
    %v2465 = vsel %vm514, %v2453, %v2455
    %v2466 = vsel %vm514, %v2455, %v2457
    %v2467 = vsel %vm514, %v2457, %v2459
    %v2468 = vsel %vm514, %v2459, %v2461
    %v2469 = vsel %vm514, %v2461, %v2463
    %v2476 = vadd.f32 %v2426, %v2464
    %v2477 = vadd.f32 %v2427, %v2465
    %v2478 = vadd.f32 %v2428, %v2466
    %v2479 = vadd.f32 %v2429, %v2467
    %v2480 = vadd.f32 %v2430, %v2468
    %v2481 = vadd.f32 %v2431, %v2469
    %2482 = vset.pattern.permute.xlu0 11
    %2483 = vperm.xlu0 %2482, %v1896
    %v2484 = vpop.permute.xlu0 %2483
    %v2486 = vmul.f32 %v2484, %v2279
    %v2487 = vmul.f32 %v2484, %v2280
    %v2488 = vmul.f32 %v2484, %v2281
    %v2489 = vmul.f32 %v2484, %v2282
    %v2490 = vmul.f32 %v2484, %v2283
    %v2491 = vmul.f32 %v2484, %v2284
    %v2492 = vmul.f32 %v2484, %v2285
    %2500 = vrot.lane.b32.xlu0 %v2486, 126
    %v2501 = vpop.permute.xlu0 %2500
    %2502 = vrot.lane.b32.xlu0 %v2487, 126
    %v2503 = vpop.permute.xlu0 %2502
    %2504 = vrot.lane.b32.xlu0 %v2488, 126
    %v2505 = vpop.permute.xlu0 %2504
    %2506 = vrot.lane.b32.xlu0 %v2489, 126
    %v2507 = vpop.permute.xlu0 %2506
    %2508 = vrot.lane.b32.xlu0 %v2490, 126
    %v2509 = vpop.permute.xlu0 %2508
    %2510 = vrot.lane.b32.xlu0 %v2491, 126
    %v2511 = vpop.permute.xlu0 %2510
    %2512 = vrot.lane.b32.xlu0 %v2492, 126
    %v2513 = vpop.permute.xlu0 %2512
    %v2514 = vsel %vm514, %v2501, %v2503
    %v2515 = vsel %vm514, %v2503, %v2505
    %v2516 = vsel %vm514, %v2505, %v2507
    %v2517 = vsel %vm514, %v2507, %v2509
    %v2518 = vsel %vm514, %v2509, %v2511
    %v2519 = vsel %vm514, %v2511, %v2513
    %v2526 = vadd.f32 %v2476, %v2514
    %v2527 = vadd.f32 %v2477, %v2515
    %v2528 = vadd.f32 %v2478, %v2516
    %v2529 = vadd.f32 %v2479, %v2517
    %v2530 = vadd.f32 %v2480, %v2518
    %v2531 = vadd.f32 %v2481, %v2519
    %2532 = vset.pattern.permute.xlu0 12
    %2533 = vperm.xlu0 %2532, %v1896
    %v2534 = vpop.permute.xlu0 %2533
    %v2536 = vmul.f32 %v2534, %v2066
    %v2537 = vmul.f32 %v2534, %v2067
    %v2538 = vmul.f32 %v2534, %v2068
    %v2539 = vmul.f32 %v2534, %v2069
    %v2540 = vmul.f32 %v2534, %v2070
    %v2541 = vmul.f32 %v2534, %v2071
    %v2542 = vmul.f32 %v2534, %v2072
    %v2543 = vadd.f32 %v2536, 0.0
    %v2544 = vadd.f32 %v2537, 0.0
    %v2545 = vadd.f32 %v2538, 0.0
    %v2546 = vadd.f32 %v2539, 0.0
    %v2547 = vadd.f32 %v2540, 0.0
    %v2548 = vadd.f32 %v2541, 0.0
    %v2549 = vadd.f32 %v2542, 0.0
    %2550 = vset.pattern.permute.xlu0 13
    %2551 = vperm.xlu0 %2550, %v1896
    %v2552 = vpop.permute.xlu0 %2551
    %v2554 = vmul.f32 %v2552, %v2137
    %v2555 = vmul.f32 %v2552, %v2138
    %v2556 = vmul.f32 %v2552, %v2139
    %v2557 = vmul.f32 %v2552, %v2140
    %v2558 = vmul.f32 %v2552, %v2141
    %v2559 = vmul.f32 %v2552, %v2142
    %v2560 = vmul.f32 %v2552, %v2143
    %v2561 = vadd.f32 %v2543, %v2554
    %v2562 = vadd.f32 %v2544, %v2555
    %v2563 = vadd.f32 %v2545, %v2556
    %v2564 = vadd.f32 %v2546, %v2557
    %v2565 = vadd.f32 %v2547, %v2558
    %v2566 = vadd.f32 %v2548, %v2559
    %v2567 = vadd.f32 %v2549, %v2560
    %2568 = vset.pattern.permute.xlu0 14
    %2569 = vperm.xlu0 %2568, %v1896
    %v2570 = vpop.permute.xlu0 %2569
    %v2572 = vmul.f32 %v2570, %v2208
    %v2573 = vmul.f32 %v2570, %v2209
    %v2574 = vmul.f32 %v2570, %v2210
    %v2575 = vmul.f32 %v2570, %v2211
    %v2576 = vmul.f32 %v2570, %v2212
    %v2577 = vmul.f32 %v2570, %v2213
    %v2578 = vmul.f32 %v2570, %v2214
    %v2579 = vadd.f32 %v2561, %v2572
    %v2580 = vadd.f32 %v2562, %v2573
    %v2581 = vadd.f32 %v2563, %v2574
    %v2582 = vadd.f32 %v2564, %v2575
    %v2583 = vadd.f32 %v2565, %v2576
    %v2584 = vadd.f32 %v2566, %v2577
    %v2585 = vadd.f32 %v2567, %v2578
    %2586 = vset.pattern.permute.xlu0 15
    %2587 = vperm.xlu0 %2586, %v1896
    %v2588 = vpop.permute.xlu0 %2587
    %v2590 = vmul.f32 %v2588, %v2279
    %v2591 = vmul.f32 %v2588, %v2280
    %v2592 = vmul.f32 %v2588, %v2281
    %v2593 = vmul.f32 %v2588, %v2282
    %v2594 = vmul.f32 %v2588, %v2283
    %v2595 = vmul.f32 %v2588, %v2284
    %v2596 = vmul.f32 %v2588, %v2285
    %v2597 = vadd.f32 %v2579, %v2590
    %v2598 = vadd.f32 %v2580, %v2591
    %v2599 = vadd.f32 %v2581, %v2592
    %v2600 = vadd.f32 %v2582, %v2593
    %v2601 = vadd.f32 %v2583, %v2594
    %v2602 = vadd.f32 %v2584, %v2595
    %v2603 = vadd.f32 %v2585, %v2596
    %2604 = vset.pattern.permute.xlu0 16
    %2605 = vperm.xlu0 %2604, %v1896
    %v2606 = vpop.permute.xlu0 %2605
    %v2608 = vmul.f32 %v2606, %v2066
    %v2609 = vmul.f32 %v2606, %v2067
    %v2610 = vmul.f32 %v2606, %v2068
    %v2611 = vmul.f32 %v2606, %v2069
    %v2612 = vmul.f32 %v2606, %v2070
    %v2613 = vmul.f32 %v2606, %v2071
    %v2614 = vmul.f32 %v2606, %v2072
    %2622 = vrot.lane.b32.xlu0 %v2608, 127
    %v2623 = vpop.permute.xlu0 %2622
    %2624 = vrot.lane.b32.xlu0 %v2609, 127
    %v2625 = vpop.permute.xlu0 %2624
    %2626 = vrot.lane.b32.xlu0 %v2610, 127
    %v2627 = vpop.permute.xlu0 %2626
    %2628 = vrot.lane.b32.xlu0 %v2611, 127
    %v2629 = vpop.permute.xlu0 %2628
    %2630 = vrot.lane.b32.xlu0 %v2612, 127
    %v2631 = vpop.permute.xlu0 %2630
    %2632 = vrot.lane.b32.xlu0 %v2613, 127
    %v2633 = vpop.permute.xlu0 %2632
    %2634 = vrot.lane.b32.xlu0 %v2614, 127
    %v2635 = vpop.permute.xlu0 %2634
    %v2636 = vsel %vm250, %v2623, %v2625
    %v2637 = vsel %vm250, %v2625, %v2627
    %v2638 = vsel %vm250, %v2627, %v2629
    %v2639 = vsel %vm250, %v2629, %v2631
    %v2640 = vsel %vm250, %v2631, %v2633
    %v2641 = vsel %vm250, %v2633, %v2635
    %v2649 = vadd.f32 %v2597, %v2636
    %v2650 = vadd.f32 %v2598, %v2637
    %v2651 = vadd.f32 %v2599, %v2638
    %v2652 = vadd.f32 %v2600, %v2639
    %v2653 = vadd.f32 %v2601, %v2640
    %v2654 = vadd.f32 %v2602, %v2641
    %v2655 = vadd.f32 %v2603, %v2635
    %2656 = vset.pattern.permute.xlu0 17
    %2657 = vperm.xlu0 %2656, %v1896
    %v2658 = vpop.permute.xlu0 %2657
    %v2660 = vmul.f32 %v2658, %v2137
    %v2661 = vmul.f32 %v2658, %v2138
    %v2662 = vmul.f32 %v2658, %v2139
    %v2663 = vmul.f32 %v2658, %v2140
    %v2664 = vmul.f32 %v2658, %v2141
    %v2665 = vmul.f32 %v2658, %v2142
    %v2666 = vmul.f32 %v2658, %v2143
    %2674 = vrot.lane.b32.xlu0 %v2660, 127
    %v2675 = vpop.permute.xlu0 %2674
    %2676 = vrot.lane.b32.xlu0 %v2661, 127
    %v2677 = vpop.permute.xlu0 %2676
    %2678 = vrot.lane.b32.xlu0 %v2662, 127
    %v2679 = vpop.permute.xlu0 %2678
    %2680 = vrot.lane.b32.xlu0 %v2663, 127
    %v2681 = vpop.permute.xlu0 %2680
    %2682 = vrot.lane.b32.xlu0 %v2664, 127
    %v2683 = vpop.permute.xlu0 %2682
    %2684 = vrot.lane.b32.xlu0 %v2665, 127
    %v2685 = vpop.permute.xlu0 %2684
    %2686 = vrot.lane.b32.xlu0 %v2666, 127
    %v2687 = vpop.permute.xlu0 %2686
    %v2688 = vsel %vm250, %v2675, %v2677
    %v2689 = vsel %vm250, %v2677, %v2679
    %v2690 = vsel %vm250, %v2679, %v2681
    %v2691 = vsel %vm250, %v2681, %v2683
    %v2692 = vsel %vm250, %v2683, %v2685
    %v2693 = vsel %vm250, %v2685, %v2687
    %v2701 = vadd.f32 %v2649, %v2688
    %v2702 = vadd.f32 %v2650, %v2689
    %v2703 = vadd.f32 %v2651, %v2690
    %v2704 = vadd.f32 %v2652, %v2691
    %v2705 = vadd.f32 %v2653, %v2692
    %v2706 = vadd.f32 %v2654, %v2693
    %v2707 = vadd.f32 %v2655, %v2687
    %2708 = vset.pattern.permute.xlu0 18
    %2709 = vperm.xlu0 %2708, %v1896
    %v2710 = vpop.permute.xlu0 %2709
    %v2712 = vmul.f32 %v2710, %v2208
    %v2713 = vmul.f32 %v2710, %v2209
    %v2714 = vmul.f32 %v2710, %v2210
    %v2715 = vmul.f32 %v2710, %v2211
    %v2716 = vmul.f32 %v2710, %v2212
    %v2717 = vmul.f32 %v2710, %v2213
    %v2718 = vmul.f32 %v2710, %v2214
    %2726 = vrot.lane.b32.xlu0 %v2712, 127
    %v2727 = vpop.permute.xlu0 %2726
    %2728 = vrot.lane.b32.xlu0 %v2713, 127
    %v2729 = vpop.permute.xlu0 %2728
    %2730 = vrot.lane.b32.xlu0 %v2714, 127
    %v2731 = vpop.permute.xlu0 %2730
    %2732 = vrot.lane.b32.xlu0 %v2715, 127
    %v2733 = vpop.permute.xlu0 %2732
    %2734 = vrot.lane.b32.xlu0 %v2716, 127
    %v2735 = vpop.permute.xlu0 %2734
    %2736 = vrot.lane.b32.xlu0 %v2717, 127
    %v2737 = vpop.permute.xlu0 %2736
    %2738 = vrot.lane.b32.xlu0 %v2718, 127
    %v2739 = vpop.permute.xlu0 %2738
    %v2740 = vsel %vm250, %v2727, %v2729
    %v2741 = vsel %vm250, %v2729, %v2731
    %v2742 = vsel %vm250, %v2731, %v2733
    %v2743 = vsel %vm250, %v2733, %v2735
    %v2744 = vsel %vm250, %v2735, %v2737
    %v2745 = vsel %vm250, %v2737, %v2739
    %v2753 = vadd.f32 %v2701, %v2740
    %v2754 = vadd.f32 %v2702, %v2741
    %v2755 = vadd.f32 %v2703, %v2742
    %v2756 = vadd.f32 %v2704, %v2743
    %v2757 = vadd.f32 %v2705, %v2744
    %v2758 = vadd.f32 %v2706, %v2745
    %v2759 = vadd.f32 %v2707, %v2739
    %2760 = vset.pattern.permute.xlu0 19
    %2761 = vperm.xlu0 %2760, %v1896
    %v2762 = vpop.permute.xlu0 %2761
    %v2764 = vmul.f32 %v2762, %v2279
    %v2765 = vmul.f32 %v2762, %v2280
    %v2766 = vmul.f32 %v2762, %v2281
    %v2767 = vmul.f32 %v2762, %v2282
    %v2768 = vmul.f32 %v2762, %v2283
    %v2769 = vmul.f32 %v2762, %v2284
    %v2770 = vmul.f32 %v2762, %v2285
    %2778 = vrot.lane.b32.xlu0 %v2764, 127
    %v2779 = vpop.permute.xlu0 %2778
    %2780 = vrot.lane.b32.xlu0 %v2765, 127
    %v2781 = vpop.permute.xlu0 %2780
    %2782 = vrot.lane.b32.xlu0 %v2766, 127
    %v2783 = vpop.permute.xlu0 %2782
    %2784 = vrot.lane.b32.xlu0 %v2767, 127
    %v2785 = vpop.permute.xlu0 %2784
    %2786 = vrot.lane.b32.xlu0 %v2768, 127
    %v2787 = vpop.permute.xlu0 %2786
    %2788 = vrot.lane.b32.xlu0 %v2769, 127
    %v2789 = vpop.permute.xlu0 %2788
    %2790 = vrot.lane.b32.xlu0 %v2770, 127
    %v2791 = vpop.permute.xlu0 %2790
    %v2792 = vsel %vm250, %v2779, %v2781
    %v2793 = vsel %vm250, %v2781, %v2783
    %v2794 = vsel %vm250, %v2783, %v2785
    %v2795 = vsel %vm250, %v2785, %v2787
    %v2796 = vsel %vm250, %v2787, %v2789
    %v2797 = vsel %vm250, %v2789, %v2791
    %v2805 = vadd.f32 %v2753, %v2792
    %v2806 = vadd.f32 %v2754, %v2793
    %v2807 = vadd.f32 %v2755, %v2794
    %v2808 = vadd.f32 %v2756, %v2795
    %v2809 = vadd.f32 %v2757, %v2796
    %v2810 = vadd.f32 %v2758, %v2797
    %v2811 = vadd.f32 %v2759, %v2791
    %2812 = vset.pattern.permute.xlu0 20
    %2813 = vperm.xlu0 %2812, %v1896
    %v2814 = vpop.permute.xlu0 %2813
    %v2816 = vmul.f32 %v2814, %v2066
    %v2817 = vmul.f32 %v2814, %v2067
    %v2818 = vmul.f32 %v2814, %v2068
    %v2819 = vmul.f32 %v2814, %v2069
    %v2820 = vmul.f32 %v2814, %v2070
    %v2821 = vmul.f32 %v2814, %v2071
    %v2822 = vmul.f32 %v2814, %v2072
    %2830 = vrot.lane.b32.xlu0 %v2816, 126
    %v2831 = vpop.permute.xlu0 %2830
    %2832 = vrot.lane.b32.xlu0 %v2817, 126
    %v2833 = vpop.permute.xlu0 %2832
    %2834 = vrot.lane.b32.xlu0 %v2818, 126
    %v2835 = vpop.permute.xlu0 %2834
    %2836 = vrot.lane.b32.xlu0 %v2819, 126
    %v2837 = vpop.permute.xlu0 %2836
    %2838 = vrot.lane.b32.xlu0 %v2820, 126
    %v2839 = vpop.permute.xlu0 %2838
    %2840 = vrot.lane.b32.xlu0 %v2821, 126
    %v2841 = vpop.permute.xlu0 %2840
    %2842 = vrot.lane.b32.xlu0 %v2822, 126
    %v2843 = vpop.permute.xlu0 %2842
    %v2844 = vsel %vm514, %v2831, %v2833
    %v2845 = vsel %vm514, %v2833, %v2835
    %v2846 = vsel %vm514, %v2835, %v2837
    %v2847 = vsel %vm514, %v2837, %v2839
    %v2848 = vsel %vm514, %v2839, %v2841
    %v2849 = vsel %vm514, %v2841, %v2843
    %v2857 = vadd.f32 %v2805, %v2844
    %v2858 = vadd.f32 %v2806, %v2845
    %v2859 = vadd.f32 %v2807, %v2846
    %v2860 = vadd.f32 %v2808, %v2847
    %v2861 = vadd.f32 %v2809, %v2848
    %v2862 = vadd.f32 %v2810, %v2849
    %v2863 = vadd.f32 %v2811, %v2843
    %2864 = vset.pattern.permute.xlu0 21
    %2865 = vperm.xlu0 %2864, %v1896
    %v2866 = vpop.permute.xlu0 %2865
    %v2868 = vmul.f32 %v2866, %v2137
    %v2869 = vmul.f32 %v2866, %v2138
    %v2870 = vmul.f32 %v2866, %v2139
    %v2871 = vmul.f32 %v2866, %v2140
    %v2872 = vmul.f32 %v2866, %v2141
    %v2873 = vmul.f32 %v2866, %v2142
    %v2874 = vmul.f32 %v2866, %v2143
    %2882 = vrot.lane.b32.xlu0 %v2868, 126
    %v2883 = vpop.permute.xlu0 %2882
    %2884 = vrot.lane.b32.xlu0 %v2869, 126
    %v2885 = vpop.permute.xlu0 %2884
    %2886 = vrot.lane.b32.xlu0 %v2870, 126
    %v2887 = vpop.permute.xlu0 %2886
    %2888 = vrot.lane.b32.xlu0 %v2871, 126
    %v2889 = vpop.permute.xlu0 %2888
    %2890 = vrot.lane.b32.xlu0 %v2872, 126
    %v2891 = vpop.permute.xlu0 %2890
    %2892 = vrot.lane.b32.xlu0 %v2873, 126
    %v2893 = vpop.permute.xlu0 %2892
    %2894 = vrot.lane.b32.xlu0 %v2874, 126
    %v2895 = vpop.permute.xlu0 %2894
    %v2896 = vsel %vm514, %v2883, %v2885
    %v2897 = vsel %vm514, %v2885, %v2887
    %v2898 = vsel %vm514, %v2887, %v2889
    %v2899 = vsel %vm514, %v2889, %v2891
    %v2900 = vsel %vm514, %v2891, %v2893
    %v2901 = vsel %vm514, %v2893, %v2895
    %v2909 = vadd.f32 %v2857, %v2896
    %v2910 = vadd.f32 %v2858, %v2897
    %v2911 = vadd.f32 %v2859, %v2898
    %v2912 = vadd.f32 %v2860, %v2899
    %v2913 = vadd.f32 %v2861, %v2900
    %v2914 = vadd.f32 %v2862, %v2901
    %v2915 = vadd.f32 %v2863, %v2895
    %2916 = vset.pattern.permute.xlu0 22
    %2917 = vperm.xlu0 %2916, %v1896
    %v2918 = vpop.permute.xlu0 %2917
    %v2920 = vmul.f32 %v2918, %v2208
    %v2921 = vmul.f32 %v2918, %v2209
    %v2922 = vmul.f32 %v2918, %v2210
    %v2923 = vmul.f32 %v2918, %v2211
    %v2924 = vmul.f32 %v2918, %v2212
    %v2925 = vmul.f32 %v2918, %v2213
    %v2926 = vmul.f32 %v2918, %v2214
    %2934 = vrot.lane.b32.xlu0 %v2920, 126
    %v2935 = vpop.permute.xlu0 %2934
    %2936 = vrot.lane.b32.xlu0 %v2921, 126
    %v2937 = vpop.permute.xlu0 %2936
    %2938 = vrot.lane.b32.xlu0 %v2922, 126
    %v2939 = vpop.permute.xlu0 %2938
    %2940 = vrot.lane.b32.xlu0 %v2923, 126
    %v2941 = vpop.permute.xlu0 %2940
    %2942 = vrot.lane.b32.xlu0 %v2924, 126
    %v2943 = vpop.permute.xlu0 %2942
    %2944 = vrot.lane.b32.xlu0 %v2925, 126
    %v2945 = vpop.permute.xlu0 %2944
    %2946 = vrot.lane.b32.xlu0 %v2926, 126
    %v2947 = vpop.permute.xlu0 %2946
    %v2948 = vsel %vm514, %v2935, %v2937
    %v2949 = vsel %vm514, %v2937, %v2939
    %v2950 = vsel %vm514, %v2939, %v2941
    %v2951 = vsel %vm514, %v2941, %v2943
    %v2952 = vsel %vm514, %v2943, %v2945
    %v2953 = vsel %vm514, %v2945, %v2947
    %v2961 = vadd.f32 %v2909, %v2948
    %v2962 = vadd.f32 %v2910, %v2949
    %v2963 = vadd.f32 %v2911, %v2950
    %v2964 = vadd.f32 %v2912, %v2951
    %v2965 = vadd.f32 %v2913, %v2952
    %v2966 = vadd.f32 %v2914, %v2953
    %v2967 = vadd.f32 %v2915, %v2947
    %2968 = vset.pattern.permute.xlu0 23
    %2969 = vperm.xlu0 %2968, %v1896
    %v2970 = vpop.permute.xlu0 %2969
    %v2972 = vmul.f32 %v2970, %v2279
    %v2973 = vmul.f32 %v2970, %v2280
    %v2974 = vmul.f32 %v2970, %v2281
    %v2975 = vmul.f32 %v2970, %v2282
    %v2976 = vmul.f32 %v2970, %v2283
    %v2977 = vmul.f32 %v2970, %v2284
    %v2978 = vmul.f32 %v2970, %v2285
    %2986 = vrot.lane.b32.xlu0 %v2972, 126
    %v2987 = vpop.permute.xlu0 %2986
    %2988 = vrot.lane.b32.xlu0 %v2973, 126
    %v2989 = vpop.permute.xlu0 %2988
    %2990 = vrot.lane.b32.xlu0 %v2974, 126
    %v2991 = vpop.permute.xlu0 %2990
    %2992 = vrot.lane.b32.xlu0 %v2975, 126
    %v2993 = vpop.permute.xlu0 %2992
    %2994 = vrot.lane.b32.xlu0 %v2976, 126
    %v2995 = vpop.permute.xlu0 %2994
    %2996 = vrot.lane.b32.xlu0 %v2977, 126
    %v2997 = vpop.permute.xlu0 %2996
    %2998 = vrot.lane.b32.xlu0 %v2978, 126
    %v2999 = vpop.permute.xlu0 %2998
    %v3000 = vsel %vm514, %v2987, %v2989
    %v3001 = vsel %vm514, %v2989, %v2991
    %v3002 = vsel %vm514, %v2991, %v2993
    %v3003 = vsel %vm514, %v2993, %v2995
    %v3004 = vsel %vm514, %v2995, %v2997
    %v3005 = vsel %vm514, %v2997, %v2999
    %v3013 = vadd.f32 %v2961, %v3000
    %v3014 = vadd.f32 %v2962, %v3001
    %v3015 = vadd.f32 %v2963, %v3002
    %v3016 = vadd.f32 %v2964, %v3003
    %v3017 = vadd.f32 %v2965, %v3004
    %v3018 = vadd.f32 %v2966, %v3005
    %v3019 = vadd.f32 %v2967, %v2999
    %3020 = vset.pattern.permute.xlu0 24
    %3021 = vperm.xlu0 %3020, %v1896
    %v3022 = vpop.permute.xlu0 %3021
    %v3024 = vmul.f32 %v3022, %v2066
    %v3025 = vmul.f32 %v3022, %v2067
    %v3026 = vmul.f32 %v3022, %v2068
    %v3027 = vmul.f32 %v3022, %v2069
    %v3028 = vmul.f32 %v3022, %v2070
    %v3029 = vmul.f32 %v3022, %v2071
    %v3030 = vmul.f32 %v3022, %v2072
    %v3031 = vadd.f32 %v3024, 0.0
    %v3032 = vadd.f32 %v3025, 0.0
    %v3033 = vadd.f32 %v3026, 0.0
    %v3034 = vadd.f32 %v3027, 0.0
    %v3035 = vadd.f32 %v3028, 0.0
    %v3036 = vadd.f32 %v3029, 0.0
    %v3037 = vadd.f32 %v3030, 0.0
    %3038 = vset.pattern.permute.xlu0 25
    %3039 = vperm.xlu0 %3038, %v1896
    %v3040 = vpop.permute.xlu0 %3039
    %v3042 = vmul.f32 %v3040, %v2137
    %v3043 = vmul.f32 %v3040, %v2138
    %v3044 = vmul.f32 %v3040, %v2139
    %v3045 = vmul.f32 %v3040, %v2140
    %v3046 = vmul.f32 %v3040, %v2141
    %v3047 = vmul.f32 %v3040, %v2142
    %v3048 = vmul.f32 %v3040, %v2143
    %v3049 = vadd.f32 %v3031, %v3042
    %v3050 = vadd.f32 %v3032, %v3043
    %v3051 = vadd.f32 %v3033, %v3044
    %v3052 = vadd.f32 %v3034, %v3045
    %v3053 = vadd.f32 %v3035, %v3046
    %v3054 = vadd.f32 %v3036, %v3047
    %v3055 = vadd.f32 %v3037, %v3048
    %3056 = vset.pattern.permute.xlu0 26
    %3057 = vperm.xlu0 %3056, %v1896
    %v3058 = vpop.permute.xlu0 %3057
    %v3060 = vmul.f32 %v3058, %v2208
    %v3061 = vmul.f32 %v3058, %v2209
    %v3062 = vmul.f32 %v3058, %v2210
    %v3063 = vmul.f32 %v3058, %v2211
    %v3064 = vmul.f32 %v3058, %v2212
    %v3065 = vmul.f32 %v3058, %v2213
    %v3066 = vmul.f32 %v3058, %v2214
    %v3067 = vadd.f32 %v3049, %v3060
    %v3068 = vadd.f32 %v3050, %v3061
    %v3069 = vadd.f32 %v3051, %v3062
    %v3070 = vadd.f32 %v3052, %v3063
    %v3071 = vadd.f32 %v3053, %v3064
    %v3072 = vadd.f32 %v3054, %v3065
    %v3073 = vadd.f32 %v3055, %v3066
    %3074 = vset.pattern.permute.xlu0 27
    %3075 = vperm.xlu0 %3074, %v1896
    %v3076 = vpop.permute.xlu0 %3075
    %v3078 = vmul.f32 %v3076, %v2279
    %v3079 = vmul.f32 %v3076, %v2280
    %v3080 = vmul.f32 %v3076, %v2281
    %v3081 = vmul.f32 %v3076, %v2282
    %v3082 = vmul.f32 %v3076, %v2283
    %v3083 = vmul.f32 %v3076, %v2284
    %v3084 = vmul.f32 %v3076, %v2285
    %v3085 = vadd.f32 %v3067, %v3078
    %v3086 = vadd.f32 %v3068, %v3079
    %v3087 = vadd.f32 %v3069, %v3080
    %v3088 = vadd.f32 %v3070, %v3081
    %v3089 = vadd.f32 %v3071, %v3082
    %v3090 = vadd.f32 %v3072, %v3083
    %v3091 = vadd.f32 %v3073, %v3084
    %3092 = vset.pattern.permute.xlu0 28
    %3093 = vperm.xlu0 %3092, %v1896
    %v3094 = vpop.permute.xlu0 %3093
    %v3096 = vmul.f32 %v3094, %v2066
    %v3097 = vmul.f32 %v3094, %v2067
    %v3098 = vmul.f32 %v3094, %v2068
    %v3099 = vmul.f32 %v3094, %v2069
    %v3100 = vmul.f32 %v3094, %v2070
    %v3101 = vmul.f32 %v3094, %v2071
    %v3102 = vmul.f32 %v3094, %v2072
    %3110 = vrot.lane.b32.xlu0 %v3096, 127
    %v3111 = vpop.permute.xlu0 %3110
    %3112 = vrot.lane.b32.xlu0 %v3097, 127
    %v3113 = vpop.permute.xlu0 %3112
    %3114 = vrot.lane.b32.xlu0 %v3098, 127
    %v3115 = vpop.permute.xlu0 %3114
    %3116 = vrot.lane.b32.xlu0 %v3099, 127
    %v3117 = vpop.permute.xlu0 %3116
    %3118 = vrot.lane.b32.xlu0 %v3100, 127
    %v3119 = vpop.permute.xlu0 %3118
    %3120 = vrot.lane.b32.xlu0 %v3101, 127
    %v3121 = vpop.permute.xlu0 %3120
    %3122 = vrot.lane.b32.xlu0 %v3102, 127
    %v3123 = vpop.permute.xlu0 %3122
    %v3124 = vsel %vm250, %v3111, %v3113
    %v3125 = vsel %vm250, %v3113, %v3115
    %v3126 = vsel %vm250, %v3115, %v3117
    %v3127 = vsel %vm250, %v3117, %v3119
    %v3128 = vsel %vm250, %v3119, %v3121
    %v3129 = vsel %vm250, %v3121, %v3123
    %v3137 = vadd.f32 %v3085, %v3124
    %v3138 = vadd.f32 %v3086, %v3125
    %v3139 = vadd.f32 %v3087, %v3126
    %v3140 = vadd.f32 %v3088, %v3127
    %v3141 = vadd.f32 %v3089, %v3128
    %v3142 = vadd.f32 %v3090, %v3129
    %v3143 = vadd.f32 %v3091, %v3123
    %3144 = vset.pattern.permute.xlu0 29
    %3145 = vperm.xlu0 %3144, %v1896
    %v3146 = vpop.permute.xlu0 %3145
    %v3148 = vmul.f32 %v3146, %v2137
    %v3149 = vmul.f32 %v3146, %v2138
    %v3150 = vmul.f32 %v3146, %v2139
    %v3151 = vmul.f32 %v3146, %v2140
    %v3152 = vmul.f32 %v3146, %v2141
    %v3153 = vmul.f32 %v3146, %v2142
    %v3154 = vmul.f32 %v3146, %v2143
    %3162 = vrot.lane.b32.xlu0 %v3148, 127
    %v3163 = vpop.permute.xlu0 %3162
    %3164 = vrot.lane.b32.xlu0 %v3149, 127
    %v3165 = vpop.permute.xlu0 %3164
    %3166 = vrot.lane.b32.xlu0 %v3150, 127
    %v3167 = vpop.permute.xlu0 %3166
    %3168 = vrot.lane.b32.xlu0 %v3151, 127
    %v3169 = vpop.permute.xlu0 %3168
    %3170 = vrot.lane.b32.xlu0 %v3152, 127
    %v3171 = vpop.permute.xlu0 %3170
    %3172 = vrot.lane.b32.xlu0 %v3153, 127
    %v3173 = vpop.permute.xlu0 %3172
    %3174 = vrot.lane.b32.xlu0 %v3154, 127
    %v3175 = vpop.permute.xlu0 %3174
    %v3176 = vsel %vm250, %v3163, %v3165
    %v3177 = vsel %vm250, %v3165, %v3167
    %v3178 = vsel %vm250, %v3167, %v3169
    %v3179 = vsel %vm250, %v3169, %v3171
    %v3180 = vsel %vm250, %v3171, %v3173
    %v3181 = vsel %vm250, %v3173, %v3175
    %v3189 = vadd.f32 %v3137, %v3176
    %v3190 = vadd.f32 %v3138, %v3177
    %v3191 = vadd.f32 %v3139, %v3178
    %v3192 = vadd.f32 %v3140, %v3179
    %v3193 = vadd.f32 %v3141, %v3180
    %v3194 = vadd.f32 %v3142, %v3181
    %v3195 = vadd.f32 %v3143, %v3175
    %3196 = vset.pattern.permute.xlu0 30
    %3197 = vperm.xlu0 %3196, %v1896
    %v3198 = vpop.permute.xlu0 %3197
    %v3200 = vmul.f32 %v3198, %v2208
    %v3201 = vmul.f32 %v3198, %v2209
    %v3202 = vmul.f32 %v3198, %v2210
    %v3203 = vmul.f32 %v3198, %v2211
    %v3204 = vmul.f32 %v3198, %v2212
    %v3205 = vmul.f32 %v3198, %v2213
    %v3206 = vmul.f32 %v3198, %v2214
    %3214 = vrot.lane.b32.xlu0 %v3200, 127
    %v3215 = vpop.permute.xlu0 %3214
    %3216 = vrot.lane.b32.xlu0 %v3201, 127
    %v3217 = vpop.permute.xlu0 %3216
    %3218 = vrot.lane.b32.xlu0 %v3202, 127
    %v3219 = vpop.permute.xlu0 %3218
    %3220 = vrot.lane.b32.xlu0 %v3203, 127
    %v3221 = vpop.permute.xlu0 %3220
    %3222 = vrot.lane.b32.xlu0 %v3204, 127
    %v3223 = vpop.permute.xlu0 %3222
    %3224 = vrot.lane.b32.xlu0 %v3205, 127
    %v3225 = vpop.permute.xlu0 %3224
    %3226 = vrot.lane.b32.xlu0 %v3206, 127
    %v3227 = vpop.permute.xlu0 %3226
    %v3228 = vsel %vm250, %v3215, %v3217
    %v3229 = vsel %vm250, %v3217, %v3219
    %v3230 = vsel %vm250, %v3219, %v3221
    %v3231 = vsel %vm250, %v3221, %v3223
    %v3232 = vsel %vm250, %v3223, %v3225
    %v3233 = vsel %vm250, %v3225, %v3227
    %v3241 = vadd.f32 %v3189, %v3228
    %v3242 = vadd.f32 %v3190, %v3229
    %v3243 = vadd.f32 %v3191, %v3230
    %v3244 = vadd.f32 %v3192, %v3231
    %v3245 = vadd.f32 %v3193, %v3232
    %v3246 = vadd.f32 %v3194, %v3233
    %v3247 = vadd.f32 %v3195, %v3227
    %3248 = vset.pattern.permute.xlu0 31
    %3249 = vperm.xlu0 %3248, %v1896
    %v3250 = vpop.permute.xlu0 %3249
    %v3252 = vmul.f32 %v3250, %v2279
    %v3253 = vmul.f32 %v3250, %v2280
    %v3254 = vmul.f32 %v3250, %v2281
    %v3255 = vmul.f32 %v3250, %v2282
    %v3256 = vmul.f32 %v3250, %v2283
    %v3257 = vmul.f32 %v3250, %v2284
    %v3258 = vmul.f32 %v3250, %v2285
    %3266 = vrot.lane.b32.xlu0 %v3252, 127
    %v3267 = vpop.permute.xlu0 %3266
    %3268 = vrot.lane.b32.xlu0 %v3253, 127
    %v3269 = vpop.permute.xlu0 %3268
    %3270 = vrot.lane.b32.xlu0 %v3254, 127
    %v3271 = vpop.permute.xlu0 %3270
    %3272 = vrot.lane.b32.xlu0 %v3255, 127
    %v3273 = vpop.permute.xlu0 %3272
    %3274 = vrot.lane.b32.xlu0 %v3256, 127
    %v3275 = vpop.permute.xlu0 %3274
    %3276 = vrot.lane.b32.xlu0 %v3257, 127
    %v3277 = vpop.permute.xlu0 %3276
    %3278 = vrot.lane.b32.xlu0 %v3258, 127
    %v3279 = vpop.permute.xlu0 %3278
    %v3280 = vsel %vm250, %v3267, %v3269
    %v3281 = vsel %vm250, %v3269, %v3271
    %v3282 = vsel %vm250, %v3271, %v3273
    %v3283 = vsel %vm250, %v3273, %v3275
    %v3284 = vsel %vm250, %v3275, %v3277
    %v3285 = vsel %vm250, %v3277, %v3279
    %v3293 = vadd.f32 %v3241, %v3280
    %v3294 = vadd.f32 %v3242, %v3281
    %v3295 = vadd.f32 %v3243, %v3282
    %v3296 = vadd.f32 %v3244, %v3283
    %v3297 = vadd.f32 %v3245, %v3284
    %v3298 = vadd.f32 %v3246, %v3285
    %v3299 = vadd.f32 %v3247, %v3279
    %3300 = vset.pattern.permute.xlu0 32
    %3301 = vperm.xlu0 %3300, %v1896
    %v3302 = vpop.permute.xlu0 %3301
    %v3304 = vmul.f32 %v3302, %v2066
    %v3305 = vmul.f32 %v3302, %v2067
    %v3306 = vmul.f32 %v3302, %v2068
    %v3307 = vmul.f32 %v3302, %v2069
    %v3308 = vmul.f32 %v3302, %v2070
    %v3309 = vmul.f32 %v3302, %v2071
    %v3310 = vmul.f32 %v3302, %v2072
    %3318 = vrot.lane.b32.xlu0 %v3304, 126
    %v3319 = vpop.permute.xlu0 %3318
    %3320 = vrot.lane.b32.xlu0 %v3305, 126
    %v3321 = vpop.permute.xlu0 %3320
    %3322 = vrot.lane.b32.xlu0 %v3306, 126
    %v3323 = vpop.permute.xlu0 %3322
    %3324 = vrot.lane.b32.xlu0 %v3307, 126
    %v3325 = vpop.permute.xlu0 %3324
    %3326 = vrot.lane.b32.xlu0 %v3308, 126
    %v3327 = vpop.permute.xlu0 %3326
    %3328 = vrot.lane.b32.xlu0 %v3309, 126
    %v3329 = vpop.permute.xlu0 %3328
    %3330 = vrot.lane.b32.xlu0 %v3310, 126
    %v3331 = vpop.permute.xlu0 %3330
    %v3332 = vsel %vm514, %v3319, %v3321
    %v3333 = vsel %vm514, %v3321, %v3323
    %v3334 = vsel %vm514, %v3323, %v3325
    %v3335 = vsel %vm514, %v3325, %v3327
    %v3336 = vsel %vm514, %v3327, %v3329
    %v3337 = vsel %vm514, %v3329, %v3331
    %v3345 = vadd.f32 %v3293, %v3332
    %v3346 = vadd.f32 %v3294, %v3333
    %v3347 = vadd.f32 %v3295, %v3334
    %v3348 = vadd.f32 %v3296, %v3335
    %v3349 = vadd.f32 %v3297, %v3336
    %v3350 = vadd.f32 %v3298, %v3337
    %v3351 = vadd.f32 %v3299, %v3331
    %3352 = vset.pattern.permute.xlu0 33
    %3353 = vperm.xlu0 %3352, %v1896
    %v3354 = vpop.permute.xlu0 %3353
    %v3356 = vmul.f32 %v3354, %v2137
    %v3357 = vmul.f32 %v3354, %v2138
    %v3358 = vmul.f32 %v3354, %v2139
    %v3359 = vmul.f32 %v3354, %v2140
    %v3360 = vmul.f32 %v3354, %v2141
    %v3361 = vmul.f32 %v3354, %v2142
    %v3362 = vmul.f32 %v3354, %v2143
    %3370 = vrot.lane.b32.xlu0 %v3356, 126
    %v3371 = vpop.permute.xlu0 %3370
    %3372 = vrot.lane.b32.xlu0 %v3357, 126
    %v3373 = vpop.permute.xlu0 %3372
    %3374 = vrot.lane.b32.xlu0 %v3358, 126
    %v3375 = vpop.permute.xlu0 %3374
    %3376 = vrot.lane.b32.xlu0 %v3359, 126
    %v3377 = vpop.permute.xlu0 %3376
    %3378 = vrot.lane.b32.xlu0 %v3360, 126
    %v3379 = vpop.permute.xlu0 %3378
    %3380 = vrot.lane.b32.xlu0 %v3361, 126
    %v3381 = vpop.permute.xlu0 %3380
    %3382 = vrot.lane.b32.xlu0 %v3362, 126
    %v3383 = vpop.permute.xlu0 %3382
    %v3384 = vsel %vm514, %v3371, %v3373
    %v3385 = vsel %vm514, %v3373, %v3375
    %v3386 = vsel %vm514, %v3375, %v3377
    %v3387 = vsel %vm514, %v3377, %v3379
    %v3388 = vsel %vm514, %v3379, %v3381
    %v3389 = vsel %vm514, %v3381, %v3383
    %v3397 = vadd.f32 %v3345, %v3384
    %v3398 = vadd.f32 %v3346, %v3385
    %v3399 = vadd.f32 %v3347, %v3386
    %v3400 = vadd.f32 %v3348, %v3387
    %v3401 = vadd.f32 %v3349, %v3388
    %v3402 = vadd.f32 %v3350, %v3389
    %v3403 = vadd.f32 %v3351, %v3383
    %3404 = vset.pattern.permute.xlu0 34
    %3405 = vperm.xlu0 %3404, %v1896
    %v3406 = vpop.permute.xlu0 %3405
    %v3408 = vmul.f32 %v3406, %v2208
    %v3409 = vmul.f32 %v3406, %v2209
    %v3410 = vmul.f32 %v3406, %v2210
    %v3411 = vmul.f32 %v3406, %v2211
    %v3412 = vmul.f32 %v3406, %v2212
    %v3413 = vmul.f32 %v3406, %v2213
    %v3414 = vmul.f32 %v3406, %v2214
    %3422 = vrot.lane.b32.xlu0 %v3408, 126
    %v3423 = vpop.permute.xlu0 %3422
    %3424 = vrot.lane.b32.xlu0 %v3409, 126
    %v3425 = vpop.permute.xlu0 %3424
    %3426 = vrot.lane.b32.xlu0 %v3410, 126
    %v3427 = vpop.permute.xlu0 %3426
    %3428 = vrot.lane.b32.xlu0 %v3411, 126
    %v3429 = vpop.permute.xlu0 %3428
    %3430 = vrot.lane.b32.xlu0 %v3412, 126
    %v3431 = vpop.permute.xlu0 %3430
    %3432 = vrot.lane.b32.xlu0 %v3413, 126
    %v3433 = vpop.permute.xlu0 %3432
    %3434 = vrot.lane.b32.xlu0 %v3414, 126
    %v3435 = vpop.permute.xlu0 %3434
    %v3436 = vsel %vm514, %v3423, %v3425
    %v3437 = vsel %vm514, %v3425, %v3427
    %v3438 = vsel %vm514, %v3427, %v3429
    %v3439 = vsel %vm514, %v3429, %v3431
    %v3440 = vsel %vm514, %v3431, %v3433
    %v3441 = vsel %vm514, %v3433, %v3435
    %v3449 = vadd.f32 %v3397, %v3436
    %v3450 = vadd.f32 %v3398, %v3437
    %v3451 = vadd.f32 %v3399, %v3438
    %v3452 = vadd.f32 %v3400, %v3439
    %v3453 = vadd.f32 %v3401, %v3440
    %v3454 = vadd.f32 %v3402, %v3441
    %v3455 = vadd.f32 %v3403, %v3435
    %3456 = vset.pattern.permute.xlu0 35
    %3457 = vperm.xlu0 %3456, %v1896
    %v3458 = vpop.permute.xlu0 %3457
    %v3460 = vmul.f32 %v3458, %v2279
    %v3461 = vmul.f32 %v3458, %v2280
    %v3462 = vmul.f32 %v3458, %v2281
    %v3463 = vmul.f32 %v3458, %v2282
    %v3464 = vmul.f32 %v3458, %v2283
    %v3465 = vmul.f32 %v3458, %v2284
    %v3466 = vmul.f32 %v3458, %v2285
    %3474 = vrot.lane.b32.xlu0 %v3460, 126
    %v3475 = vpop.permute.xlu0 %3474
    %3476 = vrot.lane.b32.xlu0 %v3461, 126
    %v3477 = vpop.permute.xlu0 %3476
    %3478 = vrot.lane.b32.xlu0 %v3462, 126
    %v3479 = vpop.permute.xlu0 %3478
    %3480 = vrot.lane.b32.xlu0 %v3463, 126
    %v3481 = vpop.permute.xlu0 %3480
    %3482 = vrot.lane.b32.xlu0 %v3464, 126
    %v3483 = vpop.permute.xlu0 %3482
    %3484 = vrot.lane.b32.xlu0 %v3465, 126
    %v3485 = vpop.permute.xlu0 %3484
    %3486 = vrot.lane.b32.xlu0 %v3466, 126
    %v3487 = vpop.permute.xlu0 %3486
    %v3488 = vsel %vm514, %v3475, %v3477
    %v3489 = vsel %vm514, %v3477, %v3479
    %v3490 = vsel %vm514, %v3479, %v3481
    %v3491 = vsel %vm514, %v3481, %v3483
    %v3492 = vsel %vm514, %v3483, %v3485
    %v3493 = vsel %vm514, %v3485, %v3487
    %v3501 = vadd.f32 %v3449, %v3488
    %v3502 = vadd.f32 %v3450, %v3489
    %v3503 = vadd.f32 %v3451, %v3490
    %v3504 = vadd.f32 %v3452, %v3491
    %v3505 = vadd.f32 %v3453, %v3492
    %v3506 = vadd.f32 %v3454, %v3493
    %v3507 = vadd.f32 %v3455, %v3487
    %3515 = vrot.lane.b32.xlu0 %v3013, 110
    %v3516 = vpop.permute.xlu0 %3515
    %3517 = vrot.lane.b32.xlu0 %v3014, 110
    %v3518 = vpop.permute.xlu0 %3517
    %3519 = vrot.lane.b32.xlu0 %v3015, 110
    %v3520 = vpop.permute.xlu0 %3519
    %3521 = vrot.lane.b32.xlu0 %v3016, 110
    %v3522 = vpop.permute.xlu0 %3521
    %3523 = vrot.lane.b32.xlu0 %v3017, 110
    %v3524 = vpop.permute.xlu0 %3523
    %3525 = vrot.lane.b32.xlu0 %v3018, 110
    %v3526 = vpop.permute.xlu0 %3525
    %3527 = vrot.lane.b32.xlu0 %v3019, 110
    %v3528 = vpop.permute.xlu0 %3527
    %v3529 = vsel %vm1680, %v3516, %v3518
    %v3530 = vsel %vm1680, %v3518, %v3520
    %v3531 = vsel %vm1680, %v3520, %v3522
    %v3532 = vsel %vm1680, %v3522, %v3524
    %v3533 = vsel %vm1680, %v3524, %v3526
    %v3534 = vsel %vm1680, %v3526, %v3528
    %v3541 = vadd.f32 %v2526, %v3529
    %v3542 = vadd.f32 %v2527, %v3530
    %v3543 = vadd.f32 %v2528, %v3531
    %v3544 = vadd.f32 %v2529, %v3532
    %v3545 = vadd.f32 %v2530, %v3533
    %v3546 = vadd.f32 %v2531, %v3534
    %3554 = vrot.lane.b32.xlu0 %v3501, 92
    %v3555 = vpop.permute.xlu0 %3554
    %3556 = vrot.lane.b32.xlu0 %v3502, 92
    %v3557 = vpop.permute.xlu0 %3556
    %3558 = vrot.lane.b32.xlu0 %v3503, 92
    %v3559 = vpop.permute.xlu0 %3558
    %3560 = vrot.lane.b32.xlu0 %v3504, 92
    %v3561 = vpop.permute.xlu0 %3560
    %3562 = vrot.lane.b32.xlu0 %v3505, 92
    %v3563 = vpop.permute.xlu0 %3562
    %3564 = vrot.lane.b32.xlu0 %v3506, 92
    %v3565 = vpop.permute.xlu0 %3564
    %3566 = vrot.lane.b32.xlu0 %v3507, 92
    %v3567 = vpop.permute.xlu0 %3566
    %v3568 = vsel %vm1720, %v3555, %v3557
    %v3569 = vsel %vm1720, %v3557, %v3559
    %v3570 = vsel %vm1720, %v3559, %v3561
    %v3571 = vsel %vm1720, %v3561, %v3563
    %v3572 = vsel %vm1720, %v3563, %v3565
    %v3573 = vsel %vm1720, %v3565, %v3567
    %v3580 = vadd.f32 %v3541, %v3568
    %v3581 = vadd.f32 %v3542, %v3569
    %v3582 = vadd.f32 %v3543, %v3570
    %v3583 = vadd.f32 %v3544, %v3571
    %v3584 = vadd.f32 %v3545, %v3572
    %v3585 = vadd.f32 %v3546, %v3573
    %v3586 = vld [vmem:[%s5] sm:$0xf]
    %v3587 = vld [vmem:[%s6] sm:$0xf]
    %v3588 = vmul.f32 %v3580, %v1742
    %v3589 = vmul.f32 %v3581, %v1743
    %v3590 = vmul.f32 %v3582, %v1744
    %v3591 = vmul.f32 %v3583, %v1745
    %v3592 = vmul.f32 %v3584, %v1746
    %v3593 = vmul.f32 %v3585, %v1747
    %v3594 = vsel %vm1760, %v3588, 0.0
    %v3595 = vsel %vm1760, %v3589, 0.0
    %v3596 = vadd.f32 %v3594, %v3595
    %v3597 = vsel %vm1760, %v3590, 0.0
    %v3598 = vadd.f32 %v3596, %v3597
    %v3599 = vsel %vm1760, %v3591, 0.0
    %v3600 = vadd.f32 %v3598, %v3599
    %v3601 = vsel %vm1760, %v3592, 0.0
    %v3602 = vadd.f32 %v3600, %v3601
    %v3603 = vsel %vm1760, %v3593, 0.0
    %v3604 = vadd.f32 %v3602, %v3603
    %3605 = vadd.xlane.f32.xlu0 %v3604
    %v3606 = vpop.xlane.xlu0 %3605
    %v3607 = vmul.f32 %v3606, 0.001953125
    %v3608 = vsub.f32 %v3580, %v3607
    %v3609 = vsub.f32 %v3581, %v3607
    %v3610 = vsub.f32 %v3582, %v3607
    %v3611 = vsub.f32 %v3583, %v3607
    %v3612 = vsub.f32 %v3584, %v3607
    %v3613 = vsub.f32 %v3585, %v3607
    %v3614 = vmul.f32 %v3608, %v3608
    %v3615 = vmul.f32 %v3609, %v3609
    %v3616 = vmul.f32 %v3610, %v3610
    %v3617 = vmul.f32 %v3611, %v3611
    %v3618 = vmul.f32 %v3612, %v3612
    %v3619 = vmul.f32 %v3613, %v3613
    %v3620 = vmul.f32 %v3614, %v1742
    %v3621 = vmul.f32 %v3615, %v1743
    %v3622 = vmul.f32 %v3616, %v1744
    %v3623 = vmul.f32 %v3617, %v1745
    %v3624 = vmul.f32 %v3618, %v1746
    %v3625 = vmul.f32 %v3619, %v1747
    %v3626 = vsel %vm1760, %v3620, 0.0
    %v3627 = vsel %vm1760, %v3621, 0.0
    %v3628 = vadd.f32 %v3626, %v3627
    %v3629 = vsel %vm1760, %v3622, 0.0
    %v3630 = vadd.f32 %v3628, %v3629
    %v3631 = vsel %vm1760, %v3623, 0.0
    %v3632 = vadd.f32 %v3630, %v3631
    %v3633 = vsel %vm1760, %v3624, 0.0
    %v3634 = vadd.f32 %v3632, %v3633
    %v3635 = vsel %vm1760, %v3625, 0.0
    %v3636 = vadd.f32 %v3634, %v3635
    %3637 = vadd.xlane.f32.xlu0 %v3636
    %v3638 = vpop.xlane.xlu0 %3637
    %v3639 = vmul.f32 %v3638, 0.001953125
    %v3640 = vadd.f32 %v3639, 1e-05
    %v3641 = vrsqrt.pop %v3640
    %v3642 = vmul.f32 %v3641, %v3640
    %v3643 = vmul.f32 %v3642, %v3641
    %v3644 = vmul.f32 0.5, %v3643
    %v3645 = vsub.f32 1.5, %v3644
    %v3646 = vmul.f32 %v3641, %v3645
    %vm3647 = vweird.f32 %v3640
    %vm3648 = vweird.f32 %v3641
    %vm3649 = vmor %vm3647, %vm3648
    %v3650 = vsel %vm3649, %v3641, %v3646
    %v3651 = vmul.f32 %v3586, %v3650
    %3653 = vset.pattern.permute.xlu0 0
    %3654 = vperm.xlu0 %3653, %v3651
    %v3655 = vpop.permute.xlu0 %3654
    %v3657 = vmul.f32 %v3608, %v3655
    %v3658 = vmul.f32 %v3609, %v3655
    %v3659 = vmul.f32 %v3610, %v3655
    %v3660 = vmul.f32 %v3611, %v3655
    %v3661 = vmul.f32 %v3612, %v3655
    %v3662 = vmul.f32 %v3613, %v3655
    %3664 = vset.pattern.permute.xlu0 0
    %3665 = vperm.xlu0 %3664, %v3587
    %v3666 = vpop.permute.xlu0 %3665
    %v3668 = vadd.f32 %v3657, %v3666
    %v3669 = vadd.f32 %v3658, %v3666
    %v3670 = vadd.f32 %v3659, %v3666
    %v3671 = vadd.f32 %v3660, %v3666
    %v3672 = vadd.f32 %v3661, %v3666
    %v3673 = vadd.f32 %v3662, %v3666
    %v3674 = vld [vmem:[#allocation3] sm:$0xff]
    %v3675 = vld [vmem:[#allocation3 + $0x8] sm:$0xff]
    %v3676 = vld [vmem:[#allocation3 + $0x10] sm:$0xff]
    %v3677 = vld [vmem:[#allocation3 + $0x18] sm:$0xf]
    %3682 = vst [vmem:[#allocation1] ss:$2 sm:$0xff] %v3674
    %s3683 = scalar_lea.vmem [#allocation1], 16
    %3684 = vst [vmem:[%s3683] ss:$2 sm:$0xff] %v3675
    %s3685 = scalar_lea.vmem [#allocation1], 32
    %3686 = vst [vmem:[%s3685] ss:$2 sm:$0xff] %v3676
    %s3687 = scalar_lea.vmem [#allocation1], 48
    %3688 = vst [vmem:[%s3687] ss:$2 sm:$0xff] %v3677
    %v3689 = vld.sshfl [vmem:[#allocation1] sm:$0xff pattern:$0x75316420]
    %v3690 = vld.sshfl [vmem:[#allocation1 + $0x8] sm:$0xff pattern:$0x75316420]
    %v3691 = vld.sshfl [vmem:[#allocation1 + $0x10] sm:$0xff pattern:$0x75316420]
    %v3692 = vld.sshfl [vmem:[#allocation1 + $0x18] sm:$0xff pattern:$0x75316420]
    %v3693 = vld.sshfl [vmem:[#allocation1 + $0x20] sm:$0xff pattern:$0x75316420]
    %v3694 = vld.sshfl [vmem:[#allocation1 + $0x28] sm:$0xff pattern:$0x75316420]
    %v3695 = vld.sshfl [vmem:[#allocation1 + $0x30] sm:$0xff pattern:$0x75316420]
    %3696 = vrot.lane.b32.xlu0 %v3689, 109
    %v3697 = vpop.permute.xlu0 %3696
    %3698 = vrot.lane.b32.xlu0 %v3690, 109
    %v3699 = vpop.permute.xlu0 %3698
    %3700 = vrot.lane.b32.xlu0 %v3691, 109
    %v3701 = vpop.permute.xlu0 %3700
    %3702 = vrot.lane.b32.xlu0 %v3692, 109
    %v3703 = vpop.permute.xlu0 %3702
    %3704 = vrot.lane.b32.xlu0 %v3693, 109
    %v3705 = vpop.permute.xlu0 %3704
    %3706 = vrot.lane.b32.xlu0 %v3694, 109
    %v3707 = vpop.permute.xlu0 %3706
    %3708 = vrot.lane.b32.xlu0 %v3695, 109
    %v3709 = vpop.permute.xlu0 %3708
    %vm3710 = vcmask 891904
    %v3711 = vsel %vm3710, %v3697, %v3699
    %v3712 = vsel %vm3710, %v3699, %v3701
    %v3713 = vsel %vm3710, %v3701, %v3703
    %v3714 = vsel %vm3710, %v3703, %v3705
    %v3715 = vsel %vm3710, %v3705, %v3707
    %v3716 = vsel %vm3710, %v3707, %v3709
    %v3723 = vadd.f32 %v3668, %v3711
    %v3724 = vadd.f32 %v3669, %v3712
    %v3725 = vadd.f32 %v3670, %v3713
    %v3726 = vadd.f32 %v3671, %v3714
    %v3727 = vadd.f32 %v3672, %v3715
    %v3728 = vadd.f32 %v3673, %v3716
    %v3729 = vmax.f32 %v3723, 0.0
    %v3730 = vmax.f32 %v3724, 0.0
    %v3731 = vmax.f32 %v3725, 0.0
    %v3732 = vmax.f32 %v3726, 0.0
    %v3733 = vmax.f32 %v3727, 0.0
    %v3734 = vmax.f32 %v3728, 0.0
    %v3741 = vrot.slane %v3730, 4
    %v3742 = vrot.slane %v3732, 4
    %v3743 = vrot.slane %v3734, 4
    %v3744 = vsel %vm1760, %v3729, %v3741
    %v3745 = vsel %vm1760, %v3731, %v3742
    %v3746 = vsel %vm1760, %v3733, %v3743
    %3750 = vst [vmem:[#allocation6] sm:$0xff] %v3744
    %3751 = vst [vmem:[#allocation6 + $0x8] sm:$0xff] %v3745
    %3752 = vst [vmem:[#allocation6 + $0x10] sm:$0xff] %v3746
    // Predicated region
    $region38: #{tpu_custom_call.1} parent=1 // pred_check
      _
    $region39: #{tpu_custom_call.1} parent=1 // pred_check_branch
      %3754 = sbr.rel (0) target = $region41
    $region40: #{tpu_custom_call.1} parent=1 // pred_region
      %3756 = vsyncadd [#allocation5], 0
      %s3758 = sshll.u32 [#allocation6], 4
      %s3759 = int_to_ptr.vmem [resolvable:$true] %s3758
      %s3760 = sshll.u32 %s8, 4
      %s3761 = int_to_ptr.hbm [resolvable:$true] %s3760
      %3763 = dma.vmem_to_hbm [thread:$0]  %s3759, 384, %s3761, [#allocation5]
    $region41: #{tpu_custom_call.1} parent=1 // pred_fallthru
      _
    // Predicated region
    $region42: #{tpu_custom_call.1} parent=1 // pred_check
      _
    $region43: #{tpu_custom_call.1} parent=1 // pred_check_branch
      %3765 = sbr.rel (0) target = $region45
    $region44: #{tpu_custom_call.1} parent=1 // pred_region
      %3767 = dma.done [#allocation5], 384
    $region45: #{tpu_custom_call.1} parent=1 // pred_fallthru
      _
    %3768 = vsyncpa [#allocation4], 1
    %3769 = vsyncpa [#allocation5], 1

</llo_original>
